<compile_context>
chip_gen: v6e
topology: v6e:2x2x1
jax: 0.10.0
libtpu: 0.0.40
codegen_flags: <defaults>
</compile_context>

<pallas_src>
import functools

import jax
import jax.numpy as jnp
from jax.experimental import pallas as pl
from jax.experimental.pallas import tpu as pltpu

_VMEM_LIMIT = 48 * 1024 * 1024   # stays inside v7x's 64 MiB physical VMEM with headroom


def _row_tile(total_rows, target=512):
    """Largest multiple-of-8 tile <= target that divides total_rows (else all rows)."""
    t = min(target, total_rows)
    t -= t % 8
    while t >= 8:
        if total_rows % t == 0:
            return t
        t -= 8
    return total_rows


# ---------------------------------------------------------------------------
# Weight folding (done once at init, outside jit).
# TODO(synk): the width-folded layout is specialized to moderate W; for large spatial
#             maps switch to an im2col / H-tiled halo formulation instead.
# ---------------------------------------------------------------------------
def _fold_deconv_weight(w_t, W):
    """ConvTranspose2d(k=2,s=2) weight (Cin, Cout, 2, 2) -> block-diagonal width-folded
    weight (2, W*Cin, W*2*Cout) bf16 so that, per output-row parity ki:
        out[(n,h), w*2*Cout + kj*Cout + co] = sum_ci x[(n,h), w*Cin + ci] * w_t[ci,co,ki,kj]."""
    Cin, Cout = w_t.shape[0], w_t.shape[1]
    eye_w = jnp.eye(W, dtype=jnp.float32)
    mats = []
    for ki in range(2):
        wk = jnp.transpose(w_t[:, :, ki, :], (0, 2, 1))            # (Cin, kj, Cout)
        m = jnp.einsum('wv,cjo->wcvjo', eye_w, wk)
        mats.append(m.reshape(W * Cin, W * 2 * Cout))
    return jnp.stack(mats).astype(jnp.bfloat16)


def _fold_conv3x3_weight(w_hwio, W):
    """Conv2d(3x3, pad=1) weight (3, 3, Cin, Cout) HWIO -> block-Toeplitz width-folded
    weight (3, W*Cin, W*Cout) bf16. Width zero-padding is baked into the band structure,
    so the conv becomes 3 row-shifted matmuls with K = W*Cin."""
    Cin, Cout = w_hwio.shape[2], w_hwio.shape[3]
    mats = []
    for ki in range(3):
        m = jnp.zeros((W * Cin, W * Cout), jnp.float32)
        for kj in range(3):
            band = jnp.eye(W, k=1 - kj, dtype=jnp.float32)         # band[wi,wo]=1 iff wo=wi+1-kj
            m = m + jnp.einsum('wv,co->wcvo', band, w_hwio[ki, kj]).reshape(W * Cin, W * Cout)
        mats.append(m)
    return jnp.stack(mats).astype(jnp.bfloat16)


# ---------------------------------------------------------------------------
# Kernel 1: ConvTranspose2d(kernel=2, stride=2) with fused depth-to-space.
# ---------------------------------------------------------------------------
def _deconv2x2_kernel(x_ref, w_ref, b_ref, o_ref):
    # x: (tr, W*Cin) f32   w: (2, W*Cin, W*2*Cout) bf16   b: (1, W*2*Cout) f32
    # o: (tr, 2, W*2*Cout) bf16 -- o[:, ki, :] is the ki-th output-row parity
    xb = x_ref[...].astype(jnp.bfloat16)
    bias = b_ref[...]
    for ki in range(2):
        y = jnp.dot(xb, w_ref[ki], preferred_element_type=jnp.float32) + bias
        o_ref[:, ki, :] = y.astype(o_ref.dtype)


def deconv2x2(x2d, w_fold, b_row, *, N, H, W, Cout):
    rows, wcin = x2d.shape
    wc2 = W * 2 * Cout
    tr = _row_tile(rows)
    out = pl.pallas_call(
        _deconv2x2_kernel,
        out_shape=jax.ShapeDtypeStruct((rows, 2, wc2), jnp.bfloat16),
        grid_spec=pltpu.PrefetchScalarGridSpec(
            num_scalar_prefetch=0,
            grid=(rows // tr,),
            in_specs=[
                pl.BlockSpec((tr, wcin), lambda r: (r, 0)),
                pl.BlockSpec((2, wcin, wc2), lambda r: (0, 0, 0)),   # resident weights
                pl.BlockSpec((1, wc2), lambda r: (0, 0)),            # resident bias
            ],
            out_specs=pl.BlockSpec((tr, 2, wc2), lambda r: (r, 0, 0)),
        ),
        compiler_params=pltpu.CompilerParams(
            dimension_semantics=("parallel",),
            vmem_limit_bytes=_VMEM_LIMIT),
    )(x2d, w_fold, b_row)
    # (N*H, 2, W, 2, Cout) row-major == (N, 2H, 2W, Cout): contiguous (free) reshape
    return out.reshape(N, 2 * H, 2 * W * Cout)


# ---------------------------------------------------------------------------
# Kernel 2: [previous BN scale/shift + ReLU] -> Conv3x3(pad=1)+bias -> BN partial stats.
# ---------------------------------------------------------------------------
def _conv3x3_bn_stats_kernel(x_ref, sc_ref, sh_ref, w_ref, b_ref, y_ref, st_ref, *, in_relu):
    # x:  (1, H, W*Cin)  bf16  pre-BN output of the previous layer (or deconv output)
    # sc/sh: (1, W*Cin)  f32   previous layer's BN scale/shift (identity for the first conv)
    # w:  (3, W*Cin, W*Cout) bf16 block-Toeplitz folded conv weight
    # b:  (1, W*Cout)    f32
    # y:  (1, H, W*Cout) bf16  this layer's pre-BN conv output
    # st: (1, 2, W*Cout) f32   per-image [sum; sum-of-squares] over rows, lane order (w, c)
    H = x_ref.shape[1]
    wc_in = x_ref.shape[2]
    x = x_ref[0].astype(jnp.float32) * sc_ref[...] + sh_ref[...]
    if in_relu:
        x = jnp.maximum(x, 0.0)
    xb = x.astype(jnp.bfloat16)

    # Height taps: row-shift with zero fill at the image borders (width padding is
    # already baked into the block-Toeplitz weights).
    zero_row = jnp.zeros((1, wc_in), jnp.bfloat16)
    x_dn = jnp.concatenate([zero_row, xb[:H - 1, :]], axis=0)     # input row h-1
    x_up = jnp.concatenate([xb[1:, :], zero_row], axis=0)         # input row h+1

    y = jnp.dot(x_dn, w_ref[0], preferred_element_type=jnp.float32)
    y = y + jnp.dot(xb, w_ref[1], preferred_element_type=jnp.float32)
    y = y + jnp.dot(x_up, w_ref[2], preferred_element_type=jnp.float32)
    y = y + b_ref[...]

    y_ref[0] = y.astype(y_ref.dtype)
    s1 = jnp.sum(y, axis=0, keepdims=True)
    s2 = jnp.sum(y * y, axis=0, keepdims=True)
    st_ref[0] = jnp.concatenate([s1, s2], axis=0)


def conv3x3_bn_stats(x, in_sc, in_sh, w_fold, b_row, *, in_relu):
    N, H, wc_in = x.shape
    wc_out = w_fold.shape[2]
    return pl.pallas_call(
        functools.partial(_conv3x3_bn_stats_kernel, in_relu=in_relu),
        out_shape=(jax.ShapeDtypeStruct((N, H, wc_out), jnp.bfloat16),
                   jax.ShapeDtypeStruct((N, 2, wc_out), jnp.float32)),
        grid_spec=pltpu.PrefetchScalarGridSpec(
            num_scalar_prefetch=0,
            grid=(N,),
            # TODO(synk): tile H with explicit halo rows for large spatial maps; a
            # per-image block fits VMEM comfortably at decoder feature-map sizes.
            in_specs=[
                pl.BlockSpec((1, H, wc_in), lambda n: (n, 0, 0)),
                pl.BlockSpec((1, wc_in), lambda n: (0, 0)),              # resident
                pl.BlockSpec((1, wc_in), lambda n: (0, 0)),              # resident
                pl.BlockSpec((3, wc_in, wc_out), lambda n: (0, 0, 0)),   # resident
                pl.BlockSpec((1, wc_out), lambda n: (0, 0)),             # resident
            ],
            out_specs=(
                pl.BlockSpec((1, H, wc_out), lambda n: (n, 0, 0)),
                pl.BlockSpec((1, 2, wc_out), lambda n: (n, 0, 0)),       # per-image partials
            ),
        ),
        compiler_params=pltpu.CompilerParams(
            dimension_semantics=("parallel",),   # partial sums reduced in XLA (v7x: 2 TCs)
            vmem_limit_bytes=_VMEM_LIMIT),
    )(x, in_sc, in_sh, w_fold, b_row)


# ---------------------------------------------------------------------------
# Kernel 3: lane-dense BatchNorm scale/shift + activation (final layer only).
# ---------------------------------------------------------------------------
def _scale_shift_act_kernel(y_ref, sc_ref, sh_ref, o_ref, *, act):
    z = y_ref[...].astype(jnp.float32) * sc_ref[...] + sh_ref[...]
    if act == 'relu':
        z = jnp.maximum(z, 0.0)
    else:   # numerically stable sigmoid on the EUP tanh path
        z = 0.5 * (jnp.tanh(0.5 * z) + 1.0)
    o_ref[...] = z


def scale_shift_act(y2d, sc_row, sh_row, act):
    rows, wc = y2d.shape
    tr = _row_tile(rows)
    return pl.pallas_call(
        functools.partial(_scale_shift_act_kernel, act=act),
        out_shape=jax.ShapeDtypeStruct((rows, wc), jnp.float32),
        grid_spec=pltpu.PrefetchScalarGridSpec(
            num_scalar_prefetch=0,
            grid=(rows // tr,),
            in_specs=[
                pl.BlockSpec((tr, wc), lambda r: (r, 0)),
                pl.BlockSpec((1, wc), lambda r: (0, 0)),                 # resident
                pl.BlockSpec((1, wc), lambda r: (0, 0)),                 # resident
            ],
            out_specs=pl.BlockSpec((tr, wc), lambda r: (r, 0)),
        ),
        compiler_params=pltpu.CompilerParams(
            dimension_semantics=("parallel",),
            vmem_limit_bytes=_VMEM_LIMIT),
    )(y2d, sc_row, sh_row)


# ---------------------------------------------------------------------------
# BatchNorm finalize (tiny per-channel math, plain XLA).
# ---------------------------------------------------------------------------
def _bn_scale_shift(stats, gamma, beta, *, count, width):
    cout = gamma.shape[0]
    s1 = stats[:, 0, :].reshape(-1, width, cout).sum(axis=(0, 1))
    s2 = stats[:, 1, :].reshape(-1, width, cout).sum(axis=(0, 1))
    mean = s1 / count
    var = jnp.maximum(s2 / count - mean * mean, 0.0)   # clamp E[x^2]-E[x]^2 cancellation
    scale = gamma * jax.lax.rsqrt(var + 1e-5)
    shift = beta - mean * scale
    sc_row = jnp.tile(scale, width).reshape(1, width * cout)   # lane order is (w, c)
    sh_row = jnp.tile(shift, width).reshape(1, width * cout)
    return sc_row, sh_row


# ---------------------------------------------------------------------------
# Parameter init (deterministic, synthetic) + full decoder block forward.
# ---------------------------------------------------------------------------
def init_decoder_params(key, in_channels, out_channels, num_conv_layers, spatial_w):
    """Synthetic params, pre-folded into the kernels' width-folded layout (spatial_w is
    the pre-upsample width the folded weights are specialized to).
    Porting note: real PyTorch Conv2d weights are (Cout, Cin, 3, 3) -> transpose(2,3,1,0)
    to HWIO before _fold_conv3x3_weight; ConvTranspose2d weights are already (Cin,Cout,2,2)."""
    mid = in_channels // 2
    W = spatial_w
    W2 = 2 * W
    n_keys = 2 + 4 * num_conv_layers
    keys = jax.random.split(key, n_keys)
    ki = iter(range(n_keys))

    # ConvTranspose2d(in, in, kernel=2, stride=2)
    w_t = 0.1 * jax.random.normal(keys[next(ki)], (in_channels, in_channels, 2, 2), jnp.float32)
    b_t = 0.05 * jax.random.normal(keys[next(ki)], (in_channels,), jnp.float32)
    deconv_w = _fold_deconv_weight(w_t, W)                          # (2, W*Cin, W*2*Cin) bf16
    deconv_b = jnp.tile(b_t, 2 * W).reshape(1, W * 2 * in_channels)

    conv_dims = ([(in_channels, mid)] + [(mid, mid)] * (num_conv_layers - 2)
                 + [(mid, out_channels)])
    convs = []
    for cin, cout in conv_dims:
        w = 0.1 * jax.random.normal(keys[next(ki)], (3, 3, cin, cout), jnp.float32)   # HWIO
        b = 0.05 * jax.random.normal(keys[next(ki)], (cout,), jnp.float32)
        gamma = 1.0 + 0.1 * jax.random.normal(keys[next(ki)], (cout,), jnp.float32)
        beta = 0.05 * jax.random.normal(keys[next(ki)], (cout,), jnp.float32)
        convs.append(dict(
            w=_fold_conv3x3_weight(w, W2),                           # (3, W2*cin, W2*cout) bf16
            b=jnp.tile(b, W2).reshape(1, W2 * cout),
            gamma=gamma,
            beta=beta,
        ))
    return dict(deconv_w=deconv_w, deconv_b=deconv_b, convs=convs)


def decoder_block_forward(x_nchw, params, *, out_activation='relu'):
    # NCHW (PyTorch) -> NHWC -> lane-dense (rows, W*C)
    N, Cin, H, W = x_nchw.shape
    x = jnp.transpose(x_nchw, (0, 2, 3, 1)).astype(jnp.float32)
    x2d = x.reshape(N * H, W * Cin)

    cur = deconv2x2(x2d, params['deconv_w'], params['deconv_b'], N=N, H=H, W=W, Cout=Cin)
    H2, W2 = 2 * H, 2 * W                     # every 3x3 conv runs post-upsample

    # identity input transform for the first conv (deconv output has no BN / activation)
    in_sc = jnp.ones((1, W2 * Cin), jnp.float32)
    in_sh = jnp.zeros((1, W2 * Cin), jnp.float32)
    in_relu = False
    for layer in params['convs']:
        cur, stats = conv3x3_bn_stats(cur, in_sc, in_sh, layer['w'], layer['b'],
                                      in_relu=in_relu)
        # This layer's BN (training-mode batch stats) is applied to the NEXT conv's input,
        # or to the final activation pass for the last layer.
        # TODO(synk): eval-mode BatchNorm (running statistics) is not implemented.
        in_sc, in_sh = _bn_scale_shift(stats, layer['gamma'], layer['beta'],
                                       count=N * H2 * W2, width=W2)
        in_relu = True

    cout = params['convs'][-1]['gamma'].shape[0]
    out2d = scale_shift_act(cur.reshape(N * H2, W2 * cout), in_sc, in_sh, out_activation)
    out = out2d.reshape(N, H2, W2, cout)
    return jnp.transpose(out, (0, 3, 1, 2))   # back to NCHW


if __name__ == "__main__":
    # decoder block: in_channels=8, out_channels=4, num_conv_layers=3, ReLU output
    in_channels, out_channels, num_conv_layers = 8, 4, 3
    N, H, W = 2, 16, 16

    key = jax.random.PRNGKey(0)
    k_x, k_p = jax.random.split(key)
    x = jax.random.normal(k_x, (N, in_channels, H, W), jnp.float32)   # NCHW like PyTorch
    params = init_decoder_params(k_p, in_channels, out_channels, num_conv_layers,
                                 spatial_w=W)

    fwd = jax.jit(decoder_block_forward, static_argnames=('out_activation',))
    out = fwd(x, params, out_activation='relu')
    out = jax.block_until_ready(out)

    expected_shape = (N, out_channels, 2 * H, 2 * W)
    assert out.shape == expected_shape, (out.shape, expected_shape)
    assert bool(jnp.all(jnp.isfinite(out)))
    print("KERNEL_OK")
</pallas_src>

<mosaic_0001>
module attributes {stable_mosaic.version = 11 : i64} {
  func.func @_deconv2x2_kernel(%arg0: i32, %arg1: memref<32x128xf32, #tpu.memory_space<vmem>>, %arg2: memref<2x128x256xbf16, #tpu.memory_space<vmem>>, %arg3: memref<1x256xf32, #tpu.memory_space<vmem>>, %arg4: memref<32x2x256xbf16, #tpu.memory_space<vmem>>) attributes {dimension_semantics = [#tpu.dimension_semantics<parallel>], iteration_bounds = array<i64: 1>, scalar_prefetch = 0 : i64, scratch_operands = 0 : i64, tpu.core_type = #tpu.core_type<tc>, window_params = [{transform_indices = @transform_0, window_bounds = array<i64: 32, 128>}, {pipeline_mode = #tpu.pipeline_mode<synchronous>, transform_indices = @transform_1, window_bounds = array<i64: 2, 128, 256>}, {pipeline_mode = #tpu.pipeline_mode<synchronous>, transform_indices = @transform_2, window_bounds = array<i64: 1, 256>}, {transform_indices = @transform_3, window_bounds = array<i64: 32, 2, 256>}]} {
    %c0 = arith.constant 0 : index
    %c0_0 = arith.constant 0 : index
    %0 = vector.load %arg1[%c0, %c0_0] : memref<32x128xf32, #tpu.memory_space<vmem>>, vector<32x128xf32>
    %1 = arith.truncf %0 : vector<32x128xf32> to vector<32x128xbf16>
    %c0_1 = arith.constant 0 : index
    %c0_2 = arith.constant 0 : index
    %2 = vector.load %arg3[%c0_1, %c0_2] : memref<1x256xf32, #tpu.memory_space<vmem>>, vector<1x256xf32>
    %c0_3 = arith.constant 0 : index
    %c0_4 = arith.constant 0 : index
    %c0_5 = arith.constant 0 : index
    %3 = vector.load %arg2[%c0_3, %c0_4, %c0_5] : memref<2x128x256xbf16, #tpu.memory_space<vmem>>, vector<1x128x256xbf16>
    %4 = vector.shape_cast %3 : vector<1x128x256xbf16> to vector<128x256xbf16>
    %cst = arith.constant dense<0.000000e+00> : vector<32x256xf32>
    %5 = tpu.matmul %1, %4, %cst {dimension_numbers = #tpu.dot_dimension_numbers<[1], [0], [0], [1], [0, 0, 1, 1], [], []>} : vector<32x128xbf16>, vector<128x256xbf16>, vector<32x256xf32> -> vector<32x256xf32>
    %6 = vector.broadcast %2 : vector<1x256xf32> to vector<32x256xf32>
    %7 = arith.addf %5, %6 : vector<32x256xf32>
    %8 = arith.truncf %7 : vector<32x256xf32> to vector<32x256xbf16>
    %c0_6 = arith.constant 0 : index
    %c0_7 = arith.constant 0 : index
    %c0_8 = arith.constant 0 : index
    %9 = vector.load %arg4[%c0_6, %c0_7, %c0_8] : memref<32x2x256xbf16, #tpu.memory_space<vmem>>, vector<32x1x256xbf16>
    %10 = vector.shape_cast %9 : vector<32x1x256xbf16> to vector<32x256xbf16>
    %11 = vector.shape_cast %8 : vector<32x256xbf16> to vector<32x1x256xbf16>
    tpu.vector_store %arg4[%c0_6, %c0_7, %c0_8], %11 {strides = array<i32>} : memref<32x2x256xbf16, #tpu.memory_space<vmem>>, vector<32x1x256xbf16>,
    %c1 = arith.constant 1 : index
    %c0_9 = arith.constant 0 : index
    %c0_10 = arith.constant 0 : index
    %12 = vector.load %arg2[%c1, %c0_9, %c0_10] : memref<2x128x256xbf16, #tpu.memory_space<vmem>>, vector<1x128x256xbf16>
    %13 = vector.shape_cast %12 : vector<1x128x256xbf16> to vector<128x256xbf16>
    %cst_11 = arith.constant dense<0.000000e+00> : vector<32x256xf32>
    %14 = tpu.matmul %1, %13, %cst_11 {dimension_numbers = #tpu.dot_dimension_numbers<[1], [0], [0], [1], [0, 0, 1, 1], [], []>} : vector<32x128xbf16>, vector<128x256xbf16>, vector<32x256xf32> -> vector<32x256xf32>
    %15 = vector.broadcast %2 : vector<1x256xf32> to vector<32x256xf32>
    %16 = arith.addf %14, %15 : vector<32x256xf32>
    %17 = arith.truncf %16 : vector<32x256xf32> to vector<32x256xbf16>
    %c0_12 = arith.constant 0 : index
    %c1_13 = arith.constant 1 : index
    %c0_14 = arith.constant 0 : index
    %18 = vector.load %arg4[%c0_12, %c1_13, %c0_14] : memref<32x2x256xbf16, #tpu.memory_space<vmem>>, vector<32x1x256xbf16>
    %19 = vector.shape_cast %18 : vector<32x1x256xbf16> to vector<32x256xbf16>
    %20 = vector.shape_cast %17 : vector<32x256xbf16> to vector<32x1x256xbf16>
    tpu.vector_store %arg4[%c0_12, %c1_13, %c0_14], %20 {strides = array<i32>} : memref<32x2x256xbf16, #tpu.memory_space<vmem>>, vector<32x1x256xbf16>,
    return
  }
  func.func @transform_0(%arg0: i32) -> (i32, i32) {
    %c0_i32 = arith.constant 0 : i32
    %c0_i32_0 = arith.constant 0 : i32
    return %arg0, %c0_i32 : i32, i32
  }
  func.func @transform_1(%arg0: i32) -> (i32, i32, i32) {
    %c0_i32 = arith.constant 0 : i32
    %c0_i32_0 = arith.constant 0 : i32
    %c0_i32_1 = arith.constant 0 : i32
    %c0_i32_2 = arith.constant 0 : i32
    return %c0_i32, %c0_i32_0, %c0_i32_1 : i32, i32, i32
  }
  func.func @transform_2(%arg0: i32) -> (i32, i32) {
    %c0_i32 = arith.constant 0 : i32
    %c0_i32_0 = arith.constant 0 : i32
    %c0_i32_1 = arith.constant 0 : i32
    return %c0_i32, %c0_i32_0 : i32, i32
  }
  func.func @transform_3(%arg0: i32) -> (i32, i32, i32) {
    %c0_i32 = arith.constant 0 : i32
    %c0_i32_0 = arith.constant 0 : i32
    %c0_i32_1 = arith.constant 0 : i32
    return %arg0, %c0_i32, %c0_i32_0 : i32, i32, i32
  }
}

module attributes {stable_mosaic.version = 11 : i64} {
  func.func @_conv3x3_bn_stats_kernel(%arg0: i32, %arg1: memref<1x32x128xbf16, #tpu.memory_space<vmem>>, %arg2: memref<1x128xf32, #tpu.memory_space<vmem>>, %arg3: memref<1x128xf32, #tpu.memory_space<vmem>>, %arg4: memref<3x128x128xbf16, #tpu.memory_space<vmem>>, %arg5: memref<1x128xf32, #tpu.memory_space<vmem>>, %arg6: memref<1x32x128xbf16, #tpu.memory_space<vmem>>, %arg7: memref<1x2x128xf32, #tpu.memory_space<vmem>>) attributes {dimension_semantics = [#tpu.dimension_semantics<parallel>], iteration_bounds = array<i64: 2>, scalar_prefetch = 0 : i64, scratch_operands = 0 : i64, tpu.core_type = #tpu.core_type<tc>, window_params = [{transform_indices = @transform_0, window_bounds = array<i64: 1, 32, 128>}, {pipeline_mode = #tpu.pipeline_mode<synchronous>, transform_indices = @transform_1, window_bounds = array<i64: 1, 128>}, {pipeline_mode = #tpu.pipeline_mode<synchronous>, transform_indices = @transform_2, window_bounds = array<i64: 1, 128>}, {pipeline_mode = #tpu.pipeline_mode<synchronous>, transform_indices = @transform_3, window_bounds = array<i64: 3, 128, 128>}, {pipeline_mode = #tpu.pipeline_mode<synchronous>, transform_indices = @transform_4, window_bounds = array<i64: 1, 128>}, {transform_indices = @transform_5, window_bounds = array<i64: 1, 32, 128>}, {transform_indices = @transform_6, window_bounds = array<i64: 1, 2, 128>}]} {
    %c0 = arith.constant 0 : index
    %c0_0 = arith.constant 0 : index
    %c0_1 = arith.constant 0 : index
    %0 = vector.load %arg1[%c0, %c0_0, %c0_1] : memref<1x32x128xbf16, #tpu.memory_space<vmem>>, vector<1x32x128xbf16>
    %1 = vector.shape_cast %0 : vector<1x32x128xbf16> to vector<32x128xbf16>
    %2 = arith.extf %1 : vector<32x128xbf16> to vector<32x128xf32>
    %c0_2 = arith.constant 0 : index
    %c0_3 = arith.constant 0 : index
    %3 = vector.load %arg2[%c0_2, %c0_3] : memref<1x128xf32, #tpu.memory_space<vmem>>, vector<1x128xf32>
    %4 = vector.broadcast %3 : vector<1x128xf32> to vector<32x128xf32>
    %5 = arith.mulf %2, %4 : vector<32x128xf32>
    %c0_4 = arith.constant 0 : index
    %c0_5 = arith.constant 0 : index
    %6 = vector.load %arg3[%c0_4, %c0_5] : memref<1x128xf32, #tpu.memory_space<vmem>>, vector<1x128xf32>
    %7 = vector.broadcast %6 : vector<1x128xf32> to vector<32x128xf32>
    %8 = arith.addf %5, %7 : vector<32x128xf32>
    %cst = arith.constant 0.000000e+00 : f32
    %9 = vector.broadcast %cst : f32 to vector<32x128xf32>
    %10 = arith.maximumf %8, %9 : vector<32x128xf32>
    %11 = arith.truncf %10 : vector<32x128xf32> to vector<32x128xbf16>
    %cst_6 = arith.constant 0.000000e+00 : bf16
    %12 = vector.broadcast %cst_6 : bf16 to vector<1x128xbf16>
    %13 = vector.extract_strided_slice %11 {offsets = [0, 0], sizes = [31, 128], strides = [1, 1]} : vector<32x128xbf16> to vector<31x128xbf16>
    %14 = tpu.concatenate %12, %13 in 0 : vector<1x128xbf16>, vector<31x128xbf16> -> vector<32x128xbf16>
    %15 = vector.extract_strided_slice %11 {offsets = [1, 0], sizes = [31, 128], strides = [1, 1]} : vector<32x128xbf16> to vector<31x128xbf16>
    %16 = tpu.concatenate %15, %12 in 0 : vector<31x128xbf16>, vector<1x128xbf16> -> vector<32x128xbf16>
    %c0_7 = arith.constant 0 : index
    %c0_8 = arith.constant 0 : index
    %c0_9 = arith.constant 0 : index
    %17 = vector.load %arg4[%c0_7, %c0_8, %c0_9] : memref<3x128x128xbf16, #tpu.memory_space<vmem>>, vector<1x128x128xbf16>
    %18 = vector.shape_cast %17 : vector<1x128x128xbf16> to vector<128x128xbf16>
    %cst_10 = arith.constant dense<0.000000e+00> : vector<32x128xf32>
    %19 = tpu.matmul %14, %18, %cst_10 {dimension_numbers = #tpu.dot_dimension_numbers<[1], [0], [0], [1], [0, 0, 1, 1], [], []>} : vector<32x128xbf16>, vector<128x128xbf16>, vector<32x128xf32> -> vector<32x128xf32>
    %c1 = arith.constant 1 : index
    %c0_11 = arith.constant 0 : index
    %c0_12 = arith.constant 0 : index
    %20 = vector.load %arg4[%c1, %c0_11, %c0_12] : memref<3x128x128xbf16, #tpu.memory_space<vmem>>, vector<1x128x128xbf16>
    %21 = vector.shape_cast %20 : vector<1x128x128xbf16> to vector<128x128xbf16>
    %cst_13 = arith.constant dense<0.000000e+00> : vector<32x128xf32>
    %22 = tpu.matmul %11, %21, %cst_13 {dimension_numbers = #tpu.dot_dimension_numbers<[1], [0], [0], [1], [0, 0, 1, 1], [], []>} : vector<32x128xbf16>, vector<128x128xbf16>, vector<32x128xf32> -> vector<32x128xf32>
    %23 = arith.addf %19, %22 : vector<32x128xf32>
    %c2 = arith.constant 2 : index
    %c0_14 = arith.constant 0 : index
    %c0_15 = arith.constant 0 : index
    %24 = vector.load %arg4[%c2, %c0_14, %c0_15] : memref<3x128x128xbf16, #tpu.memory_space<vmem>>, vector<1x128x128xbf16>
    %25 = vector.shape_cast %24 : vector<1x128x128xbf16> to vector<128x128xbf16>
    %cst_16 = arith.constant dense<0.000000e+00> : vector<32x128xf32>
    %26 = tpu.matmul %16, %25, %cst_16 {dimension_numbers = #tpu.dot_dimension_numbers<[1], [0], [0], [1], [0, 0, 1, 1], [], []>} : vector<32x128xbf16>, vector<128x128xbf16>, vector<32x128xf32> -> vector<32x128xf32>
    %27 = arith.addf %23, %26 : vector<32x128xf32>
    %c0_17 = arith.constant 0 : index
    %c0_18 = arith.constant 0 : index
    %28 = vector.load %arg5[%c0_17, %c0_18] : memref<1x128xf32, #tpu.memory_space<vmem>>, vector<1x128xf32>
    %29 = vector.broadcast %28 : vector<1x128xf32> to vector<32x128xf32>
    %30 = arith.addf %27, %29 : vector<32x128xf32>
    %31 = arith.truncf %30 : vector<32x128xf32> to vector<32x128xbf16>
    %c0_19 = arith.constant 0 : index
    %c0_20 = arith.constant 0 : index
    %c0_21 = arith.constant 0 : index
    %32 = vector.load %arg6[%c0_19, %c0_20, %c0_21] : memref<1x32x128xbf16, #tpu.memory_space<vmem>>, vector<1x32x128xbf16>
    %33 = vector.shape_cast %32 : vector<1x32x128xbf16> to vector<32x128xbf16>
    %34 = vector.shape_cast %31 : vector<32x128xbf16> to vector<1x32x128xbf16>
    tpu.vector_store %arg6[%c0_19, %c0_20, %c0_21], %34 {strides = array<i32>} : memref<1x32x128xbf16, #tpu.memory_space<vmem>>, vector<1x32x128xbf16>,
    %cst_22 = arith.constant dense<0.000000e+00> : vector<128xf32>
    %35 = vector.multi_reduction <add>, %30, %cst_22 [0] : vector<32x128xf32> to vector<128xf32>
    %36 = vector.shape_cast %35 : vector<128xf32> to vector<1x128xf32>
    %37 = arith.mulf %30, %30 : vector<32x128xf32>
    %cst_23 = arith.constant dense<0.000000e+00> : vector<128xf32>
    %38 = vector.multi_reduction <add>, %37, %cst_23 [0] : vector<32x128xf32> to vector<128xf32>
    %39 = vector.shape_cast %38 : vector<128xf32> to vector<1x128xf32>
    %40 = tpu.concatenate %36, %39 in 0 : vector<1x128xf32>, vector<1x128xf32> -> vector<2x128xf32>
    %c0_24 = arith.constant 0 : index
    %c0_25 = arith.constant 0 : index
    %c0_26 = arith.constant 0 : index
    %41 = vector.load %arg7[%c0_24, %c0_25, %c0_26] : memref<1x2x128xf32, #tpu.memory_space<vmem>>, vector<1x2x128xf32>
    %42 = vector.shape_cast %41 : vector<1x2x128xf32> to vector<2x128xf32>
    %43 = vector.shape_cast %40 : vector<2x128xf32> to vector<1x2x128xf32>
    tpu.vector_store %arg7[%c0_24, %c0_25, %c0_26], %43 {strides = array<i32>} : memref<1x2x128xf32, #tpu.memory_space<vmem>>, vector<1x2x128xf32>,
    return
  }
  func.func @transform_0(%arg0: i32) -> (i32, i32, i32) {
    %c0_i32 = arith.constant 0 : i32
    %c0_i32_0 = arith.constant 0 : i32
    %c0_i32_1 = arith.constant 0 : i32
    return %arg0, %c0_i32, %c0_i32_0 : i32, i32, i32
  }
  func.func @transform_1(%arg0: i32) -> (i32, i32) {
    %c0_i32 = arith.constant 0 : i32
    %c0_i32_0 = arith.constant 0 : i32
    %c0_i32_1 = arith.constant 0 : i32
    return %c0_i32, %c0_i32_0 : i32, i32
  }
  func.func @transform_2(%arg0: i32) -> (i32, i32) {
    %c0_i32 = arith.constant 0 : i32
    %c0_i32_0 = arith.constant 0 : i32
    %c0_i32_1 = arith.constant 0 : i32
    return %c0_i32, %c0_i32_0 : i32, i32
  }
  func.func @transform_3(%arg0: i32) -> (i32, i32, i32) {
    %c0_i32 = arith.constant 0 : i32
    %c0_i32_0 = arith.constant 0 : i32
    %c0_i32_1 = arith.constant 0 : i32
    %c0_i32_2 = arith.constant 0 : i32
    return %c0_i32, %c0_i32_0, %c0_i32_1 : i32, i32, i32
  }
  func.func @transform_4(%arg0: i32) -> (i32, i32) {
    %c0_i32 = arith.constant 0 : i32
    %c0_i32_0 = arith.constant 0 : i32
    %c0_i32_1 = arith.constant 0 : i32
    return %c0_i32, %c0_i32_0 : i32, i32
  }
  func.func @transform_5(%arg0: i32) -> (i32, i32, i32) {
    %c0_i32 = arith.constant 0 : i32
    %c0_i32_0 = arith.constant 0 : i32
    %c0_i32_1 = arith.constant 0 : i32
    return %arg0, %c0_i32, %c0_i32_0 : i32, i32, i32
  }
  func.func @transform_6(%arg0: i32) -> (i32, i32, i32) {
    %c0_i32 = arith.constant 0 : i32
    %c0_i32_0 = arith.constant 0 : i32
    %c0_i32_1 = arith.constant 0 : i32
    return %arg0, %c0_i32, %c0_i32_0 : i32, i32, i32
  }
}

module attributes {stable_mosaic.version = 11 : i64} {
  func.func @_conv3x3_bn_stats_kernel(%arg0: i32, %arg1: memref<1x32x256xbf16, #tpu.memory_space<vmem>>, %arg2: memref<1x256xf32, #tpu.memory_space<vmem>>, %arg3: memref<1x256xf32, #tpu.memory_space<vmem>>, %arg4: memref<3x256x128xbf16, #tpu.memory_space<vmem>>, %arg5: memref<1x128xf32, #tpu.memory_space<vmem>>, %arg6: memref<1x32x128xbf16, #tpu.memory_space<vmem>>, %arg7: memref<1x2x128xf32, #tpu.memory_space<vmem>>) attributes {dimension_semantics = [#tpu.dimension_semantics<parallel>], iteration_bounds = array<i64: 2>, scalar_prefetch = 0 : i64, scratch_operands = 0 : i64, tpu.core_type = #tpu.core_type<tc>, window_params = [{transform_indices = @transform_0, window_bounds = array<i64: 1, 32, 256>}, {pipeline_mode = #tpu.pipeline_mode<synchronous>, transform_indices = @transform_1, window_bounds = array<i64: 1, 256>}, {pipeline_mode = #tpu.pipeline_mode<synchronous>, transform_indices = @transform_2, window_bounds = array<i64: 1, 256>}, {pipeline_mode = #tpu.pipeline_mode<synchronous>, transform_indices = @transform_3, window_bounds = array<i64: 3, 256, 128>}, {pipeline_mode = #tpu.pipeline_mode<synchronous>, transform_indices = @transform_4, window_bounds = array<i64: 1, 128>}, {transform_indices = @transform_5, window_bounds = array<i64: 1, 32, 128>}, {transform_indices = @transform_6, window_bounds = array<i64: 1, 2, 128>}]} {
    %c0 = arith.constant 0 : index
    %c0_0 = arith.constant 0 : index
    %c0_1 = arith.constant 0 : index
    %0 = vector.load %arg1[%c0, %c0_0, %c0_1] : memref<1x32x256xbf16, #tpu.memory_space<vmem>>, vector<1x32x256xbf16>
    %1 = vector.shape_cast %0 : vector<1x32x256xbf16> to vector<32x256xbf16>
    %2 = arith.extf %1 : vector<32x256xbf16> to vector<32x256xf32>
    %c0_2 = arith.constant 0 : index
    %c0_3 = arith.constant 0 : index
    %3 = vector.load %arg2[%c0_2, %c0_3] : memref<1x256xf32, #tpu.memory_space<vmem>>, vector<1x256xf32>
    %4 = vector.broadcast %3 : vector<1x256xf32> to vector<32x256xf32>
    %5 = arith.mulf %2, %4 : vector<32x256xf32>
    %c0_4 = arith.constant 0 : index
    %c0_5 = arith.constant 0 : index
    %6 = vector.load %arg3[%c0_4, %c0_5] : memref<1x256xf32, #tpu.memory_space<vmem>>, vector<1x256xf32>
    %7 = vector.broadcast %6 : vector<1x256xf32> to vector<32x256xf32>
    %8 = arith.addf %5, %7 : vector<32x256xf32>
    %9 = arith.truncf %8 : vector<32x256xf32> to vector<32x256xbf16>
    %cst = arith.constant 0.000000e+00 : bf16
    %10 = vector.broadcast %cst : bf16 to vector<1x256xbf16>
    %11 = vector.extract_strided_slice %9 {offsets = [0, 0], sizes = [31, 256], strides = [1, 1]} : vector<32x256xbf16> to vector<31x256xbf16>
    %12 = tpu.concatenate %10, %11 in 0 : vector<1x256xbf16>, vector<31x256xbf16> -> vector<32x256xbf16>
    %13 = vector.extract_strided_slice %9 {offsets = [1, 0], sizes = [31, 256], strides = [1, 1]} : vector<32x256xbf16> to vector<31x256xbf16>
    %14 = tpu.concatenate %13, %10 in 0 : vector<31x256xbf16>, vector<1x256xbf16> -> vector<32x256xbf16>
    %c0_6 = arith.constant 0 : index
    %c0_7 = arith.constant 0 : index
    %c0_8 = arith.constant 0 : index
    %15 = vector.load %arg4[%c0_6, %c0_7, %c0_8] : memref<3x256x128xbf16, #tpu.memory_space<vmem>>, vector<1x256x128xbf16>
    %16 = vector.shape_cast %15 : vector<1x256x128xbf16> to vector<256x128xbf16>
    %cst_9 = arith.constant dense<0.000000e+00> : vector<32x128xf32>
    %17 = tpu.matmul %12, %16, %cst_9 {dimension_numbers = #tpu.dot_dimension_numbers<[1], [0], [0], [1], [0, 0, 1, 1], [], []>} : vector<32x256xbf16>, vector<256x128xbf16>, vector<32x128xf32> -> vector<32x128xf32>
    %c1 = arith.constant 1 : index
    %c0_10 = arith.constant 0 : index
    %c0_11 = arith.constant 0 : index
    %18 = vector.load %arg4[%c1, %c0_10, %c0_11] : memref<3x256x128xbf16, #tpu.memory_space<vmem>>, vector<1x256x128xbf16>
    %19 = vector.shape_cast %18 : vector<1x256x128xbf16> to vector<256x128xbf16>
    %cst_12 = arith.constant dense<0.000000e+00> : vector<32x128xf32>
    %20 = tpu.matmul %9, %19, %cst_12 {dimension_numbers = #tpu.dot_dimension_numbers<[1], [0], [0], [1], [0, 0, 1, 1], [], []>} : vector<32x256xbf16>, vector<256x128xbf16>, vector<32x128xf32> -> vector<32x128xf32>
    %21 = arith.addf %17, %20 : vector<32x128xf32>
    %c2 = arith.constant 2 : index
    %c0_13 = arith.constant 0 : index
    %c0_14 = arith.constant 0 : index
    %22 = vector.load %arg4[%c2, %c0_13, %c0_14] : memref<3x256x128xbf16, #tpu.memory_space<vmem>>, vector<1x256x128xbf16>
    %23 = vector.shape_cast %22 : vector<1x256x128xbf16> to vector<256x128xbf16>
    %cst_15 = arith.constant dense<0.000000e+00> : vector<32x128xf32>
    %24 = tpu.matmul %14, %23, %cst_15 {dimension_numbers = #tpu.dot_dimension_numbers<[1], [0], [0], [1], [0, 0, 1, 1], [], []>} : vector<32x256xbf16>, vector<256x128xbf16>, vector<32x128xf32> -> vector<32x128xf32>
    %25 = arith.addf %21, %24 : vector<32x128xf32>
    %c0_16 = arith.constant 0 : index
    %c0_17 = arith.constant 0 : index
    %26 = vector.load %arg5[%c0_16, %c0_17] : memref<1x128xf32, #tpu.memory_space<vmem>>, vector<1x128xf32>
    %27 = vector.broadcast %26 : vector<1x128xf32> to vector<32x128xf32>
    %28 = arith.addf %25, %27 : vector<32x128xf32>
    %29 = arith.truncf %28 : vector<32x128xf32> to vector<32x128xbf16>
    %c0_18 = arith.constant 0 : index
    %c0_19 = arith.constant 0 : index
    %c0_20 = arith.constant 0 : index
    %30 = vector.load %arg6[%c0_18, %c0_19, %c0_20] : memref<1x32x128xbf16, #tpu.memory_space<vmem>>, vector<1x32x128xbf16>
    %31 = vector.shape_cast %30 : vector<1x32x128xbf16> to vector<32x128xbf16>
    %32 = vector.shape_cast %29 : vector<32x128xbf16> to vector<1x32x128xbf16>
    tpu.vector_store %arg6[%c0_18, %c0_19, %c0_20], %32 {strides = array<i32>} : memref<1x32x128xbf16, #tpu.memory_space<vmem>>, vector<1x32x128xbf16>,
    %cst_21 = arith.constant dense<0.000000e+00> : vector<128xf32>
    %33 = vector.multi_reduction <add>, %28, %cst_21 [0] : vector<32x128xf32> to vector<128xf32>
    %34 = vector.shape_cast %33 : vector<128xf32> to vector<1x128xf32>
    %35 = arith.mulf %28, %28 : vector<32x128xf32>
    %cst_22 = arith.constant dense<0.000000e+00> : vector<128xf32>
    %36 = vector.multi_reduction <add>, %35, %cst_22 [0] : vector<32x128xf32> to vector<128xf32>
    %37 = vector.shape_cast %36 : vector<128xf32> to vector<1x128xf32>
    %38 = tpu.concatenate %34, %37 in 0 : vector<1x128xf32>, vector<1x128xf32> -> vector<2x128xf32>
    %c0_23 = arith.constant 0 : index
    %c0_24 = arith.constant 0 : index
    %c0_25 = arith.constant 0 : index
    %39 = vector.load %arg7[%c0_23, %c0_24, %c0_25] : memref<1x2x128xf32, #tpu.memory_space<vmem>>, vector<1x2x128xf32>
    %40 = vector.shape_cast %39 : vector<1x2x128xf32> to vector<2x128xf32>
    %41 = vector.shape_cast %38 : vector<2x128xf32> to vector<1x2x128xf32>
    tpu.vector_store %arg7[%c0_23, %c0_24, %c0_25], %41 {strides = array<i32>} : memref<1x2x128xf32, #tpu.memory_space<vmem>>, vector<1x2x128xf32>,
    return
  }
  func.func @transform_0(%arg0: i32) -> (i32, i32, i32) {
    %c0_i32 = arith.constant 0 : i32
    %c0_i32_0 = arith.constant 0 : i32
    %c0_i32_1 = arith.constant 0 : i32
    return %arg0, %c0_i32, %c0_i32_0 : i32, i32, i32
  }
  func.func @transform_1(%arg0: i32) -> (i32, i32) {
    %c0_i32 = arith.constant 0 : i32
    %c0_i32_0 = arith.constant 0 : i32
    %c0_i32_1 = arith.constant 0 : i32
    return %c0_i32, %c0_i32_0 : i32, i32
  }
  func.func @transform_2(%arg0: i32) -> (i32, i32) {
    %c0_i32 = arith.constant 0 : i32
    %c0_i32_0 = arith.constant 0 : i32
    %c0_i32_1 = arith.constant 0 : i32
    return %c0_i32, %c0_i32_0 : i32, i32
  }
  func.func @transform_3(%arg0: i32) -> (i32, i32, i32) {
    %c0_i32 = arith.constant 0 : i32
    %c0_i32_0 = arith.constant 0 : i32
    %c0_i32_1 = arith.constant 0 : i32
    %c0_i32_2 = arith.constant 0 : i32
    return %c0_i32, %c0_i32_0, %c0_i32_1 : i32, i32, i32
  }
  func.func @transform_4(%arg0: i32) -> (i32, i32) {
    %c0_i32 = arith.constant 0 : i32
    %c0_i32_0 = arith.constant 0 : i32
    %c0_i32_1 = arith.constant 0 : i32
    return %c0_i32, %c0_i32_0 : i32, i32
  }
  func.func @transform_5(%arg0: i32) -> (i32, i32, i32) {
    %c0_i32 = arith.constant 0 : i32
    %c0_i32_0 = arith.constant 0 : i32
    %c0_i32_1 = arith.constant 0 : i32
    return %arg0, %c0_i32, %c0_i32_0 : i32, i32, i32
  }
  func.func @transform_6(%arg0: i32) -> (i32, i32, i32) {
    %c0_i32 = arith.constant 0 : i32
    %c0_i32_0 = arith.constant 0 : i32
    %c0_i32_1 = arith.constant 0 : i32
    return %arg0, %c0_i32, %c0_i32_0 : i32, i32, i32
  }
}

module attributes {stable_mosaic.version = 11 : i64} {
  func.func @_scale_shift_act_kernel(%arg0: i32, %arg1: memref<64x128xbf16, #tpu.memory_space<vmem>>, %arg2: memref<1x128xf32, #tpu.memory_space<vmem>>, %arg3: memref<1x128xf32, #tpu.memory_space<vmem>>, %arg4: memref<64x128xf32, #tpu.memory_space<vmem>>) attributes {dimension_semantics = [#tpu.dimension_semantics<parallel>], iteration_bounds = array<i64: 1>, scalar_prefetch = 0 : i64, scratch_operands = 0 : i64, tpu.core_type = #tpu.core_type<tc>, window_params = [{transform_indices = @transform_0, window_bounds = array<i64: 64, 128>}, {pipeline_mode = #tpu.pipeline_mode<synchronous>, transform_indices = @transform_1, window_bounds = array<i64: 1, 128>}, {pipeline_mode = #tpu.pipeline_mode<synchronous>, transform_indices = @transform_2, window_bounds = array<i64: 1, 128>}, {transform_indices = @transform_3, window_bounds = array<i64: 64, 128>}]} {
    %c0 = arith.constant 0 : index
    %c0_0 = arith.constant 0 : index
    %0 = vector.load %arg1[%c0, %c0_0] : memref<64x128xbf16, #tpu.memory_space<vmem>>, vector<64x128xbf16>
    %1 = arith.extf %0 : vector<64x128xbf16> to vector<64x128xf32>
    %c0_1 = arith.constant 0 : index
    %c0_2 = arith.constant 0 : index
    %2 = vector.load %arg2[%c0_1, %c0_2] : memref<1x128xf32, #tpu.memory_space<vmem>>, vector<1x128xf32>
    %3 = vector.broadcast %2 : vector<1x128xf32> to vector<64x128xf32>
    %4 = arith.mulf %1, %3 : vector<64x128xf32>
    %c0_3 = arith.constant 0 : index
    %c0_4 = arith.constant 0 : index
    %5 = vector.load %arg3[%c0_3, %c0_4] : memref<1x128xf32, #tpu.memory_space<vmem>>, vector<1x128xf32>
    %6 = vector.broadcast %5 : vector<1x128xf32> to vector<64x128xf32>
    %7 = arith.addf %4, %6 : vector<64x128xf32>
    %cst = arith.constant 0.000000e+00 : f32
    %8 = vector.broadcast %cst : f32 to vector<64x128xf32>
    %9 = arith.maximumf %7, %8 : vector<64x128xf32>
    %c0_5 = arith.constant 0 : index
    %c0_6 = arith.constant 0 : index
    %10 = vector.load %arg4[%c0_5, %c0_6] : memref<64x128xf32, #tpu.memory_space<vmem>>, vector<64x128xf32>
    tpu.vector_store %arg4[%c0_5, %c0_6], %9 {strides = array<i32>} : memref<64x128xf32, #tpu.memory_space<vmem>>, vector<64x128xf32>,
    return
  }
  func.func @transform_0(%arg0: i32) -> (i32, i32) {
    %c0_i32 = arith.constant 0 : i32
    %c0_i32_0 = arith.constant 0 : i32
    return %arg0, %c0_i32 : i32, i32
  }
  func.func @transform_1(%arg0: i32) -> (i32, i32) {
    %c0_i32 = arith.constant 0 : i32
    %c0_i32_0 = arith.constant 0 : i32
    %c0_i32_1 = arith.constant 0 : i32
    return %c0_i32, %c0_i32_0 : i32, i32
  }
  func.func @transform_2(%arg0: i32) -> (i32, i32) {
    %c0_i32 = arith.constant 0 : i32
    %c0_i32_0 = arith.constant 0 : i32
    %c0_i32_1 = arith.constant 0 : i32
    return %c0_i32, %c0_i32_0 : i32, i32
  }
  func.func @transform_3(%arg0: i32) -> (i32, i32) {
    %c0_i32 = arith.constant 0 : i32
    %c0_i32_0 = arith.constant 0 : i32
    return %arg0, %c0_i32 : i32, i32
  }
}

</mosaic_0001>

<llo_original>
// kernel: tile.38
$region0: #{tile.38}
  #allocation0 [shape = 's32[1]{0}', space=sflag, size = 0x4, scoped, tag = 'scoped memory for tile.38']
  %s0 = inlined_call_operand.vmem [shape: f32[4], index: 0, kind: input, shape index: {}]
  %s1 = inlined_call_operand.vmem [shape: f32[32,4], index: 1, kind: output, shape index: {}]
  // Predicated region
  $region2: #{tile.38} parent=0 // pred_check
    _
  $region3: #{tile.38} parent=0 // pred_check_branch
    %3 = sbr.rel (0) target = $region5
  $region4: #{tile.38} parent=0 // pred_region
    _
  $region5: #{tile.38} parent=0 // pred_fallthru
    _
  %v4 = vld [vmem:[%s0] ss:$0 sm:$0xff]
  %5 = vst [vmem:[%s1] sm:$0xff] %v4
  %s6 = scalar_lea.vmem %s1, 8
  %7 = vst [vmem:[%s6] sm:$0xff] %v4
  %s8 = scalar_lea.vmem %s1, 16
  %9 = vst [vmem:[%s8] sm:$0xff] %v4
  %s10 = scalar_lea.vmem %s1, 24
  %11 = vst [vmem:[%s10] sm:$0xff] %v4

// kernel: tile.39
$region0: #{tile.39}
  %s0 = inlined_call_operand.vmem [shape: f32[32,4], index: 0, kind: input, shape index: {}]
  %s1 = inlined_call_operand.vmem [shape: f32[1,128], index: 1, kind: output, shape index: {}]
  $region1: #{tile.39} parent=0
    #allocation0 [shape = 'u8[4096]{0}', space=vmem, size = 0x1000, scoped, tag = 'scoped mem for output reshape']
    %v2 = vld [vmem:[%s0] sm:$0x1]
    %vm3 = vcmask 31744
    %4 = vst.msk [vmem:[#allocation0] sm:$0x1] %vm3, %v2
    %s5 = scalar_lea.vmem %s0, 31
    %v6 = vld [vmem:[%s5] sm:$0x1]
    %7 = vrot.lane.b32.xlu0 %v6, 124
    %v8 = vpop.permute.xlu0 %7
    %vm9 = vcmask 1048544
    %10 = vst.msk [vmem:[#allocation0] sm:$0x1] %vm9, %v8
    %s11 = scalar_lea.vmem %s0, 30
    %v12 = vld [vmem:[%s11] sm:$0x1]
    %13 = vrot.lane.b32.xlu0 %v12, 120
    %v14 = vpop.permute.xlu0 %13
    %vm15 = vcmask 1015744
    %16 = vst.msk [vmem:[#allocation0] sm:$0x1] %vm15, %v14
    %s17 = scalar_lea.vmem %s0, 29
    %v18 = vld [vmem:[%s17] sm:$0x1]
    %19 = vrot.lane.b32.xlu0 %v18, 116
    %v20 = vpop.permute.xlu0 %19
    %vm21 = vcmask 982944
    %22 = vst.msk [vmem:[#allocation0] sm:$0x1] %vm21, %v20
    %s23 = scalar_lea.vmem %s0, 28
    %v24 = vld [vmem:[%s23] sm:$0x1]
    %25 = vrot.lane.b32.xlu0 %v24, 112
    %v26 = vpop.permute.xlu0 %25
    %vm27 = vcmask 950144
    %28 = vst.msk [vmem:[#allocation0] sm:$0x1] %vm27, %v26
    %s29 = scalar_lea.vmem %s0, 27
    %v30 = vld [vmem:[%s29] sm:$0x1]
    %31 = vrot.lane.b32.xlu0 %v30, 108
    %v32 = vpop.permute.xlu0 %31
    %vm33 = vcmask 917344
    %34 = vst.msk [vmem:[#allocation0] sm:$0x1] %vm33, %v32
    %s35 = scalar_lea.vmem %s0, 26
    %v36 = vld [vmem:[%s35] sm:$0x1]
    %37 = vrot.lane.b32.xlu0 %v36, 104
    %v38 = vpop.permute.xlu0 %37
    %vm39 = vcmask 884544
    %40 = vst.msk [vmem:[#allocation0] sm:$0x1] %vm39, %v38
    %s41 = scalar_lea.vmem %s0, 25
    %v42 = vld [vmem:[%s41] sm:$0x1]
    %43 = vrot.lane.b32.xlu0 %v42, 100
    %v44 = vpop.permute.xlu0 %43
    %vm45 = vcmask 851744
    %46 = vst.msk [vmem:[#allocation0] sm:$0x1] %vm45, %v44
    %s47 = scalar_lea.vmem %s0, 24
    %v48 = vld [vmem:[%s47] sm:$0x1]
    %49 = vrot.lane.b32.xlu0 %v48, 96
    %v50 = vpop.permute.xlu0 %49
    %vm51 = vcmask 818944
    %52 = vst.msk [vmem:[#allocation0] sm:$0x1] %vm51, %v50
    %s53 = scalar_lea.vmem %s0, 23
    %v54 = vld [vmem:[%s53] sm:$0x1]
    %55 = vrot.lane.b32.xlu0 %v54, 92
    %v56 = vpop.permute.xlu0 %55
    %vm57 = vcmask 786144
    %58 = vst.msk [vmem:[#allocation0] sm:$0x1] %vm57, %v56
    %s59 = scalar_lea.vmem %s0, 22
    %v60 = vld [vmem:[%s59] sm:$0x1]
    %61 = vrot.lane.b32.xlu0 %v60, 88
    %v62 = vpop.permute.xlu0 %61
    %vm63 = vcmask 753344
    %64 = vst.msk [vmem:[#allocation0] sm:$0x1] %vm63, %v62
    %s65 = scalar_lea.vmem %s0, 21
    %v66 = vld [vmem:[%s65] sm:$0x1]
    %67 = vrot.lane.b32.xlu0 %v66, 84
    %v68 = vpop.permute.xlu0 %67
    %vm69 = vcmask 720544
    %70 = vst.msk [vmem:[#allocation0] sm:$0x1] %vm69, %v68
    %s71 = scalar_lea.vmem %s0, 20
    %v72 = vld [vmem:[%s71] sm:$0x1]
    %73 = vrot.lane.b32.xlu0 %v72, 80
    %v74 = vpop.permute.xlu0 %73
    %vm75 = vcmask 687744
    %76 = vst.msk [vmem:[#allocation0] sm:$0x1] %vm75, %v74
    %s77 = scalar_lea.vmem %s0, 19
    %v78 = vld [vmem:[%s77] sm:$0x1]
    %79 = vrot.lane.b32.xlu0 %v78, 76
    %v80 = vpop.permute.xlu0 %79
    %vm81 = vcmask 654944
    %82 = vst.msk [vmem:[#allocation0] sm:$0x1] %vm81, %v80
    %s83 = scalar_lea.vmem %s0, 18
    %v84 = vld [vmem:[%s83] sm:$0x1]
    %85 = vrot.lane.b32.xlu0 %v84, 72
    %v86 = vpop.permute.xlu0 %85
    %vm87 = vcmask 622144
    %88 = vst.msk [vmem:[#allocation0] sm:$0x1] %vm87, %v86
    %s89 = scalar_lea.vmem %s0, 17
    %v90 = vld [vmem:[%s89] sm:$0x1]
    %91 = vrot.lane.b32.xlu0 %v90, 68
    %v92 = vpop.permute.xlu0 %91
    %vm93 = vcmask 589344
    %94 = vst.msk [vmem:[#allocation0] sm:$0x1] %vm93, %v92
    %s95 = scalar_lea.vmem %s0, 16
    %v96 = vld [vmem:[%s95] sm:$0x1]
    %97 = vrot.lane.b32.xlu0 %v96, 64
    %v98 = vpop.permute.xlu0 %97
    %vm99 = vcmask 556544
    %100 = vst.msk [vmem:[#allocation0] sm:$0x1] %vm99, %v98
    %s101 = scalar_lea.vmem %s0, 15
    %v102 = vld [vmem:[%s101] sm:$0x1]
    %103 = vrot.lane.b32.xlu0 %v102, 60
    %v104 = vpop.permute.xlu0 %103
    %vm105 = vcmask 523744
    %106 = vst.msk [vmem:[#allocation0] sm:$0x1] %vm105, %v104
    %s107 = scalar_lea.vmem %s0, 14
    %v108 = vld [vmem:[%s107] sm:$0x1]
    %109 = vrot.lane.b32.xlu0 %v108, 56
    %v110 = vpop.permute.xlu0 %109
    %vm111 = vcmask 490944
    %112 = vst.msk [vmem:[#allocation0] sm:$0x1] %vm111, %v110
    %s113 = scalar_lea.vmem %s0, 13
    %v114 = vld [vmem:[%s113] sm:$0x1]
    %115 = vrot.lane.b32.xlu0 %v114, 52
    %v116 = vpop.permute.xlu0 %115
    %vm117 = vcmask 458144
    %118 = vst.msk [vmem:[#allocation0] sm:$0x1] %vm117, %v116
    %s119 = scalar_lea.vmem %s0, 12
    %v120 = vld [vmem:[%s119] sm:$0x1]
    %121 = vrot.lane.b32.xlu0 %v120, 48
    %v122 = vpop.permute.xlu0 %121
    %vm123 = vcmask 425344
    %124 = vst.msk [vmem:[#allocation0] sm:$0x1] %vm123, %v122
    %s125 = scalar_lea.vmem %s0, 11
    %v126 = vld [vmem:[%s125] sm:$0x1]
    %127 = vrot.lane.b32.xlu0 %v126, 44
    %v128 = vpop.permute.xlu0 %127
    %vm129 = vcmask 392544
    %130 = vst.msk [vmem:[#allocation0] sm:$0x1] %vm129, %v128
    %s131 = scalar_lea.vmem %s0, 10
    %v132 = vld [vmem:[%s131] sm:$0x1]
    %133 = vrot.lane.b32.xlu0 %v132, 40
    %v134 = vpop.permute.xlu0 %133
    %vm135 = vcmask 359744
    %136 = vst.msk [vmem:[#allocation0] sm:$0x1] %vm135, %v134
    %s137 = scalar_lea.vmem %s0, 9
    %v138 = vld [vmem:[%s137] sm:$0x1]
    %139 = vrot.lane.b32.xlu0 %v138, 36
    %v140 = vpop.permute.xlu0 %139
    %vm141 = vcmask 326944
    %142 = vst.msk [vmem:[#allocation0] sm:$0x1] %vm141, %v140
    %s143 = scalar_lea.vmem %s0, 8
    %v144 = vld [vmem:[%s143] sm:$0x1]
    %145 = vrot.lane.b32.xlu0 %v144, 32
    %v146 = vpop.permute.xlu0 %145
    %vm147 = vcmask 294144
    %148 = vst.msk [vmem:[#allocation0] sm:$0x1] %vm147, %v146
    %s149 = scalar_lea.vmem %s0, 7
    %v150 = vld [vmem:[%s149] sm:$0x1]
    %151 = vrot.lane.b32.xlu0 %v150, 28
    %v152 = vpop.permute.xlu0 %151
    %vm153 = vcmask 261344
    %154 = vst.msk [vmem:[#allocation0] sm:$0x1] %vm153, %v152
    %s155 = scalar_lea.vmem %s0, 6
    %v156 = vld [vmem:[%s155] sm:$0x1]
    %157 = vrot.lane.b32.xlu0 %v156, 24
    %v158 = vpop.permute.xlu0 %157
    %vm159 = vcmask 228544
    %160 = vst.msk [vmem:[#allocation0] sm:$0x1] %vm159, %v158
    %s161 = scalar_lea.vmem %s0, 5
    %v162 = vld [vmem:[%s161] sm:$0x1]
    %163 = vrot.lane.b32.xlu0 %v162, 20
    %v164 = vpop.permute.xlu0 %163
    %vm165 = vcmask 195744
    %166 = vst.msk [vmem:[#allocation0] sm:$0x1] %vm165, %v164
    %s167 = scalar_lea.vmem %s0, 4
    %v168 = vld [vmem:[%s167] sm:$0x1]
    %169 = vrot.lane.b32.xlu0 %v168, 16
    %v170 = vpop.permute.xlu0 %169
    %vm171 = vcmask 162944
    %172 = vst.msk [vmem:[#allocation0] sm:$0x1] %vm171, %v170
    %s173 = scalar_lea.vmem %s0, 3
    %v174 = vld [vmem:[%s173] sm:$0x1]
    %175 = vrot.lane.b32.xlu0 %v174, 12
    %v176 = vpop.permute.xlu0 %175
    %vm177 = vcmask 130144
    %178 = vst.msk [vmem:[#allocation0] sm:$0x1] %vm177, %v176
    %s179 = scalar_lea.vmem %s0, 2
    %v180 = vld [vmem:[%s179] sm:$0x1]
    %181 = vrot.lane.b32.xlu0 %v180, 8
    %v182 = vpop.permute.xlu0 %181
    %vm183 = vcmask 97344
    %184 = vst.msk [vmem:[#allocation0] sm:$0x1] %vm183, %v182
    %s185 = scalar_lea.vmem %s0, 1
    %v186 = vld [vmem:[%s185] sm:$0x1]
    %187 = vrot.lane.b32.xlu0 %v186, 4
    %v188 = vpop.permute.xlu0 %187
    %vm189 = vcmask 64544
    %190 = vst.msk [vmem:[#allocation0] sm:$0x1] %vm189, %v188
    %s192 = sshll.u32 1, 1
    %s193 = ssub.s32 %s192, 1
    %v195 = vld [vmem:[#allocation0] sm:%s193]
    %s196 = sshll.u32 1, 1
    %s197 = ssub.s32 %s196, 1
    %198 = vst [vmem:[%s1] sm:%s197] %v195

// kernel: decoder_block_forward.9
$region0: #{decoder_block_forward.9}
  #allocation0 [shape = 'u32[]', space=smem, size = 0x4, offset = 0x4, fixed_abs, tag = 'smem constant byte address 0x4 - core index']
  #allocation1 [shape = 'u32[144,128]{1,0:T(1,128)}', space=vmem, size = 0x12000, scoped, tag = 'internal scratch']
  %s0 = inlined_call_operand.vmem [shape: bf16[64,128], index: 0, kind: input, shape index: {}]
  %s1 = inlined_call_operand.vmem [shape: f32[1,128], index: 1, kind: input, shape index: {}]
  %s2 = inlined_call_operand.vmem [shape: f32[1,128], index: 2, kind: input, shape index: {}]
  %s3 = inlined_call_operand.vmem [shape: f32[64,128], index: 3, kind: output, shape index: {}]
  %s4 = sld [smem:[#allocation0]]
  $region22: #{decoder_block_forward.9} parent=0
    _
  %s6 = ssub.s32 1, %s4
  %s7 = scalar_select 0, %s6, %s4
  // Predicated region
  $region2: #{decoder_block_forward.9} parent=0 // pred_check
    _
  $region3: #{decoder_block_forward.9} parent=0 // pred_check_branch
    %9 = sbr.rel (0) target = $region5
  $region4: #{decoder_block_forward.9} parent=0 // pred_region
    _
  $region5: #{decoder_block_forward.9} parent=0 // pred_fallthru
    _
  // Predicated region
  $region6: #{decoder_block_forward.9} parent=0 // pred_check
    _
  $region7: #{decoder_block_forward.9} parent=0 // pred_check_branch
    %11 = sbr.rel (0) target = $region9
  $region8: #{decoder_block_forward.9} parent=0 // pred_region
    _
  $region9: #{decoder_block_forward.9} parent=0 // pred_fallthru
    _
  // Predicated region
  $region10: #{decoder_block_forward.9} parent=0 // pred_check
    _
  $region11: #{decoder_block_forward.9} parent=0 // pred_check_branch
    %13 = sbr.rel (0) target = $region13
  $region12: #{decoder_block_forward.9} parent=0 // pred_region
    _
  $region13: #{decoder_block_forward.9} parent=0 // pred_fallthru
    _
  %v14 = vld [vmem:[%s0] sm:$0xf]
  %v15 = vld [vmem:[%s0 + $0x4] sm:$0xf]
  %v16 = vld [vmem:[%s0 + $0x8] sm:$0xf]
  %v17 = vld [vmem:[%s0 + $0xc] sm:$0xf]
  %v18 = vld [vmem:[%s0 + $0x10] sm:$0xf]
  %v19 = vld [vmem:[%s0 + $0x14] sm:$0xf]
  %v20 = vld [vmem:[%s0 + $0x18] sm:$0xf]
  %v21 = vld [vmem:[%s0 + $0x1c] sm:$0xf]
  %v22 = vunpack.c.l.bf16 %v14
  %v23 = vunpack.c.l.bf16 %v15
  %v24 = vunpack.c.l.bf16 %v16
  %v25 = vunpack.c.l.bf16 %v17
  %v26 = vunpack.c.l.bf16 %v18
  %v27 = vunpack.c.l.bf16 %v19
  %v28 = vunpack.c.l.bf16 %v20
  %v29 = vunpack.c.l.bf16 %v21
  %v30 = vld [vmem:[%s1] sm:$0x1]
  %v32 = vlaneseq
  %v33 = vshrl.u32 %v32, 7
  %v34 = vsub.s32 0, %v33
  %v35 = vrot.slane %v30, %v34
  %v37 = vmul.f32 %v22, %v35
  %v38 = vmul.f32 %v23, %v35
  %v39 = vmul.f32 %v24, %v35
  %v40 = vmul.f32 %v25, %v35
  %v41 = vmul.f32 %v26, %v35
  %v42 = vmul.f32 %v27, %v35
  %v43 = vmul.f32 %v28, %v35
  %v44 = vmul.f32 %v29, %v35
  %v45 = vld [vmem:[%s2] sm:$0x1]
  %v47 = vlaneseq
  %v48 = vshrl.u32 %v47, 7
  %v49 = vsub.s32 0, %v48
  %v50 = vrot.slane %v45, %v49
  %v52 = vadd.f32 %v37, %v50
  %v53 = vadd.f32 %v38, %v50
  %v54 = vadd.f32 %v39, %v50
  %v55 = vadd.f32 %v40, %v50
  %v56 = vadd.f32 %v41, %v50
  %v57 = vadd.f32 %v42, %v50
  %v58 = vadd.f32 %v43, %v50
  %v59 = vadd.f32 %v44, %v50
  %v60 = vmax.f32 %v52, 0.0
  %v61 = vmax.f32 %v53, 0.0
  %v62 = vmax.f32 %v54, 0.0
  %v63 = vmax.f32 %v55, 0.0
  %v64 = vmax.f32 %v56, 0.0
  %v65 = vmax.f32 %v57, 0.0
  %v66 = vmax.f32 %v58, 0.0
  %v67 = vmax.f32 %v59, 0.0
  %68 = vst [vmem:[%s3] sm:$0xff] %v60
  %69 = vst [vmem:[%s3 + $0x8] sm:$0xff] %v61
  %70 = vst [vmem:[%s3 + $0x10] sm:$0xff] %v62
  %71 = vst [vmem:[%s3 + $0x18] sm:$0xff] %v63
  %72 = vst [vmem:[%s3 + $0x20] sm:$0xff] %v64
  %73 = vst [vmem:[%s3 + $0x28] sm:$0xff] %v65
  %74 = vst [vmem:[%s3 + $0x30] sm:$0xff] %v66
  %75 = vst [vmem:[%s3 + $0x38] sm:$0xff] %v67
  // Predicated region
  $region14: #{decoder_block_forward.9} parent=0 // pred_check
    _
  $region15: #{decoder_block_forward.9} parent=0 // pred_check_branch
    %77 = sbr.rel (0) target = $region17
  $region16: #{decoder_block_forward.9} parent=0 // pred_region
    _
  $region17: #{decoder_block_forward.9} parent=0 // pred_fallthru
    _
  // Predicated region
  $region18: #{decoder_block_forward.9} parent=0 // pred_check
    _
  $region19: #{decoder_block_forward.9} parent=0 // pred_check_branch
    %79 = sbr.rel (0) target = $region21
  $region20: #{decoder_block_forward.9} parent=0 // pred_region
    _
  $region21: #{decoder_block_forward.9} parent=0 // pred_fallthru
    _

// kernel: decoder_block_forward.7
$region0: #{decoder_block_forward.7}
  #allocation0 [shape = 'u32[]', space=smem, size = 0x4, offset = 0x4, fixed_abs, tag = 'smem constant byte address 0x4 - core index']
  #allocation1 [shape = 'u32[144,128]{1,0:T(1,128)}', space=vmem, size = 0x12000, scoped, tag = 'internal scratch']
  %s0 = inlined_call_operand.vmem [shape: bf16[2,32,128], index: 0, kind: input, shape index: {}]
  %s1 = inlined_call_operand.vmem [shape: f32[1,128], index: 1, kind: input, shape index: {}]
  %s2 = inlined_call_operand.vmem [shape: f32[1,128], index: 2, kind: input, shape index: {}]
  %s3 = inlined_call_operand.vmem [shape: bf16[3,128,128], index: 3, kind: input, shape index: {}]
  %s4 = inlined_call_operand.vmem [shape: f32[1,128], index: 4, kind: input, shape index: {}]
  %s5 = inlined_call_operand.vmem [shape: bf16[2,32,128], index: 5, kind: output, shape index: {0}]
  %s6 = inlined_call_operand.vmem [shape: f32[2,2,128], index: 6, kind: output, shape index: {1}]
  %7 = xla_tuple %s5, %s6
  %s8 = sld [smem:[#allocation0]]
  $region61: #{decoder_block_forward.7} parent=0
    _
  %s10 = ssub.s32 1, %s8
  %s11 = scalar_select 0, %s10, %s8
  loop: start=0, step=1, limit=4
  $region2: #{decoder_block_forward.7} parent=0 // loop_pre_header
    _
  $region3: #{decoder_block_forward.7} parent=0 // loop_header
    %s13 = sphi 0, %s17
    %p14 = scmp.ge.s32.totalorder %s13, 4
    %s23 = sphi 0, %s25
    %s26 = sphi 0, %s23
    %s27 = sphi 0, %s26
    %s43 = sphi 0, %s27
    %s47 = sphi 0, %s47
    %s49 = sphi 0, %s47
    %s50 = sphi 0, %s49
    %s64 = sphi 0, %s50
    %s68 = sphi 0, %s68
    %s70 = sphi 0, %s68
    %s71 = sphi 0, %s70
    %s85 = sphi 0, %s71
    %s89 = sphi 0, %s89
    %s91 = sphi 0, %s89
    %s92 = sphi 0, %s91
    %s106 = sphi 0, %s92
    %s110 = sphi 0, %s110
    %s112 = sphi 0, %s110
    %s113 = sphi 0, %s112
    %s127 = sphi 0, %s113
    %s133 = sphi 0, %s135
    %s136 = sphi 0, %s133
    %s137 = sphi 0, %s136
    %s153 = sphi 0, %s137
    %s159 = sphi 0, %s161
    %s162 = sphi 0, %s159
    %s163 = sphi 0, %s162
    %s179 = sphi 0, %s163
  $region4: #{decoder_block_forward.7} parent=0 // loop_header_branch
    %16 = sbr.rel (%p14) target = $region8
  $region5: #{decoder_block_forward.7} parent=0 // loop_body
    %s18 = ssub.s32 %s13, 1
    %s19 = ssub.s32 %s13, 2
    %s20 = sadd.s32 %s13, 1
    %s21 = ssub.s32 %s13, %s20
    %p22 = scmp.eq.s32.totalorder %s21, 0
    %s24 = sadd.s32 %s23, 1
    %s25 = scalar_select %p22, %s23, %s24
    %p28 = pneg %p22
    %p29 = scmp.eq.s32.totalorder %s13, 1
    %p30 = por %p28, %p29
    %p31 = scmp.ne.s32.totalorder %s23, %s26
    %p32 = scmp.eq.s32.totalorder %s13, 0
    %p33 = por %p31, %p32
    %p34 = scmp.ne.s32.totalorder %s23, %s26
    %p35 = scmp.eq.s32.totalorder %s18, 1
    %p36 = por %p34, %p35
    %p37 = scmp.ne.s32.totalorder %s26, %s27
    %p38 = scmp.eq.s32.totalorder %s18, 0
    %p39 = por %p37, %p38
    %p40 = scmp.ne.s32.totalorder %s26, %s27
    %p41 = scmp.eq.s32.totalorder %s19, 1
    %p42 = por %p40, %p41
    %p44 = scmp.ne.s32.totalorder %s27, %s43
    %p45 = scmp.eq.s32.totalorder %s19, 0
    %p46 = por %p44, %p45
    %s48 = sadd.s32 %s47, 1
    %p51 = scmp.eq.s32.totalorder %s13, 1
    %p52 = scmp.ne.s32.totalorder %s47, %s49
    %p53 = scmp.eq.s32.totalorder %s13, 0
    %p54 = por %p52, %p53
    %p55 = scmp.ne.s32.totalorder %s47, %s49
    %p56 = scmp.eq.s32.totalorder %s18, 1
    %p57 = por %p55, %p56
    %p58 = scmp.ne.s32.totalorder %s49, %s50
    %p59 = scmp.eq.s32.totalorder %s18, 0
    %p60 = por %p58, %p59
    %p61 = scmp.ne.s32.totalorder %s49, %s50
    %p62 = scmp.eq.s32.totalorder %s19, 1
    %p63 = por %p61, %p62
    %p65 = scmp.ne.s32.totalorder %s50, %s64
    %p66 = scmp.eq.s32.totalorder %s19, 0
    %p67 = por %p65, %p66
    %s69 = sadd.s32 %s68, 1
    %p72 = scmp.eq.s32.totalorder %s13, 1
    %p73 = scmp.ne.s32.totalorder %s68, %s70
    %p74 = scmp.eq.s32.totalorder %s13, 0
    %p75 = por %p73, %p74
    %p76 = scmp.ne.s32.totalorder %s68, %s70
    %p77 = scmp.eq.s32.totalorder %s18, 1
    %p78 = por %p76, %p77
    %p79 = scmp.ne.s32.totalorder %s70, %s71
    %p80 = scmp.eq.s32.totalorder %s18, 0
    %p81 = por %p79, %p80
    %p82 = scmp.ne.s32.totalorder %s70, %s71
    %p83 = scmp.eq.s32.totalorder %s19, 1
    %p84 = por %p82, %p83
    %p86 = scmp.ne.s32.totalorder %s71, %s85
    %p87 = scmp.eq.s32.totalorder %s19, 0
    %p88 = por %p86, %p87
    %s90 = sadd.s32 %s89, 1
    %p93 = scmp.eq.s32.totalorder %s13, 1
    %p94 = scmp.ne.s32.totalorder %s89, %s91
    %p95 = scmp.eq.s32.totalorder %s13, 0
    %p96 = por %p94, %p95
    %p97 = scmp.ne.s32.totalorder %s89, %s91
    %p98 = scmp.eq.s32.totalorder %s18, 1
    %p99 = por %p97, %p98
    %p100 = scmp.ne.s32.totalorder %s91, %s92
    %p101 = scmp.eq.s32.totalorder %s18, 0
    %p102 = por %p100, %p101
    %p103 = scmp.ne.s32.totalorder %s91, %s92
    %p104 = scmp.eq.s32.totalorder %s19, 1
    %p105 = por %p103, %p104
    %p107 = scmp.ne.s32.totalorder %s92, %s106
    %p108 = scmp.eq.s32.totalorder %s19, 0
    %p109 = por %p107, %p108
    %s111 = sadd.s32 %s110, 1
    %p114 = scmp.eq.s32.totalorder %s13, 1
    %p115 = scmp.ne.s32.totalorder %s110, %s112
    %p116 = scmp.eq.s32.totalorder %s13, 0
    %p117 = por %p115, %p116
    %p118 = scmp.ne.s32.totalorder %s110, %s112
    %p119 = scmp.eq.s32.totalorder %s18, 1
    %p120 = por %p118, %p119
    %p121 = scmp.ne.s32.totalorder %s112, %s113
    %p122 = scmp.eq.s32.totalorder %s18, 0
    %p123 = por %p121, %p122
    %p124 = scmp.ne.s32.totalorder %s112, %s113
    %p125 = scmp.eq.s32.totalorder %s19, 1
    %p126 = por %p124, %p125
    %p128 = scmp.ne.s32.totalorder %s113, %s127
    %p129 = scmp.eq.s32.totalorder %s19, 0
    %p130 = por %p128, %p129
    %s131 = ssub.s32 %s13, %s20
    %p132 = scmp.eq.s32.totalorder %s131, 0
    %s134 = sadd.s32 %s133, 1
    %s135 = scalar_select %p132, %s133, %s134
    %p138 = pneg %p132
    %p139 = scmp.eq.s32.totalorder %s13, 1
    %p140 = por %p138, %p139
    %p141 = scmp.ne.s32.totalorder %s133, %s136
    %p142 = scmp.eq.s32.totalorder %s13, 0
    %p143 = por %p141, %p142
    %p144 = scmp.ne.s32.totalorder %s133, %s136
    %p145 = scmp.eq.s32.totalorder %s18, 1
    %p146 = por %p144, %p145
    %p147 = scmp.ne.s32.totalorder %s136, %s137
    %p148 = scmp.eq.s32.totalorder %s18, 0
    %p149 = por %p147, %p148
    %p150 = scmp.ne.s32.totalorder %s136, %s137
    %p151 = scmp.eq.s32.totalorder %s19, 1
    %p152 = por %p150, %p151
    %p154 = scmp.ne.s32.totalorder %s137, %s153
    %p155 = scmp.eq.s32.totalorder %s19, 0
    %p156 = por %p154, %p155
    %s157 = ssub.s32 %s13, %s20
    %p158 = scmp.eq.s32.totalorder %s157, 0
    %s160 = sadd.s32 %s159, 1
    %s161 = scalar_select %p158, %s159, %s160
    %p164 = pneg %p158
    %p165 = scmp.eq.s32.totalorder %s13, 1
    %p166 = por %p164, %p165
    %p167 = scmp.ne.s32.totalorder %s159, %s162
    %p168 = scmp.eq.s32.totalorder %s13, 0
    %p169 = por %p167, %p168
    %p170 = scmp.ne.s32.totalorder %s159, %s162
    %p171 = scmp.eq.s32.totalorder %s18, 1
    %p172 = por %p170, %p171
    %p173 = scmp.ne.s32.totalorder %s162, %s163
    %p174 = scmp.eq.s32.totalorder %s18, 0
    %p175 = por %p173, %p174
    %p176 = scmp.ne.s32.totalorder %s162, %s163
    %p177 = scmp.eq.s32.totalorder %s19, 1
    %p178 = por %p176, %p177
    %p180 = scmp.ne.s32.totalorder %s163, %s179
    %p181 = scmp.eq.s32.totalorder %s19, 0
    %p182 = por %p180, %p181
    %p183 = scmp.le.s32.totalorder 1, %s13
    %p184 = scmp.lt.s32.totalorder %s13, 3
    %p185 = pnand %p183, %p184
    %p186 = pneg %p185
    // Predicated region
    $region9: #{decoder_block_forward.7} parent=5 // pred_check
      _
    $region10: #{decoder_block_forward.7} parent=5 // pred_check_branch
      %188 = sbr.rel (%p185) target = $region12
    $region11: #{decoder_block_forward.7} parent=5 // pred_region
      %s189 = ssub.s32 %s13, 1
      // Predicated region
      $region13: #{decoder_block_forward.7} parent=11 // pred_check
        %p190 = pneg %p60
      $region14: #{decoder_block_forward.7} parent=11 // pred_check_branch
        %192 = sbr.rel (%p190) target = $region16
      $region15: #{decoder_block_forward.7} parent=11 // pred_region
        _
      $region16: #{decoder_block_forward.7} parent=11 // pred_fallthru
        _
      // Predicated region
      $region17: #{decoder_block_forward.7} parent=11 // pred_check
        %p193 = pneg %p81
      $region18: #{decoder_block_forward.7} parent=11 // pred_check_branch
        %195 = sbr.rel (%p193) target = $region20
      $region19: #{decoder_block_forward.7} parent=11 // pred_region
        _
      $region20: #{decoder_block_forward.7} parent=11 // pred_fallthru
        _
      // Predicated region
      $region21: #{decoder_block_forward.7} parent=11 // pred_check
        %p196 = pneg %p102
      $region22: #{decoder_block_forward.7} parent=11 // pred_check_branch
        %198 = sbr.rel (%p196) target = $region24
      $region23: #{decoder_block_forward.7} parent=11 // pred_region
        _
      $region24: #{decoder_block_forward.7} parent=11 // pred_fallthru
        _
      // Predicated region
      $region25: #{decoder_block_forward.7} parent=11 // pred_check
        %p199 = pneg %p123
      $region26: #{decoder_block_forward.7} parent=11 // pred_check_branch
        %201 = sbr.rel (%p199) target = $region28
      $region27: #{decoder_block_forward.7} parent=11 // pred_region
        _
      $region28: #{decoder_block_forward.7} parent=11 // pred_fallthru
        _
    $region12: #{decoder_block_forward.7} parent=5 // pred_fallthru
      _
    %p202 = scmp.lt.s32.totalorder %s13, 2
    // Predicated region
    $region29: #{decoder_block_forward.7} parent=5 // pred_check
      %p203 = pneg %p202
    $region30: #{decoder_block_forward.7} parent=5 // pred_check_branch
      %205 = sbr.rel (%p203) target = $region32
    $region31: #{decoder_block_forward.7} parent=5 // pred_region
      // Predicated region
      $region33: #{decoder_block_forward.7} parent=31 // pred_check
        %p206 = pneg %p33
      $region34: #{decoder_block_forward.7} parent=31 // pred_check_branch
        %208 = sbr.rel (%p206) target = $region36
      $region35: #{decoder_block_forward.7} parent=31 // pred_region
        %p209 = scmp.lt.s32.totalorder %s13, 1
        %s210 = scalar_select %p209, %s13, 1
        %s211 = smul.addr %s210, 4
        %s212 = smul.addr %s211, 4
        %s213 = scalar_lea.vmem %s0, %s212
      $region36: #{decoder_block_forward.7} parent=31 // pred_fallthru
        _
    $region32: #{decoder_block_forward.7} parent=5 // pred_fallthru
      _
    %p214 = scmp.le.s32.totalorder 1, %s13
    %p215 = scmp.lt.s32.totalorder %s13, 3
    %p216 = pnand %p214, %p215
    %p217 = pneg %p216
    // Predicated region
    $region37: #{decoder_block_forward.7} parent=5 // pred_check
      _
    $region38: #{decoder_block_forward.7} parent=5 // pred_check_branch
      %219 = sbr.rel (%p216) target = $region40
    $region39: #{decoder_block_forward.7} parent=5 // pred_region
      %s220 = ssub.s32 %s13, 1
      %p221 = scmp.lt.s32.totalorder %s18, 1
      %s222 = scalar_select %p221, %s18, 1
      %s223 = smul.addr %s222, 4
      %s224 = smul.addr %s223, 4
      %s225 = scalar_lea.vmem %s0, %s224
      %p226 = pneg %p39
      %p227 = pneg %p36
      %p228 = pneg %p60
      %p229 = pneg %p57
      %p230 = pneg %p81
      %p231 = pneg %p78
      %p232 = pneg %p102
      %p233 = pneg %p99
      %p234 = pneg %p123
      %p235 = pneg %p120
      %p236 = pneg %p149
      %p237 = pneg %p146
      %p238 = scmp.lt.s32.totalorder %s18, 1
      %s239 = scalar_select %p238, %s18, 1
      %s240 = smul.addr %s239, 4
      %s241 = smul.addr %s240, 4
      %s242 = scalar_lea.vmem %s5, %s241
      %p243 = pneg %p175
      %p244 = pneg %p172
      %p245 = scmp.lt.s32.totalorder %s18, 1
      %s246 = scalar_select %p245, %s18, 1
      %s247 = smul.addr %s246, 2
      %s248 = scalar_lea.vmem %s6, %s247
      %p249 = scmp.lt.s32.totalorder %s18, 1
      %s250 = scalar_select %p249, %s18, 1
      %s251 = smul.addr %s250, 4
      %s252 = smul.addr %s251, 4
      %s253 = scalar_lea.vmem %s0, %s252
      %p254 = scmp.lt.s32.totalorder %s18, 1
      %s255 = scalar_select %p254, %s18, 1
      %s256 = smul.addr %s255, 4
      %s257 = smul.addr %s256, 4
      %s258 = scalar_lea.vmem %s5, %s257
      %p259 = scmp.lt.s32.totalorder %s18, 1
      %s260 = scalar_select %p259, %s18, 1
      %s261 = smul.addr %s260, 2
      %s262 = scalar_lea.vmem %s6, %s261
      %v264 = vld [vmem:[%s253] sm:$0xf]
      %v265 = vld [vmem:[%s253 + $0x4] sm:$0xf]
      %v266 = vld [vmem:[%s253 + $0x8] sm:$0xf]
      %v267 = vld [vmem:[%s253 + $0xc] sm:$0xf]
      %v268 = vunpack.c.l.bf16 %v264
      %v269 = vunpack.c.l.bf16 %v265
      %v270 = vunpack.c.l.bf16 %v266
      %v271 = vunpack.c.l.bf16 %v267
      %v272 = vld [vmem:[%s1] sm:$0x1]
      %v274 = vlaneseq
      %v275 = vshrl.u32 %v274, 7
      %v276 = vsub.s32 0, %v275
      %v277 = vrot.slane %v272, %v276
      %v279 = vmul.f32 %v268, %v277
      %v280 = vmul.f32 %v269, %v277
      %v281 = vmul.f32 %v270, %v277
      %v282 = vmul.f32 %v271, %v277
      %v283 = vld [vmem:[%s2] sm:$0x1]
      %v285 = vlaneseq
      %v286 = vshrl.u32 %v285, 7
      %v287 = vsub.s32 0, %v286
      %v288 = vrot.slane %v283, %v287
      %v290 = vadd.f32 %v279, %v288
      %v291 = vadd.f32 %v280, %v288
      %v292 = vadd.f32 %v281, %v288
      %v293 = vadd.f32 %v282, %v288
      %v294 = vmax.f32 %v290, 0.0
      %v295 = vmax.f32 %v291, 0.0
      %v296 = vmax.f32 %v292, 0.0
      %v297 = vmax.f32 %v293, 0.0
      %v298 = vpack.c.bf16 %v295, %v294
      %v299 = vpack.c.bf16 %v297, %v296
      %vm300 = vsmask.f32 256
      %v302 = vshrl.u32 %v298, 16
      %v304 = vrot.slane %v302, 7
      %v305 = vshll.u32 %v298, 16
      %v307 = vor.u32 %v304, %v305
      %v309 = vshrl.u32 %v299, 16
      %v311 = vrot.slane %v309, 7
      %v312 = vshll.u32 %v299, 16
      %v314 = vor.u32 %v311, %v312
      %v315 = vsel %vm300, %v304, %v314
      %vm318 = vcmask 1040384
      %vm319 = vmand %vm318, %vm300
      %v320 = vsel %vm319, 0, %v307
      %vm321 = vsmask.f32 7424
      %v322 = vrot.slane %v305, 1
      %v323 = vor.u32 %v302, %v322
      %v324 = vrot.slane %v312, 1
      %v325 = vsel %vm321, %v323, %v324
      %v326 = vor.u32 %v309, %v324
      %vm329 = vcmask 1047552
      %vm330 = vmand %vm329, %vm321
      %v331 = vsel %vm330, %v326, 0
      %v332 = vld [vmem:[%s3] sm:$0xf]
      %v333 = vld [vmem:[%s3 + $0x4] sm:$0xf]
      %v334 = vld [vmem:[%s3 + $0x8] sm:$0xf]
      %v335 = vld [vmem:[%s3 + $0xc] sm:$0xf]
      %v336 = vld [vmem:[%s3 + $0x10] sm:$0xf]
      %v337 = vld [vmem:[%s3 + $0x14] sm:$0xf]
      %v338 = vld [vmem:[%s3 + $0x18] sm:$0xf]
      %v339 = vld [vmem:[%s3 + $0x1c] sm:$0xf]
      %v340 = vld [vmem:[%s3 + $0x20] sm:$0xf]
      %v341 = vld [vmem:[%s3 + $0x24] sm:$0xf]
      %v342 = vld [vmem:[%s3 + $0x28] sm:$0xf]
      %v343 = vld [vmem:[%s3 + $0x2c] sm:$0xf]
      %v344 = vld [vmem:[%s3 + $0x30] sm:$0xf]
      %v345 = vld [vmem:[%s3 + $0x34] sm:$0xf]
      %v346 = vld [vmem:[%s3 + $0x38] sm:$0xf]
      %v347 = vld [vmem:[%s3 + $0x3c] sm:$0xf]
      %s348 = scalar_lea.vmem %s3, 64
      %v349 = vld [vmem:[%s348] sm:$0xf]
      %v350 = vld [vmem:[%s348 + $0x4] sm:$0xf]
      %v351 = vld [vmem:[%s348 + $0x8] sm:$0xf]
      %v352 = vld [vmem:[%s348 + $0xc] sm:$0xf]
      %v353 = vld [vmem:[%s348 + $0x10] sm:$0xf]
      %v354 = vld [vmem:[%s348 + $0x14] sm:$0xf]
      %v355 = vld [vmem:[%s348 + $0x18] sm:$0xf]
      %v356 = vld [vmem:[%s348 + $0x1c] sm:$0xf]
      %v357 = vld [vmem:[%s348 + $0x20] sm:$0xf]
      %v358 = vld [vmem:[%s348 + $0x24] sm:$0xf]
      %v359 = vld [vmem:[%s348 + $0x28] sm:$0xf]
      %v360 = vld [vmem:[%s348 + $0x2c] sm:$0xf]
      %v361 = vld [vmem:[%s348 + $0x30] sm:$0xf]
      %v362 = vld [vmem:[%s348 + $0x34] sm:$0xf]
      %v363 = vld [vmem:[%s348 + $0x38] sm:$0xf]
      %v364 = vld [vmem:[%s348 + $0x3c] sm:$0xf]
      %v381 = vunpack.c.l.b16 %v349
      %v382 = vunpack.c.l.b16 %v350
      %v383 = vunpack.c.l.b16 %v351
      %v384 = vunpack.c.l.b16 %v352
      %v385 = vunpack.c.l.b16 %v353
      %v386 = vunpack.c.l.b16 %v354
      %v387 = vunpack.c.l.b16 %v355
      %v388 = vunpack.c.l.b16 %v356
      %v389 = vunpack.c.l.b16 %v357
      %v390 = vunpack.c.l.b16 %v358
      %v391 = vunpack.c.l.b16 %v359
      %v392 = vunpack.c.l.b16 %v360
      %v393 = vunpack.c.l.b16 %v361
      %v394 = vunpack.c.l.b16 %v362
      %v395 = vunpack.c.l.b16 %v363
      %v396 = vunpack.c.l.b16 %v364
      %v397 = vpack.c.b16 %v382, %v381
      %v398 = vpack.c.b16 %v384, %v383
      %v399 = vpack.c.b16 %v386, %v385
      %v400 = vpack.c.b16 %v388, %v387
      %v401 = vpack.c.b16 %v390, %v389
      %v402 = vpack.c.b16 %v392, %v391
      %v403 = vpack.c.b16 %v394, %v393
      %v404 = vpack.c.b16 %v396, %v395
      %413 = vmatprep.subr.bf16.mxu0 0
      %414 = vmatpush1.bf16.msra.mxu0 %v404
      %415 = vmatprep.subr.bf16.mxu0 0
      %416 = vmatpush1.bf16.msra.mxu0 %v403
      %417 = vmatprep.subr.bf16.mxu0 0
      %418 = vmatpush1.bf16.msra.mxu0 %v402
      %419 = vmatprep.subr.bf16.mxu0 0
      %420 = vmatpush1.bf16.msra.mxu0 %v401
      %421 = vmatprep.subr.bf16.mxu0 0
      %422 = vmatpush1.bf16.msra.mxu0 %v400
      %423 = vmatprep.subr.bf16.mxu0 0
      %424 = vmatpush1.bf16.msra.mxu0 %v399
      %425 = vmatprep.subr.bf16.mxu0 0
      %426 = vmatpush1.bf16.msra.mxu0 %v398
      %427 = vmatprep.subr.bf16.mxu0 0
      %428 = vmatpush1.bf16.msra.mxu0 %v397
      %429 = vmatprep.subr.bf16.mxu0 0
      %430 = vmatpush2.bf16.msra.mxu0 0
      %431 = vmatprep.subr.bf16.mxu0 0
      %432 = vmatpush2.bf16.msra.mxu0 0
      %433 = vmatprep.subr.bf16.mxu0 0
      %434 = vmatpush2.bf16.msra.mxu0 0
      %435 = vmatprep.subr.bf16.mxu0 0
      %436 = vmatpush2.bf16.msra.mxu0 0
      %437 = vmatprep.subr.bf16.mxu0 0
      %438 = vmatpush2.bf16.msra.mxu0 0
      %439 = vmatprep.subr.bf16.mxu0 0
      %440 = vmatpush2.bf16.msra.mxu0 0
      %441 = vmatprep.subr.bf16.mxu0 0
      %442 = vmatpush2.bf16.msra.mxu0 0
      %443 = vmatprep.subr.bf16.mxu0 0
      %444 = vmatpush2.bf16.msra.mxu0 0
      %445 = vmatprep.mubr.bf16.mxu0 0
      %446 = vmatmul.mubr.bf16.gmra.mxu0 %v298
      %v447 = vpop.f32.mrf.mxu0
      %v448 = vadd.f32 0.0, %v447
      %v449 = vpop.f32.mrf.mxu0
      %v450 = vpop.f32.mrf.mxu0
      %v451 = vadd.f32 0.0, %v450
      %v452 = vpop.f32.mrf.mxu0
      %453 = vmatprep.mubr.bf16.mxu0 0
      %454 = vmatmul.mubr.bf16.gmra.mxu0 %v299
      %v455 = vpop.f32.mrf.mxu0
      %v456 = vadd.f32 0.0, %v455
      %v457 = vpop.f32.mrf.mxu0
      %v458 = vpop.f32.mrf.mxu0
      %v459 = vadd.f32 0.0, %v458
      %v460 = vpop.f32.mrf.mxu0
      %461 = vdwg.mxu0
      %v478 = vunpack.c.l.b16 %v332
      %v479 = vunpack.c.l.b16 %v333
      %v480 = vunpack.c.l.b16 %v334
      %v481 = vunpack.c.l.b16 %v335
      %v482 = vunpack.c.l.b16 %v336
      %v483 = vunpack.c.l.b16 %v337
      %v484 = vunpack.c.l.b16 %v338
      %v485 = vunpack.c.l.b16 %v339
      %v486 = vunpack.c.l.b16 %v340
      %v487 = vunpack.c.l.b16 %v341
      %v488 = vunpack.c.l.b16 %v342
      %v489 = vunpack.c.l.b16 %v343
      %v490 = vunpack.c.l.b16 %v344
      %v491 = vunpack.c.l.b16 %v345
      %v492 = vunpack.c.l.b16 %v346
      %v493 = vunpack.c.l.b16 %v347
      %v494 = vpack.c.b16 %v479, %v478
      %v495 = vpack.c.b16 %v481, %v480
      %v496 = vpack.c.b16 %v483, %v482
      %v497 = vpack.c.b16 %v485, %v484
      %v498 = vpack.c.b16 %v487, %v486
      %v499 = vpack.c.b16 %v489, %v488
      %v500 = vpack.c.b16 %v491, %v490
      %v501 = vpack.c.b16 %v493, %v492
      %510 = vmatprep.subr.bf16.mxu0 0
      %511 = vmatpush1.bf16.msra.mxu0 %v501
      %512 = vmatprep.subr.bf16.mxu0 0
      %513 = vmatpush1.bf16.msra.mxu0 %v500
      %514 = vmatprep.subr.bf16.mxu0 0
      %515 = vmatpush1.bf16.msra.mxu0 %v499
      %516 = vmatprep.subr.bf16.mxu0 0
      %517 = vmatpush1.bf16.msra.mxu0 %v498
      %518 = vmatprep.subr.bf16.mxu0 0
      %519 = vmatpush1.bf16.msra.mxu0 %v497
      %520 = vmatprep.subr.bf16.mxu0 0
      %521 = vmatpush1.bf16.msra.mxu0 %v496
      %522 = vmatprep.subr.bf16.mxu0 0
      %523 = vmatpush1.bf16.msra.mxu0 %v495
      %524 = vmatprep.subr.bf16.mxu0 0
      %525 = vmatpush1.bf16.msra.mxu0 %v494
      %526 = vmatprep.subr.bf16.mxu0 0
      %527 = vmatpush2.bf16.msra.mxu0 0
      %528 = vmatprep.subr.bf16.mxu0 0
      %529 = vmatpush2.bf16.msra.mxu0 0
      %530 = vmatprep.subr.bf16.mxu0 0
      %531 = vmatpush2.bf16.msra.mxu0 0
      %532 = vmatprep.subr.bf16.mxu0 0
      %533 = vmatpush2.bf16.msra.mxu0 0
      %534 = vmatprep.subr.bf16.mxu0 0
      %535 = vmatpush2.bf16.msra.mxu0 0
      %536 = vmatprep.subr.bf16.mxu0 0
      %537 = vmatpush2.bf16.msra.mxu0 0
      %538 = vmatprep.subr.bf16.mxu0 0
      %539 = vmatpush2.bf16.msra.mxu0 0
      %540 = vmatprep.subr.bf16.mxu0 0
      %541 = vmatpush2.bf16.msra.mxu0 0
      %542 = vmatprep.mubr.bf16.mxu0 0
      %543 = vmatmul.mubr.bf16.gmra.mxu0 %v320
      %v544 = vpop.f32.mrf.mxu0
      %v545 = vadd.f32 %v448, %v544
      %v546 = vpop.f32.mrf.mxu0
      %v547 = vpop.f32.mrf.mxu0
      %v548 = vadd.f32 %v451, %v547
      %v549 = vpop.f32.mrf.mxu0
      %550 = vmatprep.mubr.bf16.mxu0 0
      %551 = vmatmul.mubr.bf16.gmra.mxu0 %v315
      %v552 = vpop.f32.mrf.mxu0
      %v553 = vadd.f32 %v456, %v552
      %v554 = vpop.f32.mrf.mxu0
      %v555 = vpop.f32.mrf.mxu0
      %v556 = vadd.f32 %v459, %v555
      %v557 = vpop.f32.mrf.mxu0
      %558 = vdwg.mxu0
      %s559 = scalar_lea.vmem %s3, 128
      %v560 = vld [vmem:[%s559] sm:$0xf]
      %v561 = vld [vmem:[%s559 + $0x4] sm:$0xf]
      %v562 = vld [vmem:[%s559 + $0x8] sm:$0xf]
      %v563 = vld [vmem:[%s559 + $0xc] sm:$0xf]
      %v564 = vld [vmem:[%s559 + $0x10] sm:$0xf]
      %v565 = vld [vmem:[%s559 + $0x14] sm:$0xf]
      %v566 = vld [vmem:[%s559 + $0x18] sm:$0xf]
      %v567 = vld [vmem:[%s559 + $0x1c] sm:$0xf]
      %v568 = vld [vmem:[%s559 + $0x20] sm:$0xf]
      %v569 = vld [vmem:[%s559 + $0x24] sm:$0xf]
      %v570 = vld [vmem:[%s559 + $0x28] sm:$0xf]
      %v571 = vld [vmem:[%s559 + $0x2c] sm:$0xf]
      %v572 = vld [vmem:[%s559 + $0x30] sm:$0xf]
      %v573 = vld [vmem:[%s559 + $0x34] sm:$0xf]
      %v574 = vld [vmem:[%s559 + $0x38] sm:$0xf]
      %v575 = vld [vmem:[%s559 + $0x3c] sm:$0xf]
      %v592 = vunpack.c.l.b16 %v560
      %v593 = vunpack.c.l.b16 %v561
      %v594 = vunpack.c.l.b16 %v562
      %v595 = vunpack.c.l.b16 %v563
      %v596 = vunpack.c.l.b16 %v564
      %v597 = vunpack.c.l.b16 %v565
      %v598 = vunpack.c.l.b16 %v566
      %v599 = vunpack.c.l.b16 %v567
      %v600 = vunpack.c.l.b16 %v568
      %v601 = vunpack.c.l.b16 %v569
      %v602 = vunpack.c.l.b16 %v570
      %v603 = vunpack.c.l.b16 %v571
      %v604 = vunpack.c.l.b16 %v572
      %v605 = vunpack.c.l.b16 %v573
      %v606 = vunpack.c.l.b16 %v574
      %v607 = vunpack.c.l.b16 %v575
      %v608 = vpack.c.b16 %v593, %v592
      %v609 = vpack.c.b16 %v595, %v594
      %v610 = vpack.c.b16 %v597, %v596
      %v611 = vpack.c.b16 %v599, %v598
      %v612 = vpack.c.b16 %v601, %v600
      %v613 = vpack.c.b16 %v603, %v602
      %v614 = vpack.c.b16 %v605, %v604
      %v615 = vpack.c.b16 %v607, %v606
      %624 = vmatprep.subr.bf16.mxu0 0
      %625 = vmatpush1.bf16.msra.mxu0 %v615
      %626 = vmatprep.subr.bf16.mxu0 0
      %627 = vmatpush1.bf16.msra.mxu0 %v614
      %628 = vmatprep.subr.bf16.mxu0 0
      %629 = vmatpush1.bf16.msra.mxu0 %v613
      %630 = vmatprep.subr.bf16.mxu0 0
      %631 = vmatpush1.bf16.msra.mxu0 %v612
      %632 = vmatprep.subr.bf16.mxu0 0
      %633 = vmatpush1.bf16.msra.mxu0 %v611
      %634 = vmatprep.subr.bf16.mxu0 0
      %635 = vmatpush1.bf16.msra.mxu0 %v610
      %636 = vmatprep.subr.bf16.mxu0 0
      %637 = vmatpush1.bf16.msra.mxu0 %v609
      %638 = vmatprep.subr.bf16.mxu0 0
      %639 = vmatpush1.bf16.msra.mxu0 %v608
      %640 = vmatprep.subr.bf16.mxu0 0
      %641 = vmatpush2.bf16.msra.mxu0 0
      %642 = vmatprep.subr.bf16.mxu0 0
      %643 = vmatpush2.bf16.msra.mxu0 0
      %644 = vmatprep.subr.bf16.mxu0 0
      %645 = vmatpush2.bf16.msra.mxu0 0
      %646 = vmatprep.subr.bf16.mxu0 0
      %647 = vmatpush2.bf16.msra.mxu0 0
      %648 = vmatprep.subr.bf16.mxu0 0
      %649 = vmatpush2.bf16.msra.mxu0 0
      %650 = vmatprep.subr.bf16.mxu0 0
      %651 = vmatpush2.bf16.msra.mxu0 0
      %652 = vmatprep.subr.bf16.mxu0 0
      %653 = vmatpush2.bf16.msra.mxu0 0
      %654 = vmatprep.subr.bf16.mxu0 0
      %655 = vmatpush2.bf16.msra.mxu0 0
      %656 = vmatprep.mubr.bf16.mxu0 0
      %657 = vmatmul.mubr.bf16.gmra.mxu0 %v325
      %v658 = vpop.f32.mrf.mxu0
      %v659 = vadd.f32 0.0, %v658
      %v660 = vpop.f32.mrf.mxu0
      %v661 = vpop.f32.mrf.mxu0
      %v662 = vadd.f32 0.0, %v661
      %v663 = vpop.f32.mrf.mxu0
      %664 = vmatprep.mubr.bf16.mxu0 0
      %665 = vmatmul.mubr.bf16.gmra.mxu0 %v331
      %v666 = vpop.f32.mrf.mxu0
      %v667 = vadd.f32 0.0, %v666
      %v668 = vpop.f32.mrf.mxu0
      %v669 = vpop.f32.mrf.mxu0
      %v670 = vadd.f32 0.0, %v669
      %v671 = vpop.f32.mrf.mxu0
      %672 = vdwg.mxu0
      %v673 = vadd.f32 %v545, %v659
      %v674 = vadd.f32 %v548, %v662
      %v675 = vadd.f32 %v553, %v667
      %v676 = vadd.f32 %v556, %v670
      %v677 = vld [vmem:[%s4] sm:$0x1]
      %v679 = vlaneseq
      %v680 = vshrl.u32 %v679, 7
      %v681 = vsub.s32 0, %v680
      %v682 = vrot.slane %v677, %v681
      %v684 = vadd.f32 %v673, %v682
      %v685 = vadd.f32 %v674, %v682
      %v686 = vadd.f32 %v675, %v682
      %v687 = vadd.f32 %v676, %v682
      %v688 = vpack.c.bf16 %v685, %v684
      %v689 = vpack.c.bf16 %v687, %v686
      %v692 = vunpack.c.l.b16 %v688
      %v693 = vunpack.c.h.b16 %v688
      %v694 = vunpack.c.l.b16 %v689
      %v695 = vunpack.c.h.b16 %v689
      %v696 = vpack.c.b16 %v692, %v692
      %v697 = vpack.c.b16 %v693, %v693
      %v698 = vpack.c.b16 %v694, %v694
      %v699 = vpack.c.b16 %v695, %v695
      %704 = vst [vmem:[%s258] sm:$0xf] %v696
      %705 = vst [vmem:[%s258 + $0x4] sm:$0xf] %v697
      %706 = vst [vmem:[%s258 + $0x8] sm:$0xf] %v698
      %707 = vst [vmem:[%s258 + $0xc] sm:$0xf] %v699
      %v708 = vadd.f32 %v684, %v685
      %v709 = vadd.f32 %v708, %v686
      %v710 = vadd.f32 %v709, %v687
      %v711 = vrot.slane %v710, 4
      %v712 = vadd.f32 %v710, %v711
      %v713 = vrot.slane %v712, 2
      %v714 = vadd.f32 %v712, %v713
      %v715 = vrot.slane %v714, 1
      %v716 = vadd.f32 %v714, %v715
      %v717 = vmul.f32 %v684, %v684
      %v718 = vmul.f32 %v685, %v685
      %v719 = vmul.f32 %v686, %v686
      %v720 = vmul.f32 %v687, %v687
      %v721 = vadd.f32 %v717, %v718
      %v722 = vadd.f32 %v721, %v719
      %v723 = vadd.f32 %v722, %v720
      %v724 = vrot.slane %v723, 4
      %v725 = vadd.f32 %v723, %v724
      %v726 = vrot.slane %v725, 2
      %v727 = vadd.f32 %v725, %v726
      %v728 = vrot.slane %v727, 1
      %v729 = vadd.f32 %v727, %v728
      %vm730 = vcmask 1040384
      %v731 = vsel %vm730, %v716, %v729
      %732 = vst [vmem:[%s262] sm:$0x3] %v731
      %p733 = scmp.lt.s32.totalorder %s18, 1
      %s734 = scalar_select %p733, %s18, 1
      %s735 = smul.addr %s734, 4
      %s736 = smul.addr %s735, 4
      %s737 = scalar_lea.vmem %s5, %s736
      %p738 = scmp.lt.s32.totalorder %s18, 1
      %s739 = scalar_select %p738, %s18, 1
      %s740 = smul.addr %s739, 2
      %s741 = scalar_lea.vmem %s6, %s740
      // Predicated region
      $region41: #{decoder_block_forward.7} parent=39 // pred_check
        %p742 = pneg %p146
      $region42: #{decoder_block_forward.7} parent=39 // pred_check_branch
        %744 = sbr.rel (%p742) target = $region44
      $region43: #{decoder_block_forward.7} parent=39 // pred_region
        _
      $region44: #{decoder_block_forward.7} parent=39 // pred_fallthru
        _
      // Predicated region
      $region45: #{decoder_block_forward.7} parent=39 // pred_check
        %p745 = pneg %p172
      $region46: #{decoder_block_forward.7} parent=39 // pred_check_branch
        %747 = sbr.rel (%p745) target = $region48
      $region47: #{decoder_block_forward.7} parent=39 // pred_region
        _
      $region48: #{decoder_block_forward.7} parent=39 // pred_fallthru
        _
    $region40: #{decoder_block_forward.7} parent=5 // pred_fallthru
      _
    %p748 = scmp.le.s32.totalorder 2, %s13
    // Predicated region
    $region49: #{decoder_block_forward.7} parent=5 // pred_check
      %p749 = pneg %p748
    $region50: #{decoder_block_forward.7} parent=5 // pred_check_branch
      %751 = sbr.rel (%p749) target = $region52
    $region51: #{decoder_block_forward.7} parent=5 // pred_region
      %s752 = ssub.s32 %s13, 2
      // Predicated region
      $region53: #{decoder_block_forward.7} parent=51 // pred_check
        %p753 = pneg %p152
      $region54: #{decoder_block_forward.7} parent=51 // pred_check_branch
        %755 = sbr.rel (%p753) target = $region56
      $region55: #{decoder_block_forward.7} parent=51 // pred_region
        %p756 = scmp.lt.s32.totalorder %s19, 1
        %s757 = scalar_select %p756, %s19, 1
        %s758 = smul.addr %s757, 4
        %s759 = smul.addr %s758, 4
        %s760 = scalar_lea.vmem %s5, %s759
      $region56: #{decoder_block_forward.7} parent=51 // pred_fallthru
        _
      // Predicated region
      $region57: #{decoder_block_forward.7} parent=51 // pred_check
        %p761 = pneg %p178
      $region58: #{decoder_block_forward.7} parent=51 // pred_check_branch
        %763 = sbr.rel (%p761) target = $region60
      $region59: #{decoder_block_forward.7} parent=51 // pred_region
        %p764 = scmp.lt.s32.totalorder %s19, 1
        %s765 = scalar_select %p764, %s19, 1
        %s766 = smul.addr %s765, 2
        %s767 = scalar_lea.vmem %s6, %s766
      $region60: #{decoder_block_forward.7} parent=51 // pred_fallthru
        _
    $region52: #{decoder_block_forward.7} parent=5 // pred_fallthru
      _
  $region6: #{decoder_block_forward.7} parent=0 // loop_footer
    %s17 = sadd.s32 1, %s13
  $region7: #{decoder_block_forward.7} parent=0 // loop_footer_branch
    %12 = sbr.rel target = $region3
  $region8: #{decoder_block_forward.7} parent=0 // loop_exit
    _

// kernel: decoder_block_forward.6
$region0: #{decoder_block_forward.6}
  #allocation0 [shape = 'u32[]', space=smem, size = 0x4, offset = 0x4, fixed_abs, tag = 'smem constant byte address 0x4 - core index']
  #allocation1 [shape = 'u32[144,128]{1,0:T(1,128)}', space=vmem, size = 0x12000, scoped, tag = 'internal scratch']
  %s0 = inlined_call_operand.vmem [shape: bf16[2,32,256], index: 0, kind: input, shape index: {}]
  %s1 = inlined_call_operand.vmem [shape: f32[1,256], index: 1, kind: input, shape index: {}]
  %s2 = inlined_call_operand.vmem [shape: f32[1,256], index: 2, kind: input, shape index: {}]
  %s3 = inlined_call_operand.vmem [shape: bf16[3,256,128], index: 3, kind: input, shape index: {}]
  %s4 = inlined_call_operand.vmem [shape: f32[1,128], index: 4, kind: input, shape index: {}]
  %s5 = inlined_call_operand.vmem [shape: bf16[2,32,128], index: 5, kind: output, shape index: {0}]
  %s6 = inlined_call_operand.vmem [shape: f32[2,2,128], index: 6, kind: output, shape index: {1}]
  %7 = xla_tuple %s5, %s6
  %s8 = sld [smem:[#allocation0]]
  $region61: #{decoder_block_forward.6} parent=0
    _
  %s10 = ssub.s32 1, %s8
  %s11 = scalar_select 0, %s10, %s8
  loop: start=0, step=1, limit=4
  $region2: #{decoder_block_forward.6} parent=0 // loop_pre_header
    _
  $region3: #{decoder_block_forward.6} parent=0 // loop_header
    %s13 = sphi 0, %s17
    %p14 = scmp.ge.s32.totalorder %s13, 4
    %s23 = sphi 0, %s25
    %s26 = sphi 0, %s23
    %s27 = sphi 0, %s26
    %s43 = sphi 0, %s27
    %s47 = sphi 0, %s47
    %s49 = sphi 0, %s47
    %s50 = sphi 0, %s49
    %s64 = sphi 0, %s50
    %s68 = sphi 0, %s68
    %s70 = sphi 0, %s68
    %s71 = sphi 0, %s70
    %s85 = sphi 0, %s71
    %s89 = sphi 0, %s89
    %s91 = sphi 0, %s89
    %s92 = sphi 0, %s91
    %s106 = sphi 0, %s92
    %s110 = sphi 0, %s110
    %s112 = sphi 0, %s110
    %s113 = sphi 0, %s112
    %s127 = sphi 0, %s113
    %s133 = sphi 0, %s135
    %s136 = sphi 0, %s133
    %s137 = sphi 0, %s136
    %s153 = sphi 0, %s137
    %s159 = sphi 0, %s161
    %s162 = sphi 0, %s159
    %s163 = sphi 0, %s162
    %s179 = sphi 0, %s163
  $region4: #{decoder_block_forward.6} parent=0 // loop_header_branch
    %16 = sbr.rel (%p14) target = $region8
  $region5: #{decoder_block_forward.6} parent=0 // loop_body
    %s18 = ssub.s32 %s13, 1
    %s19 = ssub.s32 %s13, 2
    %s20 = sadd.s32 %s13, 1
    %s21 = ssub.s32 %s13, %s20
    %p22 = scmp.eq.s32.totalorder %s21, 0
    %s24 = sadd.s32 %s23, 1
    %s25 = scalar_select %p22, %s23, %s24
    %p28 = pneg %p22
    %p29 = scmp.eq.s32.totalorder %s13, 1
    %p30 = por %p28, %p29
    %p31 = scmp.ne.s32.totalorder %s23, %s26
    %p32 = scmp.eq.s32.totalorder %s13, 0
    %p33 = por %p31, %p32
    %p34 = scmp.ne.s32.totalorder %s23, %s26
    %p35 = scmp.eq.s32.totalorder %s18, 1
    %p36 = por %p34, %p35
    %p37 = scmp.ne.s32.totalorder %s26, %s27
    %p38 = scmp.eq.s32.totalorder %s18, 0
    %p39 = por %p37, %p38
    %p40 = scmp.ne.s32.totalorder %s26, %s27
    %p41 = scmp.eq.s32.totalorder %s19, 1
    %p42 = por %p40, %p41
    %p44 = scmp.ne.s32.totalorder %s27, %s43
    %p45 = scmp.eq.s32.totalorder %s19, 0
    %p46 = por %p44, %p45
    %s48 = sadd.s32 %s47, 1
    %p51 = scmp.eq.s32.totalorder %s13, 1
    %p52 = scmp.ne.s32.totalorder %s47, %s49
    %p53 = scmp.eq.s32.totalorder %s13, 0
    %p54 = por %p52, %p53
    %p55 = scmp.ne.s32.totalorder %s47, %s49
    %p56 = scmp.eq.s32.totalorder %s18, 1
    %p57 = por %p55, %p56
    %p58 = scmp.ne.s32.totalorder %s49, %s50
    %p59 = scmp.eq.s32.totalorder %s18, 0
    %p60 = por %p58, %p59
    %p61 = scmp.ne.s32.totalorder %s49, %s50
    %p62 = scmp.eq.s32.totalorder %s19, 1
    %p63 = por %p61, %p62
    %p65 = scmp.ne.s32.totalorder %s50, %s64
    %p66 = scmp.eq.s32.totalorder %s19, 0
    %p67 = por %p65, %p66
    %s69 = sadd.s32 %s68, 1
    %p72 = scmp.eq.s32.totalorder %s13, 1
    %p73 = scmp.ne.s32.totalorder %s68, %s70
    %p74 = scmp.eq.s32.totalorder %s13, 0
    %p75 = por %p73, %p74
    %p76 = scmp.ne.s32.totalorder %s68, %s70
    %p77 = scmp.eq.s32.totalorder %s18, 1
    %p78 = por %p76, %p77
    %p79 = scmp.ne.s32.totalorder %s70, %s71
    %p80 = scmp.eq.s32.totalorder %s18, 0
    %p81 = por %p79, %p80
    %p82 = scmp.ne.s32.totalorder %s70, %s71
    %p83 = scmp.eq.s32.totalorder %s19, 1
    %p84 = por %p82, %p83
    %p86 = scmp.ne.s32.totalorder %s71, %s85
    %p87 = scmp.eq.s32.totalorder %s19, 0
    %p88 = por %p86, %p87
    %s90 = sadd.s32 %s89, 1
    %p93 = scmp.eq.s32.totalorder %s13, 1
    %p94 = scmp.ne.s32.totalorder %s89, %s91
    %p95 = scmp.eq.s32.totalorder %s13, 0
    %p96 = por %p94, %p95
    %p97 = scmp.ne.s32.totalorder %s89, %s91
    %p98 = scmp.eq.s32.totalorder %s18, 1
    %p99 = por %p97, %p98
    %p100 = scmp.ne.s32.totalorder %s91, %s92
    %p101 = scmp.eq.s32.totalorder %s18, 0
    %p102 = por %p100, %p101
    %p103 = scmp.ne.s32.totalorder %s91, %s92
    %p104 = scmp.eq.s32.totalorder %s19, 1
    %p105 = por %p103, %p104
    %p107 = scmp.ne.s32.totalorder %s92, %s106
    %p108 = scmp.eq.s32.totalorder %s19, 0
    %p109 = por %p107, %p108
    %s111 = sadd.s32 %s110, 1
    %p114 = scmp.eq.s32.totalorder %s13, 1
    %p115 = scmp.ne.s32.totalorder %s110, %s112
    %p116 = scmp.eq.s32.totalorder %s13, 0
    %p117 = por %p115, %p116
    %p118 = scmp.ne.s32.totalorder %s110, %s112
    %p119 = scmp.eq.s32.totalorder %s18, 1
    %p120 = por %p118, %p119
    %p121 = scmp.ne.s32.totalorder %s112, %s113
    %p122 = scmp.eq.s32.totalorder %s18, 0
    %p123 = por %p121, %p122
    %p124 = scmp.ne.s32.totalorder %s112, %s113
    %p125 = scmp.eq.s32.totalorder %s19, 1
    %p126 = por %p124, %p125
    %p128 = scmp.ne.s32.totalorder %s113, %s127
    %p129 = scmp.eq.s32.totalorder %s19, 0
    %p130 = por %p128, %p129
    %s131 = ssub.s32 %s13, %s20
    %p132 = scmp.eq.s32.totalorder %s131, 0
    %s134 = sadd.s32 %s133, 1
    %s135 = scalar_select %p132, %s133, %s134
    %p138 = pneg %p132
    %p139 = scmp.eq.s32.totalorder %s13, 1
    %p140 = por %p138, %p139
    %p141 = scmp.ne.s32.totalorder %s133, %s136
    %p142 = scmp.eq.s32.totalorder %s13, 0
    %p143 = por %p141, %p142
    %p144 = scmp.ne.s32.totalorder %s133, %s136
    %p145 = scmp.eq.s32.totalorder %s18, 1
    %p146 = por %p144, %p145
    %p147 = scmp.ne.s32.totalorder %s136, %s137
    %p148 = scmp.eq.s32.totalorder %s18, 0
    %p149 = por %p147, %p148
    %p150 = scmp.ne.s32.totalorder %s136, %s137
    %p151 = scmp.eq.s32.totalorder %s19, 1
    %p152 = por %p150, %p151
    %p154 = scmp.ne.s32.totalorder %s137, %s153
    %p155 = scmp.eq.s32.totalorder %s19, 0
    %p156 = por %p154, %p155
    %s157 = ssub.s32 %s13, %s20
    %p158 = scmp.eq.s32.totalorder %s157, 0
    %s160 = sadd.s32 %s159, 1
    %s161 = scalar_select %p158, %s159, %s160
    %p164 = pneg %p158
    %p165 = scmp.eq.s32.totalorder %s13, 1
    %p166 = por %p164, %p165
    %p167 = scmp.ne.s32.totalorder %s159, %s162
    %p168 = scmp.eq.s32.totalorder %s13, 0
    %p169 = por %p167, %p168
    %p170 = scmp.ne.s32.totalorder %s159, %s162
    %p171 = scmp.eq.s32.totalorder %s18, 1
    %p172 = por %p170, %p171
    %p173 = scmp.ne.s32.totalorder %s162, %s163
    %p174 = scmp.eq.s32.totalorder %s18, 0
    %p175 = por %p173, %p174
    %p176 = scmp.ne.s32.totalorder %s162, %s163
    %p177 = scmp.eq.s32.totalorder %s19, 1
    %p178 = por %p176, %p177
    %p180 = scmp.ne.s32.totalorder %s163, %s179
    %p181 = scmp.eq.s32.totalorder %s19, 0
    %p182 = por %p180, %p181
    %p183 = scmp.le.s32.totalorder 1, %s13
    %p184 = scmp.lt.s32.totalorder %s13, 3
    %p185 = pnand %p183, %p184
    %p186 = pneg %p185
    // Predicated region
    $region9: #{decoder_block_forward.6} parent=5 // pred_check
      _
    $region10: #{decoder_block_forward.6} parent=5 // pred_check_branch
      %188 = sbr.rel (%p185) target = $region12
    $region11: #{decoder_block_forward.6} parent=5 // pred_region
      %s189 = ssub.s32 %s13, 1
      // Predicated region
      $region13: #{decoder_block_forward.6} parent=11 // pred_check
        %p190 = pneg %p60
      $region14: #{decoder_block_forward.6} parent=11 // pred_check_branch
        %192 = sbr.rel (%p190) target = $region16
      $region15: #{decoder_block_forward.6} parent=11 // pred_region
        _
      $region16: #{decoder_block_forward.6} parent=11 // pred_fallthru
        _
      // Predicated region
      $region17: #{decoder_block_forward.6} parent=11 // pred_check
        %p193 = pneg %p81
      $region18: #{decoder_block_forward.6} parent=11 // pred_check_branch
        %195 = sbr.rel (%p193) target = $region20
      $region19: #{decoder_block_forward.6} parent=11 // pred_region
        _
      $region20: #{decoder_block_forward.6} parent=11 // pred_fallthru
        _
      // Predicated region
      $region21: #{decoder_block_forward.6} parent=11 // pred_check
        %p196 = pneg %p102
      $region22: #{decoder_block_forward.6} parent=11 // pred_check_branch
        %198 = sbr.rel (%p196) target = $region24
      $region23: #{decoder_block_forward.6} parent=11 // pred_region
        _
      $region24: #{decoder_block_forward.6} parent=11 // pred_fallthru
        _
      // Predicated region
      $region25: #{decoder_block_forward.6} parent=11 // pred_check
        %p199 = pneg %p123
      $region26: #{decoder_block_forward.6} parent=11 // pred_check_branch
        %201 = sbr.rel (%p199) target = $region28
      $region27: #{decoder_block_forward.6} parent=11 // pred_region
        _
      $region28: #{decoder_block_forward.6} parent=11 // pred_fallthru
        _
    $region12: #{decoder_block_forward.6} parent=5 // pred_fallthru
      _
    %p202 = scmp.lt.s32.totalorder %s13, 2
    // Predicated region
    $region29: #{decoder_block_forward.6} parent=5 // pred_check
      %p203 = pneg %p202
    $region30: #{decoder_block_forward.6} parent=5 // pred_check_branch
      %205 = sbr.rel (%p203) target = $region32
    $region31: #{decoder_block_forward.6} parent=5 // pred_region
      // Predicated region
      $region33: #{decoder_block_forward.6} parent=31 // pred_check
        %p206 = pneg %p33
      $region34: #{decoder_block_forward.6} parent=31 // pred_check_branch
        %208 = sbr.rel (%p206) target = $region36
      $region35: #{decoder_block_forward.6} parent=31 // pred_region
        %p209 = scmp.lt.s32.totalorder %s13, 1
        %s210 = scalar_select %p209, %s13, 1
        %s211 = smul.addr %s210, 8
        %s212 = smul.addr %s211, 4
        %s213 = scalar_lea.vmem %s0, %s212
      $region36: #{decoder_block_forward.6} parent=31 // pred_fallthru
        _
    $region32: #{decoder_block_forward.6} parent=5 // pred_fallthru
      _
    %p214 = scmp.le.s32.totalorder 1, %s13
    %p215 = scmp.lt.s32.totalorder %s13, 3
    %p216 = pnand %p214, %p215
    %p217 = pneg %p216
    // Predicated region
    $region37: #{decoder_block_forward.6} parent=5 // pred_check
      _
    $region38: #{decoder_block_forward.6} parent=5 // pred_check_branch
      %219 = sbr.rel (%p216) target = $region40
    $region39: #{decoder_block_forward.6} parent=5 // pred_region
      %s220 = ssub.s32 %s13, 1
      %p221 = scmp.lt.s32.totalorder %s18, 1
      %s222 = scalar_select %p221, %s18, 1
      %s223 = smul.addr %s222, 8
      %s224 = smul.addr %s223, 4
      %s225 = scalar_lea.vmem %s0, %s224
      %p226 = pneg %p39
      %p227 = pneg %p36
      %p228 = pneg %p60
      %p229 = pneg %p57
      %p230 = pneg %p81
      %p231 = pneg %p78
      %p232 = pneg %p102
      %p233 = pneg %p99
      %p234 = pneg %p123
      %p235 = pneg %p120
      %p236 = pneg %p149
      %p237 = pneg %p146
      %p238 = scmp.lt.s32.totalorder %s18, 1
      %s239 = scalar_select %p238, %s18, 1
      %s240 = smul.addr %s239, 4
      %s241 = smul.addr %s240, 4
      %s242 = scalar_lea.vmem %s5, %s241
      %p243 = pneg %p175
      %p244 = pneg %p172
      %p245 = scmp.lt.s32.totalorder %s18, 1
      %s246 = scalar_select %p245, %s18, 1
      %s247 = smul.addr %s246, 2
      %s248 = scalar_lea.vmem %s6, %s247
      %p249 = scmp.lt.s32.totalorder %s18, 1
      %s250 = scalar_select %p249, %s18, 1
      %s251 = smul.addr %s250, 8
      %s252 = smul.addr %s251, 4
      %s253 = scalar_lea.vmem %s0, %s252
      %p254 = scmp.lt.s32.totalorder %s18, 1
      %s255 = scalar_select %p254, %s18, 1
      %s256 = smul.addr %s255, 4
      %s257 = smul.addr %s256, 4
      %s258 = scalar_lea.vmem %s5, %s257
      %p259 = scmp.lt.s32.totalorder %s18, 1
      %s260 = scalar_select %p259, %s18, 1
      %s261 = smul.addr %s260, 2
      %s262 = scalar_lea.vmem %s6, %s261
      %v264 = vld [vmem:[%s253] sm:$0xff]
      %v265 = vld [vmem:[%s253 + $0x8] sm:$0xff]
      %v266 = vld [vmem:[%s253 + $0x10] sm:$0xff]
      %v267 = vld [vmem:[%s253 + $0x18] sm:$0xff]
      %v268 = vunpack.c.l.bf16 %v264
      %v269 = vunpack.c.h.bf16 %v264
      %v270 = vunpack.c.l.bf16 %v265
      %v271 = vunpack.c.h.bf16 %v265
      %v272 = vunpack.c.l.bf16 %v266
      %v273 = vunpack.c.h.bf16 %v266
      %v274 = vunpack.c.l.bf16 %v267
      %v275 = vunpack.c.h.bf16 %v267
      %v276 = vld [vmem:[%s1] sm:$0x3]
      %v278 = vlaneseq
      %v279 = vshrl.u32 %v278, 7
      %v280 = vsub.s32 0, %v279
      %v281 = vrot.slane %v276, %v280
      %v282 = vlaneseq
      %v283 = vshrl.u32 %v282, 7
      %v284 = vsub.s32 1, %v283
      %v285 = vrot.slane %v276, %v284
      %v288 = vmul.f32 %v268, %v281
      %v289 = vmul.f32 %v269, %v285
      %v290 = vmul.f32 %v270, %v281
      %v291 = vmul.f32 %v271, %v285
      %v292 = vmul.f32 %v272, %v281
      %v293 = vmul.f32 %v273, %v285
      %v294 = vmul.f32 %v274, %v281
      %v295 = vmul.f32 %v275, %v285
      %v296 = vld [vmem:[%s2] sm:$0x3]
      %v298 = vlaneseq
      %v299 = vshrl.u32 %v298, 7
      %v300 = vsub.s32 0, %v299
      %v301 = vrot.slane %v296, %v300
      %v302 = vlaneseq
      %v303 = vshrl.u32 %v302, 7
      %v304 = vsub.s32 1, %v303
      %v305 = vrot.slane %v296, %v304
      %v308 = vadd.f32 %v288, %v301
      %v309 = vadd.f32 %v289, %v305
      %v310 = vadd.f32 %v290, %v301
      %v311 = vadd.f32 %v291, %v305
      %v312 = vadd.f32 %v292, %v301
      %v313 = vadd.f32 %v293, %v305
      %v314 = vadd.f32 %v294, %v301
      %v315 = vadd.f32 %v295, %v305
      %v316 = vpack.c.bf16 %v310, %v308
      %v317 = vpack.c.bf16 %v311, %v309
      %v318 = vpack.c.bf16 %v314, %v312
      %v319 = vpack.c.bf16 %v315, %v313
      %vm320 = vsmask.f32 256
      %v322 = vshrl.u32 %v316, 16
      %v324 = vrot.slane %v322, 7
      %v325 = vshll.u32 %v316, 16
      %v327 = vor.u32 %v324, %v325
      %v329 = vshrl.u32 %v317, 16
      %v331 = vrot.slane %v329, 7
      %v332 = vshll.u32 %v317, 16
      %v334 = vor.u32 %v331, %v332
      %v336 = vshrl.u32 %v318, 16
      %v338 = vrot.slane %v336, 7
      %v339 = vshll.u32 %v318, 16
      %v341 = vor.u32 %v338, %v339
      %v342 = vsel %vm320, %v324, %v341
      %v344 = vshrl.u32 %v319, 16
      %v346 = vrot.slane %v344, 7
      %v347 = vshll.u32 %v319, 16
      %v349 = vor.u32 %v346, %v347
      %v350 = vsel %vm320, %v331, %v349
      %vm355 = vcmask 1040384
      %vm356 = vmand %vm355, %vm320
      %v357 = vsel %vm356, 0, %v327
      %v358 = vsel %vm356, 0, %v334
      %vm359 = vsmask.f32 7424
      %v360 = vrot.slane %v325, 1
      %v361 = vor.u32 %v322, %v360
      %v362 = vrot.slane %v339, 1
      %v363 = vsel %vm359, %v361, %v362
      %v364 = vrot.slane %v332, 1
      %v365 = vor.u32 %v329, %v364
      %v366 = vrot.slane %v347, 1
      %v367 = vsel %vm359, %v365, %v366
      %v368 = vor.u32 %v336, %v362
      %v369 = vor.u32 %v344, %v366
      %vm374 = vcmask 1047552
      %vm375 = vmand %vm374, %vm359
      %v376 = vsel %vm375, %v368, 0
      %v377 = vsel %vm375, %v369, 0
      %v378 = vld [vmem:[%s3] sm:$0xf]
      %v379 = vld [vmem:[%s3 + $0x4] sm:$0xf]
      %v380 = vld [vmem:[%s3 + $0x8] sm:$0xf]
      %v381 = vld [vmem:[%s3 + $0xc] sm:$0xf]
      %v382 = vld [vmem:[%s3 + $0x10] sm:$0xf]
      %v383 = vld [vmem:[%s3 + $0x14] sm:$0xf]
      %v384 = vld [vmem:[%s3 + $0x18] sm:$0xf]
      %v385 = vld [vmem:[%s3 + $0x1c] sm:$0xf]
      %v386 = vld [vmem:[%s3 + $0x20] sm:$0xf]
      %v387 = vld [vmem:[%s3 + $0x24] sm:$0xf]
      %v388 = vld [vmem:[%s3 + $0x28] sm:$0xf]
      %v389 = vld [vmem:[%s3 + $0x2c] sm:$0xf]
      %v390 = vld [vmem:[%s3 + $0x30] sm:$0xf]
      %v391 = vld [vmem:[%s3 + $0x34] sm:$0xf]
      %v392 = vld [vmem:[%s3 + $0x38] sm:$0xf]
      %v393 = vld [vmem:[%s3 + $0x3c] sm:$0xf]
      %v394 = vld [vmem:[%s3 + $0x40] sm:$0xf]
      %v395 = vld [vmem:[%s3 + $0x44] sm:$0xf]
      %v396 = vld [vmem:[%s3 + $0x48] sm:$0xf]
      %v397 = vld [vmem:[%s3 + $0x4c] sm:$0xf]
      %v398 = vld [vmem:[%s3 + $0x50] sm:$0xf]
      %v399 = vld [vmem:[%s3 + $0x54] sm:$0xf]
      %v400 = vld [vmem:[%s3 + $0x58] sm:$0xf]
      %v401 = vld [vmem:[%s3 + $0x5c] sm:$0xf]
      %v402 = vld [vmem:[%s3 + $0x60] sm:$0xf]
      %v403 = vld [vmem:[%s3 + $0x64] sm:$0xf]
      %v404 = vld [vmem:[%s3 + $0x68] sm:$0xf]
      %v405 = vld [vmem:[%s3 + $0x6c] sm:$0xf]
      %v406 = vld [vmem:[%s3 + $0x70] sm:$0xf]
      %v407 = vld [vmem:[%s3 + $0x74] sm:$0xf]
      %v408 = vld [vmem:[%s3 + $0x78] sm:$0xf]
      %v409 = vld [vmem:[%s3 + $0x7c] sm:$0xf]
      %s410 = scalar_lea.vmem %s3, 128
      %v411 = vld [vmem:[%s410] sm:$0xf]
      %v412 = vld [vmem:[%s410 + $0x4] sm:$0xf]
      %v413 = vld [vmem:[%s410 + $0x8] sm:$0xf]
      %v414 = vld [vmem:[%s410 + $0xc] sm:$0xf]
      %v415 = vld [vmem:[%s410 + $0x10] sm:$0xf]
      %v416 = vld [vmem:[%s410 + $0x14] sm:$0xf]
      %v417 = vld [vmem:[%s410 + $0x18] sm:$0xf]
      %v418 = vld [vmem:[%s410 + $0x1c] sm:$0xf]
      %v419 = vld [vmem:[%s410 + $0x20] sm:$0xf]
      %v420 = vld [vmem:[%s410 + $0x24] sm:$0xf]
      %v421 = vld [vmem:[%s410 + $0x28] sm:$0xf]
      %v422 = vld [vmem:[%s410 + $0x2c] sm:$0xf]
      %v423 = vld [vmem:[%s410 + $0x30] sm:$0xf]
      %v424 = vld [vmem:[%s410 + $0x34] sm:$0xf]
      %v425 = vld [vmem:[%s410 + $0x38] sm:$0xf]
      %v426 = vld [vmem:[%s410 + $0x3c] sm:$0xf]
      %v427 = vld [vmem:[%s410 + $0x40] sm:$0xf]
      %v428 = vld [vmem:[%s410 + $0x44] sm:$0xf]
      %v429 = vld [vmem:[%s410 + $0x48] sm:$0xf]
      %v430 = vld [vmem:[%s410 + $0x4c] sm:$0xf]
      %v431 = vld [vmem:[%s410 + $0x50] sm:$0xf]
      %v432 = vld [vmem:[%s410 + $0x54] sm:$0xf]
      %v433 = vld [vmem:[%s410 + $0x58] sm:$0xf]
      %v434 = vld [vmem:[%s410 + $0x5c] sm:$0xf]
      %v435 = vld [vmem:[%s410 + $0x60] sm:$0xf]
      %v436 = vld [vmem:[%s410 + $0x64] sm:$0xf]
      %v437 = vld [vmem:[%s410 + $0x68] sm:$0xf]
      %v438 = vld [vmem:[%s410 + $0x6c] sm:$0xf]
      %v439 = vld [vmem:[%s410 + $0x70] sm:$0xf]
      %v440 = vld [vmem:[%s410 + $0x74] sm:$0xf]
      %v441 = vld [vmem:[%s410 + $0x78] sm:$0xf]
      %v442 = vld [vmem:[%s410 + $0x7c] sm:$0xf]
      %v475 = vunpack.c.l.b16 %v411
      %v476 = vunpack.c.l.b16 %v412
      %v477 = vunpack.c.l.b16 %v413
      %v478 = vunpack.c.l.b16 %v414
      %v479 = vunpack.c.l.b16 %v415
      %v480 = vunpack.c.l.b16 %v416
      %v481 = vunpack.c.l.b16 %v417
      %v482 = vunpack.c.l.b16 %v418
      %v483 = vunpack.c.l.b16 %v419
      %v484 = vunpack.c.l.b16 %v420
      %v485 = vunpack.c.l.b16 %v421
      %v486 = vunpack.c.l.b16 %v422
      %v487 = vunpack.c.l.b16 %v423
      %v488 = vunpack.c.l.b16 %v424
      %v489 = vunpack.c.l.b16 %v425
      %v490 = vunpack.c.l.b16 %v426
      %v491 = vunpack.c.l.b16 %v427
      %v492 = vunpack.c.l.b16 %v428
      %v493 = vunpack.c.l.b16 %v429
      %v494 = vunpack.c.l.b16 %v430
      %v495 = vunpack.c.l.b16 %v431
      %v496 = vunpack.c.l.b16 %v432
      %v497 = vunpack.c.l.b16 %v433
      %v498 = vunpack.c.l.b16 %v434
      %v499 = vunpack.c.l.b16 %v435
      %v500 = vunpack.c.l.b16 %v436
      %v501 = vunpack.c.l.b16 %v437
      %v502 = vunpack.c.l.b16 %v438
      %v503 = vunpack.c.l.b16 %v439
      %v504 = vunpack.c.l.b16 %v440
      %v505 = vunpack.c.l.b16 %v441
      %v506 = vunpack.c.l.b16 %v442
      %v507 = vpack.c.b16 %v476, %v475
      %v508 = vpack.c.b16 %v478, %v477
      %v509 = vpack.c.b16 %v480, %v479
      %v510 = vpack.c.b16 %v482, %v481
      %v511 = vpack.c.b16 %v484, %v483
      %v512 = vpack.c.b16 %v486, %v485
      %v513 = vpack.c.b16 %v488, %v487
      %v514 = vpack.c.b16 %v490, %v489
      %v515 = vpack.c.b16 %v492, %v491
      %v516 = vpack.c.b16 %v494, %v493
      %v517 = vpack.c.b16 %v496, %v495
      %v518 = vpack.c.b16 %v498, %v497
      %v519 = vpack.c.b16 %v500, %v499
      %v520 = vpack.c.b16 %v502, %v501
      %v521 = vpack.c.b16 %v504, %v503
      %v522 = vpack.c.b16 %v506, %v505
      %539 = vmatprep.subr.bf16.mxu0 0
      %540 = vmatpush1.bf16.msra.mxu0 %v514
      %541 = vmatprep.subr.bf16.mxu0 0
      %542 = vmatpush1.bf16.msra.mxu0 %v513
      %543 = vmatprep.subr.bf16.mxu0 0
      %544 = vmatpush1.bf16.msra.mxu0 %v512
      %545 = vmatprep.subr.bf16.mxu0 0
      %546 = vmatpush1.bf16.msra.mxu0 %v511
      %547 = vmatprep.subr.bf16.mxu0 0
      %548 = vmatpush1.bf16.msra.mxu0 %v510
      %549 = vmatprep.subr.bf16.mxu0 0
      %550 = vmatpush1.bf16.msra.mxu0 %v509
      %551 = vmatprep.subr.bf16.mxu0 0
      %552 = vmatpush1.bf16.msra.mxu0 %v508
      %553 = vmatprep.subr.bf16.mxu0 0
      %554 = vmatpush1.bf16.msra.mxu0 %v507
      %555 = vmatprep.subr.bf16.mxu0 0
      %556 = vmatpush2.bf16.msra.mxu0 %v522
      %557 = vmatprep.subr.bf16.mxu0 0
      %558 = vmatpush2.bf16.msra.mxu0 %v521
      %559 = vmatprep.subr.bf16.mxu0 0
      %560 = vmatpush2.bf16.msra.mxu0 %v520
      %561 = vmatprep.subr.bf16.mxu0 0
      %562 = vmatpush2.bf16.msra.mxu0 %v519
      %563 = vmatprep.subr.bf16.mxu0 0
      %564 = vmatpush2.bf16.msra.mxu0 %v518
      %565 = vmatprep.subr.bf16.mxu0 0
      %566 = vmatpush2.bf16.msra.mxu0 %v517
      %567 = vmatprep.subr.bf16.mxu0 0
      %568 = vmatpush2.bf16.msra.mxu0 %v516
      %569 = vmatprep.subr.bf16.mxu0 0
      %570 = vmatpush2.bf16.msra.mxu0 %v515
      %571 = vmatprep.mubr.bf16.mxu0 %v317
      %572 = vmatmul.mubr.bf16.gmra.mxu0 %v316
      %v573 = vpop.f32.mrf.mxu0
      %v574 = vadd.f32 0.0, %v573
      %v575 = vpop.f32.mrf.mxu0
      %v576 = vpop.f32.mrf.mxu0
      %v577 = vadd.f32 0.0, %v576
      %v578 = vpop.f32.mrf.mxu0
      %579 = vmatprep.mubr.bf16.mxu0 %v319
      %580 = vmatmul.mubr.bf16.gmra.mxu0 %v318
      %v581 = vpop.f32.mrf.mxu0
      %v582 = vadd.f32 0.0, %v581
      %v583 = vpop.f32.mrf.mxu0
      %v584 = vpop.f32.mrf.mxu0
      %v585 = vadd.f32 0.0, %v584
      %v586 = vpop.f32.mrf.mxu0
      %587 = vdwg.mxu0
      %v620 = vunpack.c.l.b16 %v378
      %v621 = vunpack.c.l.b16 %v379
      %v622 = vunpack.c.l.b16 %v380
      %v623 = vunpack.c.l.b16 %v381
      %v624 = vunpack.c.l.b16 %v382
      %v625 = vunpack.c.l.b16 %v383
      %v626 = vunpack.c.l.b16 %v384
      %v627 = vunpack.c.l.b16 %v385
      %v628 = vunpack.c.l.b16 %v386
      %v629 = vunpack.c.l.b16 %v387
      %v630 = vunpack.c.l.b16 %v388
      %v631 = vunpack.c.l.b16 %v389
      %v632 = vunpack.c.l.b16 %v390
      %v633 = vunpack.c.l.b16 %v391
      %v634 = vunpack.c.l.b16 %v392
      %v635 = vunpack.c.l.b16 %v393
      %v636 = vunpack.c.l.b16 %v394
      %v637 = vunpack.c.l.b16 %v395
      %v638 = vunpack.c.l.b16 %v396
      %v639 = vunpack.c.l.b16 %v397
      %v640 = vunpack.c.l.b16 %v398
      %v641 = vunpack.c.l.b16 %v399
      %v642 = vunpack.c.l.b16 %v400
      %v643 = vunpack.c.l.b16 %v401
      %v644 = vunpack.c.l.b16 %v402
      %v645 = vunpack.c.l.b16 %v403
      %v646 = vunpack.c.l.b16 %v404
      %v647 = vunpack.c.l.b16 %v405
      %v648 = vunpack.c.l.b16 %v406
      %v649 = vunpack.c.l.b16 %v407
      %v650 = vunpack.c.l.b16 %v408
      %v651 = vunpack.c.l.b16 %v409
      %v652 = vpack.c.b16 %v621, %v620
      %v653 = vpack.c.b16 %v623, %v622
      %v654 = vpack.c.b16 %v625, %v624
      %v655 = vpack.c.b16 %v627, %v626
      %v656 = vpack.c.b16 %v629, %v628
      %v657 = vpack.c.b16 %v631, %v630
      %v658 = vpack.c.b16 %v633, %v632
      %v659 = vpack.c.b16 %v635, %v634
      %v660 = vpack.c.b16 %v637, %v636
      %v661 = vpack.c.b16 %v639, %v638
      %v662 = vpack.c.b16 %v641, %v640
      %v663 = vpack.c.b16 %v643, %v642
      %v664 = vpack.c.b16 %v645, %v644
      %v665 = vpack.c.b16 %v647, %v646
      %v666 = vpack.c.b16 %v649, %v648
      %v667 = vpack.c.b16 %v651, %v650
      %684 = vmatprep.subr.bf16.mxu0 0
      %685 = vmatpush1.bf16.msra.mxu0 %v659
      %686 = vmatprep.subr.bf16.mxu0 0
      %687 = vmatpush1.bf16.msra.mxu0 %v658
      %688 = vmatprep.subr.bf16.mxu0 0
      %689 = vmatpush1.bf16.msra.mxu0 %v657
      %690 = vmatprep.subr.bf16.mxu0 0
      %691 = vmatpush1.bf16.msra.mxu0 %v656
      %692 = vmatprep.subr.bf16.mxu0 0
      %693 = vmatpush1.bf16.msra.mxu0 %v655
      %694 = vmatprep.subr.bf16.mxu0 0
      %695 = vmatpush1.bf16.msra.mxu0 %v654
      %696 = vmatprep.subr.bf16.mxu0 0
      %697 = vmatpush1.bf16.msra.mxu0 %v653
      %698 = vmatprep.subr.bf16.mxu0 0
      %699 = vmatpush1.bf16.msra.mxu0 %v652
      %700 = vmatprep.subr.bf16.mxu0 0
      %701 = vmatpush2.bf16.msra.mxu0 %v667
      %702 = vmatprep.subr.bf16.mxu0 0
      %703 = vmatpush2.bf16.msra.mxu0 %v666
      %704 = vmatprep.subr.bf16.mxu0 0
      %705 = vmatpush2.bf16.msra.mxu0 %v665
      %706 = vmatprep.subr.bf16.mxu0 0
      %707 = vmatpush2.bf16.msra.mxu0 %v664
      %708 = vmatprep.subr.bf16.mxu0 0
      %709 = vmatpush2.bf16.msra.mxu0 %v663
      %710 = vmatprep.subr.bf16.mxu0 0
      %711 = vmatpush2.bf16.msra.mxu0 %v662
      %712 = vmatprep.subr.bf16.mxu0 0
      %713 = vmatpush2.bf16.msra.mxu0 %v661
      %714 = vmatprep.subr.bf16.mxu0 0
      %715 = vmatpush2.bf16.msra.mxu0 %v660
      %716 = vmatprep.mubr.bf16.mxu0 %v358
      %717 = vmatmul.mubr.bf16.gmra.mxu0 %v357
      %v718 = vpop.f32.mrf.mxu0
      %v719 = vadd.f32 %v574, %v718
      %v720 = vpop.f32.mrf.mxu0
      %v721 = vpop.f32.mrf.mxu0
      %v722 = vadd.f32 %v577, %v721
      %v723 = vpop.f32.mrf.mxu0
      %724 = vmatprep.mubr.bf16.mxu0 %v350
      %725 = vmatmul.mubr.bf16.gmra.mxu0 %v342
      %v726 = vpop.f32.mrf.mxu0
      %v727 = vadd.f32 %v582, %v726
      %v728 = vpop.f32.mrf.mxu0
      %v729 = vpop.f32.mrf.mxu0
      %v730 = vadd.f32 %v585, %v729
      %v731 = vpop.f32.mrf.mxu0
      %732 = vdwg.mxu0
      %s733 = scalar_lea.vmem %s3, 256
      %v734 = vld [vmem:[%s733] sm:$0xf]
      %v735 = vld [vmem:[%s733 + $0x4] sm:$0xf]
      %v736 = vld [vmem:[%s733 + $0x8] sm:$0xf]
      %v737 = vld [vmem:[%s733 + $0xc] sm:$0xf]
      %v738 = vld [vmem:[%s733 + $0x10] sm:$0xf]
      %v739 = vld [vmem:[%s733 + $0x14] sm:$0xf]
      %v740 = vld [vmem:[%s733 + $0x18] sm:$0xf]
      %v741 = vld [vmem:[%s733 + $0x1c] sm:$0xf]
      %v742 = vld [vmem:[%s733 + $0x20] sm:$0xf]
      %v743 = vld [vmem:[%s733 + $0x24] sm:$0xf]
      %v744 = vld [vmem:[%s733 + $0x28] sm:$0xf]
      %v745 = vld [vmem:[%s733 + $0x2c] sm:$0xf]
      %v746 = vld [vmem:[%s733 + $0x30] sm:$0xf]
      %v747 = vld [vmem:[%s733 + $0x34] sm:$0xf]
      %v748 = vld [vmem:[%s733 + $0x38] sm:$0xf]
      %v749 = vld [vmem:[%s733 + $0x3c] sm:$0xf]
      %v750 = vld [vmem:[%s733 + $0x40] sm:$0xf]
      %v751 = vld [vmem:[%s733 + $0x44] sm:$0xf]
      %v752 = vld [vmem:[%s733 + $0x48] sm:$0xf]
      %v753 = vld [vmem:[%s733 + $0x4c] sm:$0xf]
      %v754 = vld [vmem:[%s733 + $0x50] sm:$0xf]
      %v755 = vld [vmem:[%s733 + $0x54] sm:$0xf]
      %v756 = vld [vmem:[%s733 + $0x58] sm:$0xf]
      %v757 = vld [vmem:[%s733 + $0x5c] sm:$0xf]
      %v758 = vld [vmem:[%s733 + $0x60] sm:$0xf]
      %v759 = vld [vmem:[%s733 + $0x64] sm:$0xf]
      %v760 = vld [vmem:[%s733 + $0x68] sm:$0xf]
      %v761 = vld [vmem:[%s733 + $0x6c] sm:$0xf]
      %v762 = vld [vmem:[%s733 + $0x70] sm:$0xf]
      %v763 = vld [vmem:[%s733 + $0x74] sm:$0xf]
      %v764 = vld [vmem:[%s733 + $0x78] sm:$0xf]
      %v765 = vld [vmem:[%s733 + $0x7c] sm:$0xf]
      %v798 = vunpack.c.l.b16 %v734
      %v799 = vunpack.c.l.b16 %v735
      %v800 = vunpack.c.l.b16 %v736
      %v801 = vunpack.c.l.b16 %v737
      %v802 = vunpack.c.l.b16 %v738
      %v803 = vunpack.c.l.b16 %v739
      %v804 = vunpack.c.l.b16 %v740
      %v805 = vunpack.c.l.b16 %v741
      %v806 = vunpack.c.l.b16 %v742
      %v807 = vunpack.c.l.b16 %v743
      %v808 = vunpack.c.l.b16 %v744
      %v809 = vunpack.c.l.b16 %v745
      %v810 = vunpack.c.l.b16 %v746
      %v811 = vunpack.c.l.b16 %v747
      %v812 = vunpack.c.l.b16 %v748
      %v813 = vunpack.c.l.b16 %v749
      %v814 = vunpack.c.l.b16 %v750
      %v815 = vunpack.c.l.b16 %v751
      %v816 = vunpack.c.l.b16 %v752
      %v817 = vunpack.c.l.b16 %v753
      %v818 = vunpack.c.l.b16 %v754
      %v819 = vunpack.c.l.b16 %v755
      %v820 = vunpack.c.l.b16 %v756
      %v821 = vunpack.c.l.b16 %v757
      %v822 = vunpack.c.l.b16 %v758
      %v823 = vunpack.c.l.b16 %v759
      %v824 = vunpack.c.l.b16 %v760
      %v825 = vunpack.c.l.b16 %v761
      %v826 = vunpack.c.l.b16 %v762
      %v827 = vunpack.c.l.b16 %v763
      %v828 = vunpack.c.l.b16 %v764
      %v829 = vunpack.c.l.b16 %v765
      %v830 = vpack.c.b16 %v799, %v798
      %v831 = vpack.c.b16 %v801, %v800
      %v832 = vpack.c.b16 %v803, %v802
      %v833 = vpack.c.b16 %v805, %v804
      %v834 = vpack.c.b16 %v807, %v806
      %v835 = vpack.c.b16 %v809, %v808
      %v836 = vpack.c.b16 %v811, %v810
      %v837 = vpack.c.b16 %v813, %v812
      %v838 = vpack.c.b16 %v815, %v814
      %v839 = vpack.c.b16 %v817, %v816
      %v840 = vpack.c.b16 %v819, %v818
      %v841 = vpack.c.b16 %v821, %v820
      %v842 = vpack.c.b16 %v823, %v822
      %v843 = vpack.c.b16 %v825, %v824
      %v844 = vpack.c.b16 %v827, %v826
      %v845 = vpack.c.b16 %v829, %v828
      %862 = vmatprep.subr.bf16.mxu0 0
      %863 = vmatpush1.bf16.msra.mxu0 %v837
      %864 = vmatprep.subr.bf16.mxu0 0
      %865 = vmatpush1.bf16.msra.mxu0 %v836
      %866 = vmatprep.subr.bf16.mxu0 0
      %867 = vmatpush1.bf16.msra.mxu0 %v835
      %868 = vmatprep.subr.bf16.mxu0 0
      %869 = vmatpush1.bf16.msra.mxu0 %v834
      %870 = vmatprep.subr.bf16.mxu0 0
      %871 = vmatpush1.bf16.msra.mxu0 %v833
      %872 = vmatprep.subr.bf16.mxu0 0
      %873 = vmatpush1.bf16.msra.mxu0 %v832
      %874 = vmatprep.subr.bf16.mxu0 0
      %875 = vmatpush1.bf16.msra.mxu0 %v831
      %876 = vmatprep.subr.bf16.mxu0 0
      %877 = vmatpush1.bf16.msra.mxu0 %v830
      %878 = vmatprep.subr.bf16.mxu0 0
      %879 = vmatpush2.bf16.msra.mxu0 %v845
      %880 = vmatprep.subr.bf16.mxu0 0
      %881 = vmatpush2.bf16.msra.mxu0 %v844
      %882 = vmatprep.subr.bf16.mxu0 0
      %883 = vmatpush2.bf16.msra.mxu0 %v843
      %884 = vmatprep.subr.bf16.mxu0 0
      %885 = vmatpush2.bf16.msra.mxu0 %v842
      %886 = vmatprep.subr.bf16.mxu0 0
      %887 = vmatpush2.bf16.msra.mxu0 %v841
      %888 = vmatprep.subr.bf16.mxu0 0
      %889 = vmatpush2.bf16.msra.mxu0 %v840
      %890 = vmatprep.subr.bf16.mxu0 0
      %891 = vmatpush2.bf16.msra.mxu0 %v839
      %892 = vmatprep.subr.bf16.mxu0 0
      %893 = vmatpush2.bf16.msra.mxu0 %v838
      %894 = vmatprep.mubr.bf16.mxu0 %v367
      %895 = vmatmul.mubr.bf16.gmra.mxu0 %v363
      %v896 = vpop.f32.mrf.mxu0
      %v897 = vadd.f32 0.0, %v896
      %v898 = vpop.f32.mrf.mxu0
      %v899 = vpop.f32.mrf.mxu0
      %v900 = vadd.f32 0.0, %v899
      %v901 = vpop.f32.mrf.mxu0
      %902 = vmatprep.mubr.bf16.mxu0 %v377
      %903 = vmatmul.mubr.bf16.gmra.mxu0 %v376
      %v904 = vpop.f32.mrf.mxu0
      %v905 = vadd.f32 0.0, %v904
      %v906 = vpop.f32.mrf.mxu0
      %v907 = vpop.f32.mrf.mxu0
      %v908 = vadd.f32 0.0, %v907
      %v909 = vpop.f32.mrf.mxu0
      %910 = vdwg.mxu0
      %v911 = vadd.f32 %v719, %v897
      %v912 = vadd.f32 %v722, %v900
      %v913 = vadd.f32 %v727, %v905
      %v914 = vadd.f32 %v730, %v908
      %v915 = vld [vmem:[%s4] sm:$0x1]
      %v917 = vlaneseq
      %v918 = vshrl.u32 %v917, 7
      %v919 = vsub.s32 0, %v918
      %v920 = vrot.slane %v915, %v919
      %v922 = vadd.f32 %v911, %v920
      %v923 = vadd.f32 %v912, %v920
      %v924 = vadd.f32 %v913, %v920
      %v925 = vadd.f32 %v914, %v920
      %v926 = vpack.c.bf16 %v923, %v922
      %v927 = vpack.c.bf16 %v925, %v924
      %v930 = vunpack.c.l.b16 %v926
      %v931 = vunpack.c.h.b16 %v926
      %v932 = vunpack.c.l.b16 %v927
      %v933 = vunpack.c.h.b16 %v927
      %v934 = vpack.c.b16 %v930, %v930
      %v935 = vpack.c.b16 %v931, %v931
      %v936 = vpack.c.b16 %v932, %v932
      %v937 = vpack.c.b16 %v933, %v933
      %942 = vst [vmem:[%s258] sm:$0xf] %v934
      %943 = vst [vmem:[%s258 + $0x4] sm:$0xf] %v935
      %944 = vst [vmem:[%s258 + $0x8] sm:$0xf] %v936
      %945 = vst [vmem:[%s258 + $0xc] sm:$0xf] %v937
      %v946 = vadd.f32 %v922, %v923
      %v947 = vadd.f32 %v946, %v924
      %v948 = vadd.f32 %v947, %v925
      %v949 = vrot.slane %v948, 4
      %v950 = vadd.f32 %v948, %v949
      %v951 = vrot.slane %v950, 2
      %v952 = vadd.f32 %v950, %v951
      %v953 = vrot.slane %v952, 1
      %v954 = vadd.f32 %v952, %v953
      %v955 = vmul.f32 %v922, %v922
      %v956 = vmul.f32 %v923, %v923
      %v957 = vmul.f32 %v924, %v924
      %v958 = vmul.f32 %v925, %v925
      %v959 = vadd.f32 %v955, %v956
      %v960 = vadd.f32 %v959, %v957
      %v961 = vadd.f32 %v960, %v958
      %v962 = vrot.slane %v961, 4
      %v963 = vadd.f32 %v961, %v962
      %v964 = vrot.slane %v963, 2
      %v965 = vadd.f32 %v963, %v964
      %v966 = vrot.slane %v965, 1
      %v967 = vadd.f32 %v965, %v966
      %vm968 = vcmask 1040384
      %v969 = vsel %vm968, %v954, %v967
      %970 = vst [vmem:[%s262] sm:$0x3] %v969
      %p971 = scmp.lt.s32.totalorder %s18, 1
      %s972 = scalar_select %p971, %s18, 1
      %s973 = smul.addr %s972, 4
      %s974 = smul.addr %s973, 4
      %s975 = scalar_lea.vmem %s5, %s974
      %p976 = scmp.lt.s32.totalorder %s18, 1
      %s977 = scalar_select %p976, %s18, 1
      %s978 = smul.addr %s977, 2
      %s979 = scalar_lea.vmem %s6, %s978
      // Predicated region
      $region41: #{decoder_block_forward.6} parent=39 // pred_check
        %p980 = pneg %p146
      $region42: #{decoder_block_forward.6} parent=39 // pred_check_branch
        %982 = sbr.rel (%p980) target = $region44
      $region43: #{decoder_block_forward.6} parent=39 // pred_region
        _
      $region44: #{decoder_block_forward.6} parent=39 // pred_fallthru
        _
      // Predicated region
      $region45: #{decoder_block_forward.6} parent=39 // pred_check
        %p983 = pneg %p172
      $region46: #{decoder_block_forward.6} parent=39 // pred_check_branch
        %985 = sbr.rel (%p983) target = $region48
      $region47: #{decoder_block_forward.6} parent=39 // pred_region
        _
      $region48: #{decoder_block_forward.6} parent=39 // pred_fallthru
        _
    $region40: #{decoder_block_forward.6} parent=5 // pred_fallthru
      _
    %p986 = scmp.le.s32.totalorder 2, %s13
    // Predicated region
    $region49: #{decoder_block_forward.6} parent=5 // pred_check
      %p987 = pneg %p986
    $region50: #{decoder_block_forward.6} parent=5 // pred_check_branch
      %989 = sbr.rel (%p987) target = $region52
    $region51: #{decoder_block_forward.6} parent=5 // pred_region
      %s990 = ssub.s32 %s13, 2
      // Predicated region
      $region53: #{decoder_block_forward.6} parent=51 // pred_check
        %p991 = pneg %p152
      $region54: #{decoder_block_forward.6} parent=51 // pred_check_branch
        %993 = sbr.rel (%p991) target = $region56
      $region55: #{decoder_block_forward.6} parent=51 // pred_region
        %p994 = scmp.lt.s32.totalorder %s19, 1
        %s995 = scalar_select %p994, %s19, 1
        %s996 = smul.addr %s995, 4
        %s997 = smul.addr %s996, 4
        %s998 = scalar_lea.vmem %s5, %s997
      $region56: #{decoder_block_forward.6} parent=51 // pred_fallthru
        _
      // Predicated region
      $region57: #{decoder_block_forward.6} parent=51 // pred_check
        %p999 = pneg %p178
      $region58: #{decoder_block_forward.6} parent=51 // pred_check_branch
        %1001 = sbr.rel (%p999) target = $region60
      $region59: #{decoder_block_forward.6} parent=51 // pred_region
        %p1002 = scmp.lt.s32.totalorder %s19, 1
        %s1003 = scalar_select %p1002, %s19, 1
        %s1004 = smul.addr %s1003, 2
        %s1005 = scalar_lea.vmem %s6, %s1004
      $region60: #{decoder_block_forward.6} parent=51 // pred_fallthru
        _
    $region52: #{decoder_block_forward.6} parent=5 // pred_fallthru
      _
  $region6: #{decoder_block_forward.6} parent=0 // loop_footer
    %s17 = sadd.s32 1, %s13
  $region7: #{decoder_block_forward.6} parent=0 // loop_footer_branch
    %12 = sbr.rel target = $region3
  $region8: #{decoder_block_forward.6} parent=0 // loop_exit
    _

// kernel: decoder_block_forward.5
$region0: #{decoder_block_forward.5}
  #allocation0 [shape = 'u32[]', space=smem, size = 0x4, offset = 0x4, fixed_abs, tag = 'smem constant byte address 0x4 - core index']
  #allocation1 [shape = 'u32[144,128]{1,0:T(1,128)}', space=vmem, size = 0x12000, scoped, tag = 'internal scratch']
  %s0 = inlined_call_operand.vmem [shape: f32[32,128], index: 0, kind: input, shape index: {}]
  %s1 = inlined_call_operand.vmem [shape: bf16[2,128,256], index: 1, kind: input, shape index: {}]
  %s2 = inlined_call_operand.vmem [shape: f32[1,256], index: 2, kind: input, shape index: {}]
  %s3 = inlined_call_operand.vmem [shape: bf16[32,2,256], index: 3, kind: output, shape index: {}]
  %s4 = sld [smem:[#allocation0]]
  $region22: #{decoder_block_forward.5} parent=0
    _
  %s6 = ssub.s32 1, %s4
  %s7 = scalar_select 0, %s6, %s4
  // Predicated region
  $region2: #{decoder_block_forward.5} parent=0 // pred_check
    _
  $region3: #{decoder_block_forward.5} parent=0 // pred_check_branch
    %9 = sbr.rel (0) target = $region5
  $region4: #{decoder_block_forward.5} parent=0 // pred_region
    _
  $region5: #{decoder_block_forward.5} parent=0 // pred_fallthru
    _
  // Predicated region
  $region6: #{decoder_block_forward.5} parent=0 // pred_check
    _
  $region7: #{decoder_block_forward.5} parent=0 // pred_check_branch
    %11 = sbr.rel (0) target = $region9
  $region8: #{decoder_block_forward.5} parent=0 // pred_region
    _
  $region9: #{decoder_block_forward.5} parent=0 // pred_fallthru
    _
  // Predicated region
  $region10: #{decoder_block_forward.5} parent=0 // pred_check
    _
  $region11: #{decoder_block_forward.5} parent=0 // pred_check_branch
    %13 = sbr.rel (0) target = $region13
  $region12: #{decoder_block_forward.5} parent=0 // pred_region
    _
  $region13: #{decoder_block_forward.5} parent=0 // pred_fallthru
    _
  %v15 = vld [vmem:[%s0] sm:$0xff]
  %v16 = vld [vmem:[%s0 + $0x8] sm:$0xff]
  %v17 = vld [vmem:[%s0 + $0x10] sm:$0xff]
  %v18 = vld [vmem:[%s0 + $0x18] sm:$0xff]
  %v19 = vpack.c.bf16 %v16, %v15
  %v20 = vpack.c.bf16 %v18, %v17
  %v21 = vld [vmem:[%s2] sm:$0x3]
  %v22 = vld [vmem:[%s1] sm:$0xff]
  %v23 = vld [vmem:[%s1 + $0x8] sm:$0xff]
  %v24 = vld [vmem:[%s1 + $0x10] sm:$0xff]
  %v25 = vld [vmem:[%s1 + $0x18] sm:$0xff]
  %v26 = vld [vmem:[%s1 + $0x20] sm:$0xff]
  %v27 = vld [vmem:[%s1 + $0x28] sm:$0xff]
  %v28 = vld [vmem:[%s1 + $0x30] sm:$0xff]
  %v29 = vld [vmem:[%s1 + $0x38] sm:$0xff]
  %v30 = vld [vmem:[%s1 + $0x40] sm:$0xff]
  %v31 = vld [vmem:[%s1 + $0x48] sm:$0xff]
  %v32 = vld [vmem:[%s1 + $0x50] sm:$0xff]
  %v33 = vld [vmem:[%s1 + $0x58] sm:$0xff]
  %v34 = vld [vmem:[%s1 + $0x60] sm:$0xff]
  %v35 = vld [vmem:[%s1 + $0x68] sm:$0xff]
  %v36 = vld [vmem:[%s1 + $0x70] sm:$0xff]
  %v37 = vld [vmem:[%s1 + $0x78] sm:$0xff]
  %v39 = vlaneseq
  %v40 = vshrl.u32 %v39, 7
  %v41 = vsub.s32 0, %v40
  %v42 = vrot.slane %v21, %v41
  %v43 = vlaneseq
  %v44 = vshrl.u32 %v43, 7
  %v45 = vsub.s32 1, %v44
  %v46 = vrot.slane %v21, %v45
  %v65 = vunpack.c.l.b16 %v22
  %v66 = vunpack.c.h.b16 %v22
  %v67 = vunpack.c.l.b16 %v23
  %v68 = vunpack.c.h.b16 %v23
  %v69 = vunpack.c.l.b16 %v24
  %v70 = vunpack.c.h.b16 %v24
  %v71 = vunpack.c.l.b16 %v25
  %v72 = vunpack.c.h.b16 %v25
  %v73 = vunpack.c.l.b16 %v26
  %v74 = vunpack.c.h.b16 %v26
  %v75 = vunpack.c.l.b16 %v27
  %v76 = vunpack.c.h.b16 %v27
  %v77 = vunpack.c.l.b16 %v28
  %v78 = vunpack.c.h.b16 %v28
  %v79 = vunpack.c.l.b16 %v29
  %v80 = vunpack.c.h.b16 %v29
  %v81 = vunpack.c.l.b16 %v30
  %v82 = vunpack.c.h.b16 %v30
  %v83 = vunpack.c.l.b16 %v31
  %v84 = vunpack.c.h.b16 %v31
  %v85 = vunpack.c.l.b16 %v32
  %v86 = vunpack.c.h.b16 %v32
  %v87 = vunpack.c.l.b16 %v33
  %v88 = vunpack.c.h.b16 %v33
  %v89 = vunpack.c.l.b16 %v34
  %v90 = vunpack.c.h.b16 %v34
  %v91 = vunpack.c.l.b16 %v35
  %v92 = vunpack.c.h.b16 %v35
  %v93 = vunpack.c.l.b16 %v36
  %v94 = vunpack.c.h.b16 %v36
  %v95 = vunpack.c.l.b16 %v37
  %v96 = vunpack.c.h.b16 %v37
  %v97 = vpack.c.b16 %v67, %v65
  %v98 = vpack.c.b16 %v68, %v66
  %v99 = vpack.c.b16 %v71, %v69
  %v100 = vpack.c.b16 %v72, %v70
  %v101 = vpack.c.b16 %v75, %v73
  %v102 = vpack.c.b16 %v76, %v74
  %v103 = vpack.c.b16 %v79, %v77
  %v104 = vpack.c.b16 %v80, %v78
  %v105 = vpack.c.b16 %v83, %v81
  %v106 = vpack.c.b16 %v84, %v82
  %v107 = vpack.c.b16 %v87, %v85
  %v108 = vpack.c.b16 %v88, %v86
  %v109 = vpack.c.b16 %v91, %v89
  %v110 = vpack.c.b16 %v92, %v90
  %v111 = vpack.c.b16 %v95, %v93
  %v112 = vpack.c.b16 %v96, %v94
  %129 = vmatprep.subr.bf16.mxu0 %v112
  %130 = vmatpush1.bf16.msra.mxu0 %v111
  %131 = vmatprep.subr.bf16.mxu0 %v110
  %132 = vmatpush1.bf16.msra.mxu0 %v109
  %133 = vmatprep.subr.bf16.mxu0 %v108
  %134 = vmatpush1.bf16.msra.mxu0 %v107
  %135 = vmatprep.subr.bf16.mxu0 %v106
  %136 = vmatpush1.bf16.msra.mxu0 %v105
  %137 = vmatprep.subr.bf16.mxu0 %v104
  %138 = vmatpush1.bf16.msra.mxu0 %v103
  %139 = vmatprep.subr.bf16.mxu0 %v102
  %140 = vmatpush1.bf16.msra.mxu0 %v101
  %141 = vmatprep.subr.bf16.mxu0 %v100
  %142 = vmatpush1.bf16.msra.mxu0 %v99
  %143 = vmatprep.subr.bf16.mxu0 %v98
  %144 = vmatpush1.bf16.msra.mxu0 %v97
  %145 = vmatprep.subr.bf16.mxu0 0
  %146 = vmatpush2.bf16.msra.mxu0 0
  %147 = vmatprep.subr.bf16.mxu0 0
  %148 = vmatpush2.bf16.msra.mxu0 0
  %149 = vmatprep.subr.bf16.mxu0 0
  %150 = vmatpush2.bf16.msra.mxu0 0
  %151 = vmatprep.subr.bf16.mxu0 0
  %152 = vmatpush2.bf16.msra.mxu0 0
  %153 = vmatprep.subr.bf16.mxu0 0
  %154 = vmatpush2.bf16.msra.mxu0 0
  %155 = vmatprep.subr.bf16.mxu0 0
  %156 = vmatpush2.bf16.msra.mxu0 0
  %157 = vmatprep.subr.bf16.mxu0 0
  %158 = vmatpush2.bf16.msra.mxu0 0
  %159 = vmatprep.subr.bf16.mxu0 0
  %160 = vmatpush2.bf16.msra.mxu0 0
  %161 = vmatprep.mubr.bf16.mxu0 0
  %162 = vmatmul.mubr.bf16.gmra.mxu0 %v19
  %v163 = vpop.f32.mrf.mxu0
  %v164 = vadd.f32 %v42, %v163
  %v165 = vpop.f32.mrf.mxu0
  %v166 = vadd.f32 %v46, %v165
  %v167 = vpop.f32.mrf.mxu0
  %v168 = vadd.f32 %v42, %v167
  %v169 = vpop.f32.mrf.mxu0
  %v170 = vadd.f32 %v46, %v169
  %171 = vmatprep.mubr.bf16.mxu0 0
  %172 = vmatmul.mubr.bf16.gmra.mxu0 %v20
  %v173 = vpop.f32.mrf.mxu0
  %v174 = vadd.f32 %v42, %v173
  %v175 = vpop.f32.mrf.mxu0
  %v176 = vadd.f32 %v46, %v175
  %v177 = vpop.f32.mrf.mxu0
  %v178 = vadd.f32 %v42, %v177
  %v179 = vpop.f32.mrf.mxu0
  %v180 = vadd.f32 %v46, %v179
  %181 = vdwg.mxu0
  %v182 = vpack.c.bf16 %v168, %v164
  %v183 = vpack.c.bf16 %v170, %v166
  %v184 = vpack.c.bf16 %v178, %v174
  %v185 = vpack.c.bf16 %v180, %v176
  %v190 = vcombine.low %v182, %v183
  %v191 = vcombine.high %v182, %v183
  %v193 = vunpack.c.l.s4 1966171168
  %v194 = vunpack.c.0.s8 %v193
  %v195 = vlaneseq
  %v196 = vshrl.u32 %v195, 7
  %v197 = vsub.s32 %v194, %v196
  %v198 = vrot.slane %v190, %v197
  %v200 = vunpack.c.l.s4 1966171168
  %v201 = vunpack.c.0.s8 %v200
  %v202 = vlaneseq
  %v203 = vshrl.u32 %v202, 7
  %v204 = vsub.s32 %v201, %v203
  %v205 = vrot.slane %v191, %v204
  %v206 = vcombine.high %v198, %v198
  %v207 = vcombine.high %v205, %v205
  %v209 = vunpack.c.l.s4 1966171168
  %v210 = vunpack.c.0.s8 %v209
  %v211 = vlaneseq
  %v212 = vshrl.u32 %v211, 7
  %v213 = vsub.s32 %v210, %v212
  %v214 = vrot.slane %v198, %v213
  %v216 = vunpack.c.l.s4 1966171168
  %v217 = vunpack.c.0.s8 %v216
  %v218 = vlaneseq
  %v219 = vshrl.u32 %v218, 7
  %v220 = vsub.s32 %v217, %v219
  %v221 = vrot.slane %v205, %v220
  %v223 = vunpack.c.l.s4 1966171168
  %v224 = vunpack.c.0.s8 %v223
  %v225 = vlaneseq
  %v226 = vshrl.u32 %v225, 7
  %v227 = vsub.s32 %v224, %v226
  %v228 = vrot.slane %v206, %v227
  %v230 = vunpack.c.l.s4 1966171168
  %v231 = vunpack.c.0.s8 %v230
  %v232 = vlaneseq
  %v233 = vshrl.u32 %v232, 7
  %v234 = vsub.s32 %v231, %v233
  %v235 = vrot.slane %v207, %v234
  %v236 = vcombine.high %v214, %v214
  %v237 = vcombine.high %v221, %v221
  %v238 = vcombine.high %v228, %v228
  %v239 = vcombine.high %v235, %v235
  %v240 = vcombine.low %v184, %v185
  %v241 = vcombine.high %v184, %v185
  %v243 = vunpack.c.l.s4 1966171168
  %v244 = vunpack.c.0.s8 %v243
  %v245 = vlaneseq
  %v246 = vshrl.u32 %v245, 7
  %v247 = vsub.s32 %v244, %v246
  %v248 = vrot.slane %v240, %v247
  %v250 = vunpack.c.l.s4 1966171168
  %v251 = vunpack.c.0.s8 %v250
  %v252 = vlaneseq
  %v253 = vshrl.u32 %v252, 7
  %v254 = vsub.s32 %v251, %v253
  %v255 = vrot.slane %v241, %v254
  %v256 = vcombine.high %v248, %v248
  %v257 = vcombine.high %v255, %v255
  %v259 = vunpack.c.l.s4 1966171168
  %v260 = vunpack.c.0.s8 %v259
  %v261 = vlaneseq
  %v262 = vshrl.u32 %v261, 7
  %v263 = vsub.s32 %v260, %v262
  %v264 = vrot.slane %v248, %v263
  %v266 = vunpack.c.l.s4 1966171168
  %v267 = vunpack.c.0.s8 %v266
  %v268 = vlaneseq
  %v269 = vshrl.u32 %v268, 7
  %v270 = vsub.s32 %v267, %v269
  %v271 = vrot.slane %v255, %v270
  %v273 = vunpack.c.l.s4 1966171168
  %v274 = vunpack.c.0.s8 %v273
  %v275 = vlaneseq
  %v276 = vshrl.u32 %v275, 7
  %v277 = vsub.s32 %v274, %v276
  %v278 = vrot.slane %v256, %v277
  %v280 = vunpack.c.l.s4 1966171168
  %v281 = vunpack.c.0.s8 %v280
  %v282 = vlaneseq
  %v283 = vshrl.u32 %v282, 7
  %v284 = vsub.s32 %v281, %v283
  %v285 = vrot.slane %v257, %v284
  %v286 = vcombine.high %v264, %v264
  %v287 = vcombine.high %v271, %v271
  %v288 = vcombine.high %v278, %v278
  %v289 = vcombine.high %v285, %v285
  %v290 = vunpack.i.l.s16 %v214
  %v291 = vunpack.i.h.s16 %v214
  %v292 = vunpack.i.l.s16 %v228
  %v293 = vunpack.i.h.s16 %v228
  %v294 = vunpack.i.l.s16 %v236
  %v295 = vunpack.i.h.s16 %v236
  %v296 = vunpack.i.l.s16 %v238
  %v297 = vunpack.i.h.s16 %v238
  %v298 = vunpack.i.l.s16 %v221
  %v299 = vunpack.i.h.s16 %v221
  %v300 = vunpack.i.l.s16 %v235
  %v301 = vunpack.i.h.s16 %v235
  %v302 = vunpack.i.l.s16 %v237
  %v303 = vunpack.i.h.s16 %v237
  %v304 = vunpack.i.l.s16 %v239
  %v305 = vunpack.i.h.s16 %v239
  %v306 = vunpack.i.l.s16 %v264
  %v307 = vunpack.i.h.s16 %v264
  %v308 = vunpack.i.l.s16 %v278
  %v309 = vunpack.i.h.s16 %v278
  %v310 = vunpack.i.l.s16 %v286
  %v311 = vunpack.i.h.s16 %v286
  %v312 = vunpack.i.l.s16 %v288
  %v313 = vunpack.i.h.s16 %v288
  %v314 = vunpack.i.l.s16 %v271
  %v315 = vunpack.i.h.s16 %v271
  %v316 = vunpack.i.l.s16 %v285
  %v317 = vunpack.i.h.s16 %v285
  %v318 = vunpack.i.l.s16 %v287
  %v319 = vunpack.i.h.s16 %v287
  %v320 = vunpack.i.l.s16 %v289
  %v321 = vunpack.i.h.s16 %v289
  %v322 = vpack.i.b16 %v290, %v290
  %v323 = vpack.i.b16 %v291, %v291
  %v324 = vpack.i.b16 %v292, %v292
  %v325 = vpack.i.b16 %v293, %v293
  %v326 = vpack.i.b16 %v294, %v294
  %v327 = vpack.i.b16 %v295, %v295
  %v328 = vpack.i.b16 %v296, %v296
  %v329 = vpack.i.b16 %v297, %v297
  %v330 = vpack.i.b16 %v298, %v298
  %v331 = vpack.i.b16 %v299, %v299
  %v332 = vpack.i.b16 %v300, %v300
  %v333 = vpack.i.b16 %v301, %v301
  %v334 = vpack.i.b16 %v302, %v302
  %v335 = vpack.i.b16 %v303, %v303
  %v336 = vpack.i.b16 %v304, %v304
  %v337 = vpack.i.b16 %v305, %v305
  %v338 = vpack.i.b16 %v306, %v306
  %v339 = vpack.i.b16 %v307, %v307
  %v340 = vpack.i.b16 %v308, %v308
  %v341 = vpack.i.b16 %v309, %v309
  %v342 = vpack.i.b16 %v310, %v310
  %v343 = vpack.i.b16 %v311, %v311
  %v344 = vpack.i.b16 %v312, %v312
  %v345 = vpack.i.b16 %v313, %v313
  %v346 = vpack.i.b16 %v314, %v314
  %v347 = vpack.i.b16 %v315, %v315
  %v348 = vpack.i.b16 %v316, %v316
  %v349 = vpack.i.b16 %v317, %v317
  %v350 = vpack.i.b16 %v318, %v318
  %v351 = vpack.i.b16 %v319, %v319
  %v352 = vpack.i.b16 %v320, %v320
  %v353 = vpack.i.b16 %v321, %v321
  %vm386 = vcmask 1040384
  %vm387 = vsmask.f32 256
  %vm388 = vmand %vm386, %vm387
  %vm389 = vcmask 1041409
  %vm390 = vsmask.f32 1280
  %vm391 = vmand %vm389, %vm390
  %vm392 = vmor %vm391, %vm388
  %v393 = vld [vmem:[%s3] sm:$0x3]
  %v394 = vsel %vm392, %v322, %v393
  %395 = vst [vmem:[%s3] sm:$0x3] %v394
  %v396 = vld [vmem:[%s3 + $0x2] sm:$0x3]
  %v397 = vsel %vm392, %v323, %v396
  %398 = vst [vmem:[%s3 + $0x2] sm:$0x3] %v397
  %v399 = vld [vmem:[%s3 + $0x4] sm:$0x3]
  %v400 = vsel %vm392, %v324, %v399
  %401 = vst [vmem:[%s3 + $0x4] sm:$0x3] %v400
  %v402 = vld [vmem:[%s3 + $0x6] sm:$0x3]
  %v403 = vsel %vm392, %v325, %v402
  %404 = vst [vmem:[%s3 + $0x6] sm:$0x3] %v403
  %v405 = vld [vmem:[%s3 + $0x8] sm:$0x3]
  %v406 = vsel %vm392, %v326, %v405
  %407 = vst [vmem:[%s3 + $0x8] sm:$0x3] %v406
  %v408 = vld [vmem:[%s3 + $0xa] sm:$0x3]
  %v409 = vsel %vm392, %v327, %v408
  %410 = vst [vmem:[%s3 + $0xa] sm:$0x3] %v409
  %v411 = vld [vmem:[%s3 + $0xc] sm:$0x3]
  %v412 = vsel %vm392, %v328, %v411
  %413 = vst [vmem:[%s3 + $0xc] sm:$0x3] %v412
  %v414 = vld [vmem:[%s3 + $0xe] sm:$0x3]
  %v415 = vsel %vm392, %v329, %v414
  %416 = vst [vmem:[%s3 + $0xe] sm:$0x3] %v415
  %v417 = vld [vmem:[%s3 + $0x10] sm:$0x3]
  %v418 = vsel %vm392, %v330, %v417
  %419 = vst [vmem:[%s3 + $0x10] sm:$0x3] %v418
  %v420 = vld [vmem:[%s3 + $0x12] sm:$0x3]
  %v421 = vsel %vm392, %v331, %v420
  %422 = vst [vmem:[%s3 + $0x12] sm:$0x3] %v421
  %v423 = vld [vmem:[%s3 + $0x14] sm:$0x3]
  %v424 = vsel %vm392, %v332, %v423
  %425 = vst [vmem:[%s3 + $0x14] sm:$0x3] %v424
  %v426 = vld [vmem:[%s3 + $0x16] sm:$0x3]
  %v427 = vsel %vm392, %v333, %v426
  %428 = vst [vmem:[%s3 + $0x16] sm:$0x3] %v427
  %v429 = vld [vmem:[%s3 + $0x18] sm:$0x3]
  %v430 = vsel %vm392, %v334, %v429
  %431 = vst [vmem:[%s3 + $0x18] sm:$0x3] %v430
  %v432 = vld [vmem:[%s3 + $0x1a] sm:$0x3]
  %v433 = vsel %vm392, %v335, %v432
  %434 = vst [vmem:[%s3 + $0x1a] sm:$0x3] %v433
  %v435 = vld [vmem:[%s3 + $0x1c] sm:$0x3]
  %v436 = vsel %vm392, %v336, %v435
  %437 = vst [vmem:[%s3 + $0x1c] sm:$0x3] %v436
  %v438 = vld [vmem:[%s3 + $0x1e] sm:$0x3]
  %v439 = vsel %vm392, %v337, %v438
  %440 = vst [vmem:[%s3 + $0x1e] sm:$0x3] %v439
  %v441 = vld [vmem:[%s3 + $0x20] sm:$0x3]
  %v442 = vsel %vm392, %v338, %v441
  %443 = vst [vmem:[%s3 + $0x20] sm:$0x3] %v442
  %v444 = vld [vmem:[%s3 + $0x22] sm:$0x3]
  %v445 = vsel %vm392, %v339, %v444
  %446 = vst [vmem:[%s3 + $0x22] sm:$0x3] %v445
  %v447 = vld [vmem:[%s3 + $0x24] sm:$0x3]
  %v448 = vsel %vm392, %v340, %v447
  %449 = vst [vmem:[%s3 + $0x24] sm:$0x3] %v448
  %v450 = vld [vmem:[%s3 + $0x26] sm:$0x3]
  %v451 = vsel %vm392, %v341, %v450
  %452 = vst [vmem:[%s3 + $0x26] sm:$0x3] %v451
  %v453 = vld [vmem:[%s3 + $0x28] sm:$0x3]
  %v454 = vsel %vm392, %v342, %v453
  %455 = vst [vmem:[%s3 + $0x28] sm:$0x3] %v454
  %v456 = vld [vmem:[%s3 + $0x2a] sm:$0x3]
  %v457 = vsel %vm392, %v343, %v456
  %458 = vst [vmem:[%s3 + $0x2a] sm:$0x3] %v457
  %v459 = vld [vmem:[%s3 + $0x2c] sm:$0x3]
  %v460 = vsel %vm392, %v344, %v459
  %461 = vst [vmem:[%s3 + $0x2c] sm:$0x3] %v460
  %v462 = vld [vmem:[%s3 + $0x2e] sm:$0x3]
  %v463 = vsel %vm392, %v345, %v462
  %464 = vst [vmem:[%s3 + $0x2e] sm:$0x3] %v463
  %v465 = vld [vmem:[%s3 + $0x30] sm:$0x3]
  %v466 = vsel %vm392, %v346, %v465
  %467 = vst [vmem:[%s3 + $0x30] sm:$0x3] %v466
  %v468 = vld [vmem:[%s3 + $0x32] sm:$0x3]
  %v469 = vsel %vm392, %v347, %v468
  %470 = vst [vmem:[%s3 + $0x32] sm:$0x3] %v469
  %v471 = vld [vmem:[%s3 + $0x34] sm:$0x3]
  %v472 = vsel %vm392, %v348, %v471
  %473 = vst [vmem:[%s3 + $0x34] sm:$0x3] %v472
  %v474 = vld [vmem:[%s3 + $0x36] sm:$0x3]
  %v475 = vsel %vm392, %v349, %v474
  %476 = vst [vmem:[%s3 + $0x36] sm:$0x3] %v475
  %v477 = vld [vmem:[%s3 + $0x38] sm:$0x3]
  %v478 = vsel %vm392, %v350, %v477
  %479 = vst [vmem:[%s3 + $0x38] sm:$0x3] %v478
  %v480 = vld [vmem:[%s3 + $0x3a] sm:$0x3]
  %v481 = vsel %vm392, %v351, %v480
  %482 = vst [vmem:[%s3 + $0x3a] sm:$0x3] %v481
  %v483 = vld [vmem:[%s3 + $0x3c] sm:$0x3]
  %v484 = vsel %vm392, %v352, %v483
  %485 = vst [vmem:[%s3 + $0x3c] sm:$0x3] %v484
  %v486 = vld [vmem:[%s3 + $0x3e] sm:$0x3]
  %v487 = vsel %vm392, %v353, %v486
  %488 = vst [vmem:[%s3 + $0x3e] sm:$0x3] %v487
  %s489 = scalar_lea.vmem %s1, 128
  %v490 = vld [vmem:[%s489] sm:$0xff]
  %v491 = vld [vmem:[%s489 + $0x8] sm:$0xff]
  %v492 = vld [vmem:[%s489 + $0x10] sm:$0xff]
  %v493 = vld [vmem:[%s489 + $0x18] sm:$0xff]
  %v494 = vld [vmem:[%s489 + $0x20] sm:$0xff]
  %v495 = vld [vmem:[%s489 + $0x28] sm:$0xff]
  %v496 = vld [vmem:[%s489 + $0x30] sm:$0xff]
  %v497 = vld [vmem:[%s489 + $0x38] sm:$0xff]
  %v498 = vld [vmem:[%s489 + $0x40] sm:$0xff]
  %v499 = vld [vmem:[%s489 + $0x48] sm:$0xff]
  %v500 = vld [vmem:[%s489 + $0x50] sm:$0xff]
  %v501 = vld [vmem:[%s489 + $0x58] sm:$0xff]
  %v502 = vld [vmem:[%s489 + $0x60] sm:$0xff]
  %v503 = vld [vmem:[%s489 + $0x68] sm:$0xff]
  %v504 = vld [vmem:[%s489 + $0x70] sm:$0xff]
  %v505 = vld [vmem:[%s489 + $0x78] sm:$0xff]
  %v522 = vunpack.c.l.b16 %v490
  %v523 = vunpack.c.h.b16 %v490
  %v524 = vunpack.c.l.b16 %v491
  %v525 = vunpack.c.h.b16 %v491
  %v526 = vunpack.c.l.b16 %v492
  %v527 = vunpack.c.h.b16 %v492
  %v528 = vunpack.c.l.b16 %v493
  %v529 = vunpack.c.h.b16 %v493
  %v530 = vunpack.c.l.b16 %v494
  %v531 = vunpack.c.h.b16 %v494
  %v532 = vunpack.c.l.b16 %v495
  %v533 = vunpack.c.h.b16 %v495
  %v534 = vunpack.c.l.b16 %v496
  %v535 = vunpack.c.h.b16 %v496
  %v536 = vunpack.c.l.b16 %v497
  %v537 = vunpack.c.h.b16 %v497
  %v538 = vunpack.c.l.b16 %v498
  %v539 = vunpack.c.h.b16 %v498
  %v540 = vunpack.c.l.b16 %v499
  %v541 = vunpack.c.h.b16 %v499
  %v542 = vunpack.c.l.b16 %v500
  %v543 = vunpack.c.h.b16 %v500
  %v544 = vunpack.c.l.b16 %v501
  %v545 = vunpack.c.h.b16 %v501
  %v546 = vunpack.c.l.b16 %v502
  %v547 = vunpack.c.h.b16 %v502
  %v548 = vunpack.c.l.b16 %v503
  %v549 = vunpack.c.h.b16 %v503
  %v550 = vunpack.c.l.b16 %v504
  %v551 = vunpack.c.h.b16 %v504
  %v552 = vunpack.c.l.b16 %v505
  %v553 = vunpack.c.h.b16 %v505
  %v554 = vpack.c.b16 %v524, %v522
  %v555 = vpack.c.b16 %v525, %v523
  %v556 = vpack.c.b16 %v528, %v526
  %v557 = vpack.c.b16 %v529, %v527
  %v558 = vpack.c.b16 %v532, %v530
  %v559 = vpack.c.b16 %v533, %v531
  %v560 = vpack.c.b16 %v536, %v534
  %v561 = vpack.c.b16 %v537, %v535
  %v562 = vpack.c.b16 %v540, %v538
  %v563 = vpack.c.b16 %v541, %v539
  %v564 = vpack.c.b16 %v544, %v542
  %v565 = vpack.c.b16 %v545, %v543
  %v566 = vpack.c.b16 %v548, %v546
  %v567 = vpack.c.b16 %v549, %v547
  %v568 = vpack.c.b16 %v552, %v550
  %v569 = vpack.c.b16 %v553, %v551
  %586 = vmatprep.subr.bf16.mxu0 %v569
  %587 = vmatpush1.bf16.msra.mxu0 %v568
  %588 = vmatprep.subr.bf16.mxu0 %v567
  %589 = vmatpush1.bf16.msra.mxu0 %v566
  %590 = vmatprep.subr.bf16.mxu0 %v565
  %591 = vmatpush1.bf16.msra.mxu0 %v564
  %592 = vmatprep.subr.bf16.mxu0 %v563
  %593 = vmatpush1.bf16.msra.mxu0 %v562
  %594 = vmatprep.subr.bf16.mxu0 %v561
  %595 = vmatpush1.bf16.msra.mxu0 %v560
  %596 = vmatprep.subr.bf16.mxu0 %v559
  %597 = vmatpush1.bf16.msra.mxu0 %v558
  %598 = vmatprep.subr.bf16.mxu0 %v557
  %599 = vmatpush1.bf16.msra.mxu0 %v556
  %600 = vmatprep.subr.bf16.mxu0 %v555
  %601 = vmatpush1.bf16.msra.mxu0 %v554
  %602 = vmatprep.subr.bf16.mxu0 0
  %603 = vmatpush2.bf16.msra.mxu0 0
  %604 = vmatprep.subr.bf16.mxu0 0
  %605 = vmatpush2.bf16.msra.mxu0 0
  %606 = vmatprep.subr.bf16.mxu0 0
  %607 = vmatpush2.bf16.msra.mxu0 0
  %608 = vmatprep.subr.bf16.mxu0 0
  %609 = vmatpush2.bf16.msra.mxu0 0
  %610 = vmatprep.subr.bf16.mxu0 0
  %611 = vmatpush2.bf16.msra.mxu0 0
  %612 = vmatprep.subr.bf16.mxu0 0
  %613 = vmatpush2.bf16.msra.mxu0 0
  %614 = vmatprep.subr.bf16.mxu0 0
  %615 = vmatpush2.bf16.msra.mxu0 0
  %616 = vmatprep.subr.bf16.mxu0 0
  %617 = vmatpush2.bf16.msra.mxu0 0
  %618 = vmatprep.mubr.bf16.mxu0 0
  %619 = vmatmul.mubr.bf16.gmra.mxu0 %v19
  %v620 = vpop.f32.mrf.mxu0
  %v621 = vadd.f32 %v42, %v620
  %v622 = vpop.f32.mrf.mxu0
  %v623 = vadd.f32 %v46, %v622
  %v624 = vpop.f32.mrf.mxu0
  %v625 = vadd.f32 %v42, %v624
  %v626 = vpop.f32.mrf.mxu0
  %v627 = vadd.f32 %v46, %v626
  %628 = vmatprep.mubr.bf16.mxu0 0
  %629 = vmatmul.mubr.bf16.gmra.mxu0 %v20
  %v630 = vpop.f32.mrf.mxu0
  %v631 = vadd.f32 %v42, %v630
  %v632 = vpop.f32.mrf.mxu0
  %v633 = vadd.f32 %v46, %v632
  %v634 = vpop.f32.mrf.mxu0
  %v635 = vadd.f32 %v42, %v634
  %v636 = vpop.f32.mrf.mxu0
  %v637 = vadd.f32 %v46, %v636
  %638 = vdwg.mxu0
  %v639 = vpack.c.bf16 %v625, %v621
  %v640 = vpack.c.bf16 %v627, %v623
  %v641 = vpack.c.bf16 %v635, %v631
  %v642 = vpack.c.bf16 %v637, %v633
  %v647 = vcombine.low %v639, %v640
  %v648 = vcombine.high %v639, %v640
  %v650 = vunpack.c.l.s4 1966171168
  %v651 = vunpack.c.0.s8 %v650
  %v652 = vlaneseq
  %v653 = vshrl.u32 %v652, 7
  %v654 = vsub.s32 %v651, %v653
  %v655 = vrot.slane %v647, %v654
  %v657 = vunpack.c.l.s4 1966171168
  %v658 = vunpack.c.0.s8 %v657
  %v659 = vlaneseq
  %v660 = vshrl.u32 %v659, 7
  %v661 = vsub.s32 %v658, %v660
  %v662 = vrot.slane %v648, %v661
  %v663 = vcombine.high %v655, %v655
  %v664 = vcombine.high %v662, %v662
  %v666 = vunpack.c.l.s4 1966171168
  %v667 = vunpack.c.0.s8 %v666
  %v668 = vlaneseq
  %v669 = vshrl.u32 %v668, 7
  %v670 = vsub.s32 %v667, %v669
  %v671 = vrot.slane %v655, %v670
  %v673 = vunpack.c.l.s4 1966171168
  %v674 = vunpack.c.0.s8 %v673
  %v675 = vlaneseq
  %v676 = vshrl.u32 %v675, 7
  %v677 = vsub.s32 %v674, %v676
  %v678 = vrot.slane %v662, %v677
  %v680 = vunpack.c.l.s4 1966171168
  %v681 = vunpack.c.0.s8 %v680
  %v682 = vlaneseq
  %v683 = vshrl.u32 %v682, 7
  %v684 = vsub.s32 %v681, %v683
  %v685 = vrot.slane %v663, %v684
  %v687 = vunpack.c.l.s4 1966171168
  %v688 = vunpack.c.0.s8 %v687
  %v689 = vlaneseq
  %v690 = vshrl.u32 %v689, 7
  %v691 = vsub.s32 %v688, %v690
  %v692 = vrot.slane %v664, %v691
  %v693 = vcombine.high %v671, %v671
  %v694 = vcombine.high %v678, %v678
  %v695 = vcombine.high %v685, %v685
  %v696 = vcombine.high %v692, %v692
  %v697 = vcombine.low %v641, %v642
  %v698 = vcombine.high %v641, %v642
  %v700 = vunpack.c.l.s4 1966171168
  %v701 = vunpack.c.0.s8 %v700
  %v702 = vlaneseq
  %v703 = vshrl.u32 %v702, 7
  %v704 = vsub.s32 %v701, %v703
  %v705 = vrot.slane %v697, %v704
  %v707 = vunpack.c.l.s4 1966171168
  %v708 = vunpack.c.0.s8 %v707
  %v709 = vlaneseq
  %v710 = vshrl.u32 %v709, 7
  %v711 = vsub.s32 %v708, %v710
  %v712 = vrot.slane %v698, %v711
  %v713 = vcombine.high %v705, %v705
  %v714 = vcombine.high %v712, %v712
  %v716 = vunpack.c.l.s4 1966171168
  %v717 = vunpack.c.0.s8 %v716
  %v718 = vlaneseq
  %v719 = vshrl.u32 %v718, 7
  %v720 = vsub.s32 %v717, %v719
  %v721 = vrot.slane %v705, %v720
  %v723 = vunpack.c.l.s4 1966171168
  %v724 = vunpack.c.0.s8 %v723
  %v725 = vlaneseq
  %v726 = vshrl.u32 %v725, 7
  %v727 = vsub.s32 %v724, %v726
  %v728 = vrot.slane %v712, %v727
  %v730 = vunpack.c.l.s4 1966171168
  %v731 = vunpack.c.0.s8 %v730
  %v732 = vlaneseq
  %v733 = vshrl.u32 %v732, 7
  %v734 = vsub.s32 %v731, %v733
  %v735 = vrot.slane %v713, %v734
  %v737 = vunpack.c.l.s4 1966171168
  %v738 = vunpack.c.0.s8 %v737
  %v739 = vlaneseq
  %v740 = vshrl.u32 %v739, 7
  %v741 = vsub.s32 %v738, %v740
  %v742 = vrot.slane %v714, %v741
  %v743 = vcombine.high %v721, %v721
  %v744 = vcombine.high %v728, %v728
  %v745 = vcombine.high %v735, %v735
  %v746 = vcombine.high %v742, %v742
  %v747 = vunpack.i.l.s16 %v671
  %v748 = vunpack.i.h.s16 %v671
  %v749 = vunpack.i.l.s16 %v685
  %v750 = vunpack.i.h.s16 %v685
  %v751 = vunpack.i.l.s16 %v693
  %v752 = vunpack.i.h.s16 %v693
  %v753 = vunpack.i.l.s16 %v695
  %v754 = vunpack.i.h.s16 %v695
  %v755 = vunpack.i.l.s16 %v678
  %v756 = vunpack.i.h.s16 %v678
  %v757 = vunpack.i.l.s16 %v692
  %v758 = vunpack.i.h.s16 %v692
  %v759 = vunpack.i.l.s16 %v694
  %v760 = vunpack.i.h.s16 %v694
  %v761 = vunpack.i.l.s16 %v696
  %v762 = vunpack.i.h.s16 %v696
  %v763 = vunpack.i.l.s16 %v721
  %v764 = vunpack.i.h.s16 %v721
  %v765 = vunpack.i.l.s16 %v735
  %v766 = vunpack.i.h.s16 %v735
  %v767 = vunpack.i.l.s16 %v743
  %v768 = vunpack.i.h.s16 %v743
  %v769 = vunpack.i.l.s16 %v745
  %v770 = vunpack.i.h.s16 %v745
  %v771 = vunpack.i.l.s16 %v728
  %v772 = vunpack.i.h.s16 %v728
  %v773 = vunpack.i.l.s16 %v742
  %v774 = vunpack.i.h.s16 %v742
  %v775 = vunpack.i.l.s16 %v744
  %v776 = vunpack.i.h.s16 %v744
  %v777 = vunpack.i.l.s16 %v746
  %v778 = vunpack.i.h.s16 %v746
  %v779 = vpack.i.b16 %v747, %v747
  %v780 = vpack.i.b16 %v748, %v748
  %v781 = vpack.i.b16 %v749, %v749
  %v782 = vpack.i.b16 %v750, %v750
  %v783 = vpack.i.b16 %v751, %v751
  %v784 = vpack.i.b16 %v752, %v752
  %v785 = vpack.i.b16 %v753, %v753
  %v786 = vpack.i.b16 %v754, %v754
  %v787 = vpack.i.b16 %v755, %v755
  %v788 = vpack.i.b16 %v756, %v756
  %v789 = vpack.i.b16 %v757, %v757
  %v790 = vpack.i.b16 %v758, %v758
  %v791 = vpack.i.b16 %v759, %v759
  %v792 = vpack.i.b16 %v760, %v760
  %v793 = vpack.i.b16 %v761, %v761
  %v794 = vpack.i.b16 %v762, %v762
  %v795 = vpack.i.b16 %v763, %v763
  %v796 = vpack.i.b16 %v764, %v764
  %v797 = vpack.i.b16 %v765, %v765
  %v798 = vpack.i.b16 %v766, %v766
  %v799 = vpack.i.b16 %v767, %v767
  %v800 = vpack.i.b16 %v768, %v768
  %v801 = vpack.i.b16 %v769, %v769
  %v802 = vpack.i.b16 %v770, %v770
  %v803 = vpack.i.b16 %v771, %v771
  %v804 = vpack.i.b16 %v772, %v772
  %v805 = vpack.i.b16 %v773, %v773
  %v806 = vpack.i.b16 %v774, %v774
  %v807 = vpack.i.b16 %v775, %v775
  %v808 = vpack.i.b16 %v776, %v776
  %v809 = vpack.i.b16 %v777, %v777
  %v810 = vpack.i.b16 %v778, %v778
  %vm843 = vsmask.f32 7938
  %vm844 = vmand %vm386, %vm843
  %vm845 = vsmask.f32 7942
  %vm846 = vmand %vm389, %vm845
  %vm847 = vmor %vm846, %vm844
  %v848 = vld [vmem:[%s3] sm:$0x3]
  %v849 = vsel %vm847, %v779, %v848
  %850 = vst [vmem:[%s3] sm:$0x3] %v849
  %v851 = vld [vmem:[%s3 + $0x2] sm:$0x3]
  %v852 = vsel %vm847, %v780, %v851
  %853 = vst [vmem:[%s3 + $0x2] sm:$0x3] %v852
  %v854 = vld [vmem:[%s3 + $0x4] sm:$0x3]
  %v855 = vsel %vm847, %v781, %v854
  %856 = vst [vmem:[%s3 + $0x4] sm:$0x3] %v855
  %v857 = vld [vmem:[%s3 + $0x6] sm:$0x3]
  %v858 = vsel %vm847, %v782, %v857
  %859 = vst [vmem:[%s3 + $0x6] sm:$0x3] %v858
  %v860 = vld [vmem:[%s3 + $0x8] sm:$0x3]
  %v861 = vsel %vm847, %v783, %v860
  %862 = vst [vmem:[%s3 + $0x8] sm:$0x3] %v861
  %v863 = vld [vmem:[%s3 + $0xa] sm:$0x3]
  %v864 = vsel %vm847, %v784, %v863
  %865 = vst [vmem:[%s3 + $0xa] sm:$0x3] %v864
  %v866 = vld [vmem:[%s3 + $0xc] sm:$0x3]
  %v867 = vsel %vm847, %v785, %v866
  %868 = vst [vmem:[%s3 + $0xc] sm:$0x3] %v867
  %v869 = vld [vmem:[%s3 + $0xe] sm:$0x3]
  %v870 = vsel %vm847, %v786, %v869
  %871 = vst [vmem:[%s3 + $0xe] sm:$0x3] %v870
  %v872 = vld [vmem:[%s3 + $0x10] sm:$0x3]
  %v873 = vsel %vm847, %v787, %v872
  %874 = vst [vmem:[%s3 + $0x10] sm:$0x3] %v873
  %v875 = vld [vmem:[%s3 + $0x12] sm:$0x3]
  %v876 = vsel %vm847, %v788, %v875
  %877 = vst [vmem:[%s3 + $0x12] sm:$0x3] %v876
  %v878 = vld [vmem:[%s3 + $0x14] sm:$0x3]
  %v879 = vsel %vm847, %v789, %v878
  %880 = vst [vmem:[%s3 + $0x14] sm:$0x3] %v879
  %v881 = vld [vmem:[%s3 + $0x16] sm:$0x3]
  %v882 = vsel %vm847, %v790, %v881
  %883 = vst [vmem:[%s3 + $0x16] sm:$0x3] %v882
  %v884 = vld [vmem:[%s3 + $0x18] sm:$0x3]
  %v885 = vsel %vm847, %v791, %v884
  %886 = vst [vmem:[%s3 + $0x18] sm:$0x3] %v885
  %v887 = vld [vmem:[%s3 + $0x1a] sm:$0x3]
  %v888 = vsel %vm847, %v792, %v887
  %889 = vst [vmem:[%s3 + $0x1a] sm:$0x3] %v888
  %v890 = vld [vmem:[%s3 + $0x1c] sm:$0x3]
  %v891 = vsel %vm847, %v793, %v890
  %892 = vst [vmem:[%s3 + $0x1c] sm:$0x3] %v891
  %v893 = vld [vmem:[%s3 + $0x1e] sm:$0x3]
  %v894 = vsel %vm847, %v794, %v893
  %895 = vst [vmem:[%s3 + $0x1e] sm:$0x3] %v894
  %v896 = vld [vmem:[%s3 + $0x20] sm:$0x3]
  %v897 = vsel %vm847, %v795, %v896
  %898 = vst [vmem:[%s3 + $0x20] sm:$0x3] %v897
  %v899 = vld [vmem:[%s3 + $0x22] sm:$0x3]
  %v900 = vsel %vm847, %v796, %v899
  %901 = vst [vmem:[%s3 + $0x22] sm:$0x3] %v900
  %v902 = vld [vmem:[%s3 + $0x24] sm:$0x3]
  %v903 = vsel %vm847, %v797, %v902
  %904 = vst [vmem:[%s3 + $0x24] sm:$0x3] %v903
  %v905 = vld [vmem:[%s3 + $0x26] sm:$0x3]
  %v906 = vsel %vm847, %v798, %v905
  %907 = vst [vmem:[%s3 + $0x26] sm:$0x3] %v906
  %v908 = vld [vmem:[%s3 + $0x28] sm:$0x3]
  %v909 = vsel %vm847, %v799, %v908
  %910 = vst [vmem:[%s3 + $0x28] sm:$0x3] %v909
  %v911 = vld [vmem:[%s3 + $0x2a] sm:$0x3]
  %v912 = vsel %vm847, %v800, %v911
  %913 = vst [vmem:[%s3 + $0x2a] sm:$0x3] %v912
  %v914 = vld [vmem:[%s3 + $0x2c] sm:$0x3]
  %v915 = vsel %vm847, %v801, %v914
  %916 = vst [vmem:[%s3 + $0x2c] sm:$0x3] %v915
  %v917 = vld [vmem:[%s3 + $0x2e] sm:$0x3]
  %v918 = vsel %vm847, %v802, %v917
  %919 = vst [vmem:[%s3 + $0x2e] sm:$0x3] %v918
  %v920 = vld [vmem:[%s3 + $0x30] sm:$0x3]
  %v921 = vsel %vm847, %v803, %v920
  %922 = vst [vmem:[%s3 + $0x30] sm:$0x3] %v921
  %v923 = vld [vmem:[%s3 + $0x32] sm:$0x3]
  %v924 = vsel %vm847, %v804, %v923
  %925 = vst [vmem:[%s3 + $0x32] sm:$0x3] %v924
  %v926 = vld [vmem:[%s3 + $0x34] sm:$0x3]
  %v927 = vsel %vm847, %v805, %v926
  %928 = vst [vmem:[%s3 + $0x34] sm:$0x3] %v927
  %v929 = vld [vmem:[%s3 + $0x36] sm:$0x3]
  %v930 = vsel %vm847, %v806, %v929
  %931 = vst [vmem:[%s3 + $0x36] sm:$0x3] %v930
  %v932 = vld [vmem:[%s3 + $0x38] sm:$0x3]
  %v933 = vsel %vm847, %v807, %v932
  %934 = vst [vmem:[%s3 + $0x38] sm:$0x3] %v933
  %v935 = vld [vmem:[%s3 + $0x3a] sm:$0x3]
  %v936 = vsel %vm847, %v808, %v935
  %937 = vst [vmem:[%s3 + $0x3a] sm:$0x3] %v936
  %v938 = vld [vmem:[%s3 + $0x3c] sm:$0x3]
  %v939 = vsel %vm847, %v809, %v938
  %940 = vst [vmem:[%s3 + $0x3c] sm:$0x3] %v939
  %v941 = vld [vmem:[%s3 + $0x3e] sm:$0x3]
  %v942 = vsel %vm847, %v810, %v941
  %943 = vst [vmem:[%s3 + $0x3e] sm:$0x3] %v942
  // Predicated region
  $region14: #{decoder_block_forward.5} parent=0 // pred_check
    _
  $region15: #{decoder_block_forward.5} parent=0 // pred_check_branch
    %945 = sbr.rel (0) target = $region17
  $region16: #{decoder_block_forward.5} parent=0 // pred_region
    _
  $region17: #{decoder_block_forward.5} parent=0 // pred_fallthru
    _
  // Predicated region
  $region18: #{decoder_block_forward.5} parent=0 // pred_check
    _
  $region19: #{decoder_block_forward.5} parent=0 // pred_check_branch
    %947 = sbr.rel (0) target = $region21
  $region20: #{decoder_block_forward.5} parent=0 // pred_region
    _
  $region21: #{decoder_block_forward.5} parent=0 // pred_fallthru
    _

</llo_original>
